<compile_context>
chip_gen: v7x
topology: tpu7x:2x2x1
jax: 0.10.0
libtpu: 0.0.40
codegen_flags: <defaults>
</compile_context>

<pallas_src>
import math
import functools

import numpy as np
import jax
import jax.numpy as jnp
from jax import lax
from jax.experimental import pallas as pl
from jax.experimental.pallas import tpu as pltpu


def _sine_pos_kernel(inv_dim_ref, phase_ref, o_ref, *,
                     h, w, num_pos_feats, normalize, scale, block_hw):
    # inv_dim_ref, phase_ref: (C, 1) f32 constants (per-channel 1/dim_t and sin-phase)
    # o_ref:                  (C, block_hw) f32 output block, channel-major, spatial in lanes
    C, bhw = o_ref.shape

    # Global flattened spatial index p for each lane of this block.
    p = (lax.broadcasted_iota(jnp.int32, (1, bhw), 1)
         + pl.program_id(0) * block_hw).astype(jnp.float32)

    # Decompose p -> (row, col). Exact in f32 for any realistic feature map (h*w < 2^24).
    row = jnp.floor(p / jnp.float32(w))
    col = p - row * jnp.float32(w)

    y_embed = row + 1.0          # 1..h along rows
    x_embed = col + 1.0          # 1..w along cols

    if normalize:
        eps = 1e-6
        y_embed = y_embed * jnp.float32(scale / (float(h) + eps))
        x_embed = x_embed * jnp.float32(scale / (float(w) + eps))

    # Channel select: first num_pos_feats channels use y_embed, the rest use x_embed.
    ch = lax.broadcasted_iota(jnp.int32, (C, 1), 0)
    embed = jnp.where(ch < num_pos_feats, y_embed, x_embed)          # (C, bhw)

    # Single fused transcendental: cos(v) == sin(v + pi/2) -> phase handles even/odd interleave.
    arg = embed * inv_dim_ref[...] + phase_ref[...]                  # (C, bhw)
    o_ref[...] = jnp.sin(arg).astype(o_ref.dtype)


def position_embedding_sine(x, num_pos_feats=64, temperature=10000,
                            normalize=False, scale=None):
    """Pallas implementation of PositionEmbeddingSine.forward (returns NCHW, f32)."""
    if scale is not None and normalize is False:
        raise ValueError("normalize should be True if scale is passed")
    if scale is None:
        scale = 2 * math.pi

    bs, c, h, w = x.shape
    F = num_pos_feats
    C = 2 * F

    LANE = 128
    MAX_BLOCK_HW = 4096  # 4096 lanes * C=128 * 4B = 2 MiB per output block

    hw = h * w
    hw_pad = max(LANE, -(-hw // LANE) * LANE)           # round up to lane multiple
    if hw_pad <= MAX_BLOCK_HW:
        block_hw = hw_pad
    else:
        block_hw = MAX_BLOCK_HW
        hw_pad = -(-hw_pad // block_hw) * block_hw      # round up to block multiple
    grid = (hw_pad // block_hw,)

    # Per-output-channel constants (numpy, static): 1/dim_t and sin-phase (0 or pi/2).
    j = np.arange(C)
    k = j % F
    inv_dim_t = (float(temperature) ** (-(2.0 * (k // 2)) / float(F))).astype(np.float32)
    phase = ((k % 2).astype(np.float32) * np.float32(np.pi / 2.0))
    inv_dim_t = jnp.asarray(inv_dim_t.reshape(C, 1))
    phase = jnp.asarray(phase.reshape(C, 1))

    kernel = functools.partial(
        _sine_pos_kernel,
        h=h, w=w, num_pos_feats=F,
        normalize=normalize, scale=float(scale), block_hw=block_hw,
    )

    pos_chw = pl.pallas_call(
        kernel,
        out_shape=jax.ShapeDtypeStruct((C, hw_pad), jnp.float32),
        grid=grid,
        in_specs=[
            pl.BlockSpec((C, 1), lambda i: (0, 0)),   # inv_dim_t (full, constant block)
            pl.BlockSpec((C, 1), lambda i: (0, 0)),   # phase     (full, constant block)
        ],
        out_specs=pl.BlockSpec((C, block_hw), lambda i: (0, i)),
        compiler_params=pltpu.CompilerParams(dimension_semantics=("parallel",)),
    )(inv_dim_t, phase)

    # Free layout plumbing: drop lane padding, split hw -> (h, w), broadcast over batch.
    pos = pos_chw[:, :hw].reshape(C, h, w)
    return jnp.broadcast_to(pos[None], (bs, C, h, w))


def _reference(x, num_pos_feats=64, temperature=10000, normalize=False, scale=None):
    """Pure-JAX mirror of the PyTorch forward for verification."""
    if scale is None:
        scale = 2 * math.pi
    bs, c, h, w = x.shape
    y_embed = jnp.broadcast_to(
        jnp.arange(1, h + 1, dtype=jnp.float32)[None, :, None], (bs, h, w))
    x_embed = jnp.broadcast_to(
        jnp.arange(1, w + 1, dtype=jnp.float32)[None, None, :], (bs, h, w))
    if normalize:
        eps = 1e-6
        y_embed = y_embed / (y_embed[:, -1:, :] + eps) * scale
        x_embed = x_embed / (x_embed[:, :, -1:] + eps) * scale
    i = jnp.arange(num_pos_feats, dtype=jnp.float32)
    dim_t = float(temperature) ** (2 * jnp.floor(i / 2) / num_pos_feats)
    pos_x = x_embed[..., None] / dim_t
    pos_y = y_embed[..., None] / dim_t
    pos_x = jnp.stack([jnp.sin(pos_x[..., 0::2]), jnp.cos(pos_x[..., 1::2])],
                      axis=4).reshape(bs, h, w, -1)
    pos_y = jnp.stack([jnp.sin(pos_y[..., 0::2]), jnp.cos(pos_y[..., 1::2])],
                      axis=4).reshape(bs, h, w, -1)
    return jnp.concatenate([pos_y, pos_x], axis=3).transpose(0, 3, 1, 2)


if __name__ == "__main__":
    key = jax.random.PRNGKey(0)
    x = jax.random.normal(key, (2, 4, 16, 16), dtype=jnp.float32)

    out = position_embedding_sine(x, num_pos_feats=64, temperature=10000, normalize=False)
    out = jax.block_until_ready(out)

    ref = _reference(x, num_pos_feats=64, temperature=10000, normalize=False)
    assert out.shape == (2, 128, 16, 16), out.shape
    np.testing.assert_allclose(np.asarray(out), np.asarray(ref), rtol=1e-5, atol=1e-5)

    # also exercise the normalize=True path
    out_n = jax.block_until_ready(
        position_embedding_sine(x, num_pos_feats=64, normalize=True))
    ref_n = _reference(x, num_pos_feats=64, normalize=True)
    np.testing.assert_allclose(np.asarray(out_n), np.asarray(ref_n), rtol=1e-5, atol=1e-5)

    print("KERNEL_OK")
</pallas_src>

<mosaic_0001>
module attributes {stable_mosaic.version = 11 : i64} {
  func.func @_sine_pos_kernel(%arg0: i32, %arg1: memref<128x1xf32, #tpu.memory_space<vmem>>, %arg2: memref<128x1xf32, #tpu.memory_space<vmem>>, %arg3: memref<128x256xf32, #tpu.memory_space<vmem>>) attributes {dimension_semantics = [#tpu.dimension_semantics<parallel>], iteration_bounds = array<i64: 1>, scalar_prefetch = 0 : i64, scratch_operands = 0 : i64, tpu.core_type = #tpu.core_type<tc>, window_params = [{pipeline_mode = #tpu.pipeline_mode<synchronous>, transform_indices = @transform_0, window_bounds = array<i64: 128, 1>}, {pipeline_mode = #tpu.pipeline_mode<synchronous>, transform_indices = @transform_1, window_bounds = array<i64: 128, 1>}, {transform_indices = @transform_2, window_bounds = array<i64: 128, 256>}]} {
    %0 = tpu.iota {dimensions = array<i32: 1>} : vector<1x256xi32>
    %c256_i32 = arith.constant 256 : i32
    %1 = arith.muli %arg0, %c256_i32 : i32
    %2 = vector.broadcast %1 : i32 to vector<1x256xi32>
    %3 = arith.addi %0, %2 : vector<1x256xi32>
    %4 = arith.sitofp %3 : vector<1x256xi32> to vector<1x256xf32>
    %cst = arith.constant 1.600000e+01 : f32
    %5 = vector.broadcast %cst : f32 to vector<1x256xf32>
    %6 = arith.divf %4, %5 : vector<1x256xf32>
    %7 = math.floor %6 : vector<1x256xf32>
    %cst_0 = arith.constant 1.600000e+01 : f32
    %8 = vector.broadcast %cst_0 : f32 to vector<1x256xf32>
    %9 = arith.mulf %7, %8 : vector<1x256xf32>
    %10 = arith.subf %4, %9 : vector<1x256xf32>
    %cst_1 = arith.constant 1.000000e+00 : f32
    %11 = vector.broadcast %cst_1 : f32 to vector<1x256xf32>
    %12 = arith.addf %7, %11 : vector<1x256xf32>
    %cst_2 = arith.constant 1.000000e+00 : f32
    %13 = vector.broadcast %cst_2 : f32 to vector<1x256xf32>
    %14 = arith.addf %10, %13 : vector<1x256xf32>
    %15 = tpu.iota {dimensions = array<i32: 0>} : vector<128x1xi32>
    %c64_i32 = arith.constant 64 : i32
    %16 = vector.broadcast %c64_i32 : i32 to vector<128x1xi32>
    %17 = arith.cmpi slt, %15, %16 : vector<128x1xi32>
    %18 = vector.shape_cast %17 : vector<128x1xi1> to vector<128x1xi1>
    %19 = vector.broadcast %18 : vector<128x1xi1> to vector<128x256xi1>
    %20 = vector.shape_cast %12 : vector<1x256xf32> to vector<1x256xf32>
    %21 = vector.broadcast %20 : vector<1x256xf32> to vector<128x256xf32>
    %22 = vector.shape_cast %14 : vector<1x256xf32> to vector<1x256xf32>
    %23 = vector.broadcast %22 : vector<1x256xf32> to vector<128x256xf32>
    %24 = arith.select %19, %21, %23 : vector<128x256xi1>, vector<128x256xf32>
    %c0 = arith.constant 0 : index
    %c0_3 = arith.constant 0 : index
    %25 = vector.load %arg1[%c0, %c0_3] : memref<128x1xf32, #tpu.memory_space<vmem>>, vector<128x1xf32>
    %26 = vector.broadcast %25 : vector<128x1xf32> to vector<128x256xf32>
    %27 = arith.mulf %24, %26 : vector<128x256xf32>
    %c0_4 = arith.constant 0 : index
    %c0_5 = arith.constant 0 : index
    %28 = vector.load %arg2[%c0_4, %c0_5] : memref<128x1xf32, #tpu.memory_space<vmem>>, vector<128x1xf32>
    %29 = vector.broadcast %28 : vector<128x1xf32> to vector<128x256xf32>
    %30 = arith.addf %27, %29 : vector<128x256xf32>
    %31 = math.sin %30 : vector<128x256xf32>
    %c0_6 = arith.constant 0 : index
    %c0_7 = arith.constant 0 : index
    %32 = vector.load %arg3[%c0_6, %c0_7] : memref<128x256xf32, #tpu.memory_space<vmem>>, vector<128x256xf32>
    tpu.vector_store %arg3[%c0_6, %c0_7], %31 {strides = array<i32>} : memref<128x256xf32, #tpu.memory_space<vmem>>, vector<128x256xf32>,
    return
  }
  func.func @transform_0(%arg0: i32) -> (i32, i32) {
    %c0_i32 = arith.constant 0 : i32
    %c0_i32_0 = arith.constant 0 : i32
    %c0_i32_1 = arith.constant 0 : i32
    return %c0_i32, %c0_i32_0 : i32, i32
  }
  func.func @transform_1(%arg0: i32) -> (i32, i32) {
    %c0_i32 = arith.constant 0 : i32
    %c0_i32_0 = arith.constant 0 : i32
    %c0_i32_1 = arith.constant 0 : i32
    return %c0_i32, %c0_i32_0 : i32, i32
  }
  func.func @transform_2(%arg0: i32) -> (i32, i32) {
    %c0_i32 = arith.constant 0 : i32
    %c0_i32_0 = arith.constant 0 : i32
    return %c0_i32, %arg0 : i32, i32
  }
}

</mosaic_0001>

<llo_original>
// kernel: tpu_custom_call.1
$region0: #{tpu_custom_call.1}
  #allocation0 [shape = 'u32[]', space=smem, size = 0x4, offset = 0x4, fixed_abs, tag = 'smem constant byte address 0x4 - core index']
  #allocation1 [shape = 'u32[144,128]{1,0:T(1,128)}', space=vmem, size = 0x12000, scoped, tag = 'internal scratch']
  %s0 = inlined_call_operand.vmem [shape: f32[128,1], index: 0, kind: input, shape index: {}]
  %s1 = inlined_call_operand.vmem [shape: f32[128,1], index: 1, kind: input, shape index: {}]
  %s2 = inlined_call_operand.hbm [shape: f32[128,256], index: 2, kind: output, shape index: {}]
  %s3 = sld [smem:[#allocation0]]
  $region18: #{tpu_custom_call.1} parent=0
    _
  %s5 = ssub.s32 1, %s3
  %s6 = scalar_select 0, %s5, %s3
  $region1: #{tpu_custom_call.1} parent=0
    #allocation2 [shape = 'u8[131072]{0}', space=vmem, size = 0x20000, scoped, tag = 'output window, operand 0, single buffered']
    #allocation3 [shape = 's32[1]{0}', space=sflag, size = 0x4, scoped, tag = 'scoped memory for tpu_custom_call.1']
    %7 = vsyncpa [#allocation3], 0
    // Predicated region
    $region2: #{tpu_custom_call.1} parent=1 // pred_check
      _
    $region3: #{tpu_custom_call.1} parent=1 // pred_check_branch
      %9 = sbr.rel (0) target = $region5
    $region4: #{tpu_custom_call.1} parent=1 // pred_region
      _
    $region5: #{tpu_custom_call.1} parent=1 // pred_fallthru
      _
    // Predicated region
    $region6: #{tpu_custom_call.1} parent=1 // pred_check
      _
    $region7: #{tpu_custom_call.1} parent=1 // pred_check_branch
      %11 = sbr.rel (0) target = $region9
    $region8: #{tpu_custom_call.1} parent=1 // pred_region
      _
    $region9: #{tpu_custom_call.1} parent=1 // pred_fallthru
      _
    %v12 = vlaneseq
    %v13 = vand.u32 %v12, 127
    %v14 = vadd.s32 %v13, 128
    %s15 = smul.u32 0, 256
    %v16 = vstv %s15
    %v17 = vadd.s32 %v13, %v16
    %v18 = vadd.s32 %v14, %v16
    %v19 = vcvt.s32.f32 %v17
    %v20 = vcvt.s32.f32 %v18
    %v21 = vrcp.pop 16.0
    %v22 = vmul.f32 %v19, %v21
    %v23 = vmul.f32 %v20, %v21
    %v24 = vfloor.f32 %v22
    %v25 = vfloor.f32 %v23
    %v26 = vmul.f32 %v24, 16.0
    %v27 = vmul.f32 %v25, 16.0
    %v28 = vsub.f32 %v19, %v26
    %v29 = vsub.f32 %v20, %v27
    %v30 = vadd.f32 %v24, 1.0
    %v31 = vadd.f32 %v25, 1.0
    %v32 = vadd.f32 %v28, 1.0
    %v33 = vadd.f32 %v29, 1.0
    %v34 = vlaneseq
    %v35 = vshrl.u32 %v34, 7
    %v36 = vadd.s32 %v35, 8
    %v37 = vadd.s32 %v35, 16
    %v38 = vadd.s32 %v35, 24
    %v39 = vadd.s32 %v35, 32
    %v40 = vadd.s32 %v35, 40
    %v41 = vadd.s32 %v35, 48
    %v42 = vadd.s32 %v35, 56
    %v43 = vadd.s32 %v35, 64
    %v44 = vadd.s32 %v35, 72
    %v45 = vadd.s32 %v35, 80
    %v46 = vadd.s32 %v35, 88
    %v47 = vadd.s32 %v35, 96
    %v48 = vadd.s32 %v35, 104
    %v49 = vadd.s32 %v35, 112
    %v50 = vadd.s32 %v35, 120
    %vm51 = vcmp.lt.s32.totalorder %v35, 64
    %vm52 = vcmp.lt.s32.totalorder %v36, 64
    %vm53 = vcmp.lt.s32.totalorder %v37, 64
    %vm54 = vcmp.lt.s32.totalorder %v38, 64
    %vm55 = vcmp.lt.s32.totalorder %v39, 64
    %vm56 = vcmp.lt.s32.totalorder %v40, 64
    %vm57 = vcmp.lt.s32.totalorder %v41, 64
    %vm58 = vcmp.lt.s32.totalorder %v42, 64
    %vm59 = vcmp.lt.s32.totalorder %v43, 64
    %vm60 = vcmp.lt.s32.totalorder %v44, 64
    %vm61 = vcmp.lt.s32.totalorder %v45, 64
    %vm62 = vcmp.lt.s32.totalorder %v46, 64
    %vm63 = vcmp.lt.s32.totalorder %v47, 64
    %vm64 = vcmp.lt.s32.totalorder %v48, 64
    %vm65 = vcmp.lt.s32.totalorder %v49, 64
    %vm66 = vcmp.lt.s32.totalorder %v50, 64
    %v67 = vsel %vm51, 1, 0
    %v68 = vsel %vm52, 1, 0
    %v69 = vsel %vm53, 1, 0
    %v70 = vsel %vm54, 1, 0
    %v71 = vsel %vm55, 1, 0
    %v72 = vsel %vm56, 1, 0
    %v73 = vsel %vm57, 1, 0
    %v74 = vsel %vm58, 1, 0
    %v75 = vsel %vm59, 1, 0
    %v76 = vsel %vm60, 1, 0
    %v77 = vsel %vm61, 1, 0
    %v78 = vsel %vm62, 1, 0
    %v79 = vsel %vm63, 1, 0
    %v80 = vsel %vm64, 1, 0
    %v81 = vsel %vm65, 1, 0
    %v82 = vsel %vm66, 1, 0
    %vm83 = vcmp.eq.s32.totalorder %v67, 1
    %vm84 = vcmp.eq.s32.totalorder %v68, 1
    %vm85 = vcmp.eq.s32.totalorder %v69, 1
    %vm86 = vcmp.eq.s32.totalorder %v70, 1
    %vm87 = vcmp.eq.s32.totalorder %v71, 1
    %vm88 = vcmp.eq.s32.totalorder %v72, 1
    %vm89 = vcmp.eq.s32.totalorder %v73, 1
    %vm90 = vcmp.eq.s32.totalorder %v74, 1
    %vm91 = vcmp.eq.s32.totalorder %v75, 1
    %vm92 = vcmp.eq.s32.totalorder %v76, 1
    %vm93 = vcmp.eq.s32.totalorder %v77, 1
    %vm94 = vcmp.eq.s32.totalorder %v78, 1
    %vm95 = vcmp.eq.s32.totalorder %v79, 1
    %vm96 = vcmp.eq.s32.totalorder %v80, 1
    %vm97 = vcmp.eq.s32.totalorder %v81, 1
    %vm98 = vcmp.eq.s32.totalorder %v82, 1
    %v99 = vsel %vm83, %v30, %v32
    %v100 = vsel %vm83, %v31, %v33
    %v101 = vsel %vm84, %v30, %v32
    %v102 = vsel %vm84, %v31, %v33
    %v103 = vsel %vm85, %v30, %v32
    %v104 = vsel %vm85, %v31, %v33
    %v105 = vsel %vm86, %v30, %v32
    %v106 = vsel %vm86, %v31, %v33
    %v107 = vsel %vm87, %v30, %v32
    %v108 = vsel %vm87, %v31, %v33
    %v109 = vsel %vm88, %v30, %v32
    %v110 = vsel %vm88, %v31, %v33
    %v111 = vsel %vm89, %v30, %v32
    %v112 = vsel %vm89, %v31, %v33
    %v113 = vsel %vm90, %v30, %v32
    %v114 = vsel %vm90, %v31, %v33
    %v115 = vsel %vm91, %v30, %v32
    %v116 = vsel %vm91, %v31, %v33
    %v117 = vsel %vm92, %v30, %v32
    %v118 = vsel %vm92, %v31, %v33
    %v119 = vsel %vm93, %v30, %v32
    %v120 = vsel %vm93, %v31, %v33
    %v121 = vsel %vm94, %v30, %v32
    %v122 = vsel %vm94, %v31, %v33
    %v123 = vsel %vm95, %v30, %v32
    %v124 = vsel %vm95, %v31, %v33
    %v125 = vsel %vm96, %v30, %v32
    %v126 = vsel %vm96, %v31, %v33
    %v127 = vsel %vm97, %v30, %v32
    %v128 = vsel %vm97, %v31, %v33
    %v129 = vsel %vm98, %v30, %v32
    %v130 = vsel %vm98, %v31, %v33
    %v131 = vld [vmem:[%s0] sm:$0xff]
    %v132 = vld [vmem:[%s0 + $0x8] sm:$0xff]
    %v133 = vld [vmem:[%s0 + $0x10] sm:$0xff]
    %v134 = vld [vmem:[%s0 + $0x18] sm:$0xff]
    %v135 = vld [vmem:[%s0 + $0x20] sm:$0xff]
    %v136 = vld [vmem:[%s0 + $0x28] sm:$0xff]
    %v137 = vld [vmem:[%s0 + $0x30] sm:$0xff]
    %v138 = vld [vmem:[%s0 + $0x38] sm:$0xff]
    %v139 = vld [vmem:[%s0 + $0x40] sm:$0xff]
    %v140 = vld [vmem:[%s0 + $0x48] sm:$0xff]
    %v141 = vld [vmem:[%s0 + $0x50] sm:$0xff]
    %v142 = vld [vmem:[%s0 + $0x58] sm:$0xff]
    %v143 = vld [vmem:[%s0 + $0x60] sm:$0xff]
    %v144 = vld [vmem:[%s0 + $0x68] sm:$0xff]
    %v145 = vld [vmem:[%s0 + $0x70] sm:$0xff]
    %v146 = vld [vmem:[%s0 + $0x78] sm:$0xff]
    %148 = vset.pattern.permute.xlu0 0
    %149 = vperm.xlu0 %148, %v131
    %v150 = vpop.permute.xlu0 %149
    %153 = vset.pattern.permute.xlu0 0
    %154 = vperm.xlu0 %153, %v132
    %v155 = vpop.permute.xlu0 %154
    %158 = vset.pattern.permute.xlu0 0
    %159 = vperm.xlu0 %158, %v133
    %v160 = vpop.permute.xlu0 %159
    %163 = vset.pattern.permute.xlu0 0
    %164 = vperm.xlu0 %163, %v134
    %v165 = vpop.permute.xlu0 %164
    %168 = vset.pattern.permute.xlu0 0
    %169 = vperm.xlu0 %168, %v135
    %v170 = vpop.permute.xlu0 %169
    %173 = vset.pattern.permute.xlu0 0
    %174 = vperm.xlu0 %173, %v136
    %v175 = vpop.permute.xlu0 %174
    %178 = vset.pattern.permute.xlu0 0
    %179 = vperm.xlu0 %178, %v137
    %v180 = vpop.permute.xlu0 %179
    %183 = vset.pattern.permute.xlu0 0
    %184 = vperm.xlu0 %183, %v138
    %v185 = vpop.permute.xlu0 %184
    %188 = vset.pattern.permute.xlu0 0
    %189 = vperm.xlu0 %188, %v139
    %v190 = vpop.permute.xlu0 %189
    %193 = vset.pattern.permute.xlu0 0
    %194 = vperm.xlu0 %193, %v140
    %v195 = vpop.permute.xlu0 %194
    %198 = vset.pattern.permute.xlu0 0
    %199 = vperm.xlu0 %198, %v141
    %v200 = vpop.permute.xlu0 %199
    %203 = vset.pattern.permute.xlu0 0
    %204 = vperm.xlu0 %203, %v142
    %v205 = vpop.permute.xlu0 %204
    %208 = vset.pattern.permute.xlu0 0
    %209 = vperm.xlu0 %208, %v143
    %v210 = vpop.permute.xlu0 %209
    %213 = vset.pattern.permute.xlu0 0
    %214 = vperm.xlu0 %213, %v144
    %v215 = vpop.permute.xlu0 %214
    %218 = vset.pattern.permute.xlu0 0
    %219 = vperm.xlu0 %218, %v145
    %v220 = vpop.permute.xlu0 %219
    %223 = vset.pattern.permute.xlu0 0
    %224 = vperm.xlu0 %223, %v146
    %v225 = vpop.permute.xlu0 %224
    %v227 = vmul.f32 %v99, %v150
    %v228 = vmul.f32 %v100, %v150
    %v229 = vmul.f32 %v101, %v155
    %v230 = vmul.f32 %v102, %v155
    %v231 = vmul.f32 %v103, %v160
    %v232 = vmul.f32 %v104, %v160
    %v233 = vmul.f32 %v105, %v165
    %v234 = vmul.f32 %v106, %v165
    %v235 = vmul.f32 %v107, %v170
    %v236 = vmul.f32 %v108, %v170
    %v237 = vmul.f32 %v109, %v175
    %v238 = vmul.f32 %v110, %v175
    %v239 = vmul.f32 %v111, %v180
    %v240 = vmul.f32 %v112, %v180
    %v241 = vmul.f32 %v113, %v185
    %v242 = vmul.f32 %v114, %v185
    %v243 = vmul.f32 %v115, %v190
    %v244 = vmul.f32 %v116, %v190
    %v245 = vmul.f32 %v117, %v195
    %v246 = vmul.f32 %v118, %v195
    %v247 = vmul.f32 %v119, %v200
    %v248 = vmul.f32 %v120, %v200
    %v249 = vmul.f32 %v121, %v205
    %v250 = vmul.f32 %v122, %v205
    %v251 = vmul.f32 %v123, %v210
    %v252 = vmul.f32 %v124, %v210
    %v253 = vmul.f32 %v125, %v215
    %v254 = vmul.f32 %v126, %v215
    %v255 = vmul.f32 %v127, %v220
    %v256 = vmul.f32 %v128, %v220
    %v257 = vmul.f32 %v129, %v225
    %v258 = vmul.f32 %v130, %v225
    %v259 = vld [vmem:[%s1] sm:$0xff]
    %v260 = vld [vmem:[%s1 + $0x8] sm:$0xff]
    %v261 = vld [vmem:[%s1 + $0x10] sm:$0xff]
    %v262 = vld [vmem:[%s1 + $0x18] sm:$0xff]
    %v263 = vld [vmem:[%s1 + $0x20] sm:$0xff]
    %v264 = vld [vmem:[%s1 + $0x28] sm:$0xff]
    %v265 = vld [vmem:[%s1 + $0x30] sm:$0xff]
    %v266 = vld [vmem:[%s1 + $0x38] sm:$0xff]
    %v267 = vld [vmem:[%s1 + $0x40] sm:$0xff]
    %v268 = vld [vmem:[%s1 + $0x48] sm:$0xff]
    %v269 = vld [vmem:[%s1 + $0x50] sm:$0xff]
    %v270 = vld [vmem:[%s1 + $0x58] sm:$0xff]
    %v271 = vld [vmem:[%s1 + $0x60] sm:$0xff]
    %v272 = vld [vmem:[%s1 + $0x68] sm:$0xff]
    %v273 = vld [vmem:[%s1 + $0x70] sm:$0xff]
    %v274 = vld [vmem:[%s1 + $0x78] sm:$0xff]
    %276 = vset.pattern.permute.xlu0 0
    %277 = vperm.xlu0 %276, %v259
    %v278 = vpop.permute.xlu0 %277
    %281 = vset.pattern.permute.xlu0 0
    %282 = vperm.xlu0 %281, %v260
    %v283 = vpop.permute.xlu0 %282
    %286 = vset.pattern.permute.xlu0 0
    %287 = vperm.xlu0 %286, %v261
    %v288 = vpop.permute.xlu0 %287
    %291 = vset.pattern.permute.xlu0 0
    %292 = vperm.xlu0 %291, %v262
    %v293 = vpop.permute.xlu0 %292
    %296 = vset.pattern.permute.xlu0 0
    %297 = vperm.xlu0 %296, %v263
    %v298 = vpop.permute.xlu0 %297
    %301 = vset.pattern.permute.xlu0 0
    %302 = vperm.xlu0 %301, %v264
    %v303 = vpop.permute.xlu0 %302
    %306 = vset.pattern.permute.xlu0 0
    %307 = vperm.xlu0 %306, %v265
    %v308 = vpop.permute.xlu0 %307
    %311 = vset.pattern.permute.xlu0 0
    %312 = vperm.xlu0 %311, %v266
    %v313 = vpop.permute.xlu0 %312
    %316 = vset.pattern.permute.xlu0 0
    %317 = vperm.xlu0 %316, %v267
    %v318 = vpop.permute.xlu0 %317
    %321 = vset.pattern.permute.xlu0 0
    %322 = vperm.xlu0 %321, %v268
    %v323 = vpop.permute.xlu0 %322
    %326 = vset.pattern.permute.xlu0 0
    %327 = vperm.xlu0 %326, %v269
    %v328 = vpop.permute.xlu0 %327
    %331 = vset.pattern.permute.xlu0 0
    %332 = vperm.xlu0 %331, %v270
    %v333 = vpop.permute.xlu0 %332
    %336 = vset.pattern.permute.xlu0 0
    %337 = vperm.xlu0 %336, %v271
    %v338 = vpop.permute.xlu0 %337
    %341 = vset.pattern.permute.xlu0 0
    %342 = vperm.xlu0 %341, %v272
    %v343 = vpop.permute.xlu0 %342
    %346 = vset.pattern.permute.xlu0 0
    %347 = vperm.xlu0 %346, %v273
    %v348 = vpop.permute.xlu0 %347
    %351 = vset.pattern.permute.xlu0 0
    %352 = vperm.xlu0 %351, %v274
    %v353 = vpop.permute.xlu0 %352
    %v355 = vadd.f32 %v227, %v278
    %v356 = vadd.f32 %v228, %v278
    %v357 = vadd.f32 %v229, %v283
    %v358 = vadd.f32 %v230, %v283
    %v359 = vadd.f32 %v231, %v288
    %v360 = vadd.f32 %v232, %v288
    %v361 = vadd.f32 %v233, %v293
    %v362 = vadd.f32 %v234, %v293
    %v363 = vadd.f32 %v235, %v298
    %v364 = vadd.f32 %v236, %v298
    %v365 = vadd.f32 %v237, %v303
    %v366 = vadd.f32 %v238, %v303
    %v367 = vadd.f32 %v239, %v308
    %v368 = vadd.f32 %v240, %v308
    %v369 = vadd.f32 %v241, %v313
    %v370 = vadd.f32 %v242, %v313
    %v371 = vadd.f32 %v243, %v318
    %v372 = vadd.f32 %v244, %v318
    %v373 = vadd.f32 %v245, %v323
    %v374 = vadd.f32 %v246, %v323
    %v375 = vadd.f32 %v247, %v328
    %v376 = vadd.f32 %v248, %v328
    %v377 = vadd.f32 %v249, %v333
    %v378 = vadd.f32 %v250, %v333
    %v379 = vadd.f32 %v251, %v338
    %v380 = vadd.f32 %v252, %v338
    %v381 = vadd.f32 %v253, %v343
    %v382 = vadd.f32 %v254, %v343
    %v383 = vadd.f32 %v255, %v348
    %v384 = vadd.f32 %v256, %v348
    %v385 = vadd.f32 %v257, %v353
    %v386 = vadd.f32 %v258, %v353
    %v387 = vand.u32 2147483647, %v355
    %vm388 = vcmp.le.f32.partialorder %v387, 0.7853982
    %vm389 = vcmp.lt.s32.totalorder %v355, 0
    %v390 = vand.u32 %v355, 2139095040
    %v391 = vshrl.u32 %v390, 23
    %v392 = vsub.s32 %v391, 127
    %v393 = vand.u32 2147483647, %v355
    %v394 = vand.u32 %v393, 8388607
    %v395 = vor.u32 %v394, 8388608
    %v396 = vsub.s32 0, %v395
    %v397 = vadd.s32 %v392, 1
    %vm398 = vcmp.gt.s32.totalorder %v397, 0
    %v399 = vsel %vm398, %v397, 0
    %v400 = vshrl.u32 %v399, 5
    %v401 = vand.u32 %v399, 31
    %v402 = vsub.s32 32, %v401
    %v403 = vshrl.u32 683565275, %v402
    %v404 = vshll.u32 683565275, %v401
    %v405 = vshrl.u32 2475754826, %v402
    %v406 = vor.u32 %v404, %v405
    %v407 = vshll.u32 2475754826, %v401
    %v408 = vshrl.u32 2131351028, %v402
    %v409 = vor.u32 %v407, %v408
    %v410 = vshll.u32 2131351028, %v401
    %v411 = vshrl.u32 2102212464, %v402
    %v412 = vor.u32 %v410, %v411
    %v413 = vshll.u32 2102212464, %v401
    %v414 = vshrl.u32 920167782, %v402
    %v415 = vor.u32 %v413, %v414
    %v416 = vshll.u32 920167782, %v401
    %v417 = vshrl.u32 1326507024, %v402
    %v418 = vor.u32 %v416, %v417
    %vm419 = vcmp.lt.s32.totalorder %v400, 1
    %vm420 = vcmp.lt.s32.totalorder %v400, 2
    %vm421 = vcmp.lt.s32.totalorder %v400, 3
    %vm422 = vcmp.lt.s32.totalorder %v400, 4
    %v423 = vsel %vm419, %v403, %v406
    %v424 = vsel %vm422, %v412, 2102212464
    %v425 = vsel %vm421, %v409, %v424
    %v426 = vsel %vm420, %v423, %v425
    %v427 = vsel %vm419, %v406, %v409
    %v428 = vsel %vm422, %v415, 920167782
    %v429 = vsel %vm421, %v412, %v428
    %v430 = vsel %vm420, %v427, %v429
    %v431 = vsel %vm419, %v409, %v412
    %v432 = vsel %vm422, %v418, 1326507024
    %v433 = vsel %vm421, %v415, %v432
    %v434 = vsel %vm420, %v431, %v433
    %v435 = vshll.u32 %v395, 8
    %v436 = vmul.u32.u64.compose %v435, %v434
    %v437 = vextract.low.u32 %v436
    %v438 = vextract.high.u32 %v436
    %v439 = vmul.u32.u64.compose %v435, %v430
    %v440 = vextract.low.u32 %v439
    %v441 = vextract.high.u32 %v439
    %v442 = vmul.u32 %v435, %v426
    %v443 = vadd.s32 %v438, %v440
    %vm444 = vc.u32 %v438, %v440
    %v445 = vadd.s32 %v441, 1
    %v446 = vsel %vm444, %v445, %v441
    %v447 = vadd.s32 %v442, %v446
    %v448 = vadd.s32 %v447, 536870912
    %v449 = vshrl.u32 %v448, 30
    %v450 = vshll.u32 %v449, 30
    %v451 = vsub.s32 %v447, %v450
    %vm452 = vcmp.lt.s32.totalorder %v451, 0
    %v453 = vsub.s32 0, %v451
    %v454 = vsel %vm452, %v453, %v451
    %v455 = vclz %v454
    %v456 = vsub.s32 %v455, 2
    %vm457 = vcmp.gt.s32.totalorder 0, %v456
    %v458 = vsel %vm457, 0, %v456
    %v459 = vsub.s32 32, %v458
    %v460 = vshll.u32 %v451, %v458
    %v461 = vshrl.u32 %v443, %v459
    %v462 = vor.u32 %v460, %v461
    %v463 = vsub.s32 4294967266, %v458
    %v464 = vadd.s32 %v463, 127
    %v465 = vshll.u32 %v464, 23
    %v466 = vor.u32 4788187, %v465
    %v467 = vand.u32 2147483647, %v466
    %v469 = vcvt.s32.f32 %v462
    %v470 = vmul.f32 %v469, %v467
    %v471 = vxor.u32 %v470, 2147483648
    %v472 = vsel %vm389, %v471, %v470
    %v473 = vsub.s32 4, %v449
    %v474 = vsel %vm389, %v473, %v449
    %v475 = vsel %vm388, %v355, %v472
    %v476 = vsel %vm388, 0, %v474
    %v477 = vcosq.f32.pop %v475
    %v478 = vsinq.f32.pop %v475
    %vm479 = vweird.f32 %v355
    %v480 = vadd.s32 %v476, 3
    %v481 = vand.u32 %v480, 3
    %vm482 = vcmp.lt.s32.totalorder %v481, 2
    %vm483 = vcmp.eq.s32.totalorder %v481, 0
    %v484 = vxor.u32 %v478, 2147483648
    %v485 = vsel %vm483, %v477, %v484
    %vm486 = vcmp.eq.s32.totalorder %v481, 2
    %v487 = vxor.u32 %v477, 2147483648
    %v488 = vsel %vm486, %v487, %v478
    %v489 = vsel %vm482, %v485, %v488
    %v490 = vsel %vm479, nan, %v489
    %v491 = vand.u32 2147483647, %v356
    %vm492 = vcmp.le.f32.partialorder %v491, 0.7853982
    %vm493 = vcmp.lt.s32.totalorder %v356, 0
    %v494 = vand.u32 %v356, 2139095040
    %v495 = vshrl.u32 %v494, 23
    %v496 = vsub.s32 %v495, 127
    %v497 = vand.u32 2147483647, %v356
    %v498 = vand.u32 %v497, 8388607
    %v499 = vor.u32 %v498, 8388608
    %v500 = vsub.s32 0, %v499
    %v501 = vadd.s32 %v496, 1
    %vm502 = vcmp.gt.s32.totalorder %v501, 0
    %v503 = vsel %vm502, %v501, 0
    %v504 = vshrl.u32 %v503, 5
    %v505 = vand.u32 %v503, 31
    %v506 = vsub.s32 32, %v505
    %v507 = vshrl.u32 683565275, %v506
    %v508 = vshll.u32 683565275, %v505
    %v509 = vshrl.u32 2475754826, %v506
    %v510 = vor.u32 %v508, %v509
    %v511 = vshll.u32 2475754826, %v505
    %v512 = vshrl.u32 2131351028, %v506
    %v513 = vor.u32 %v511, %v512
    %v514 = vshll.u32 2131351028, %v505
    %v515 = vshrl.u32 2102212464, %v506
    %v516 = vor.u32 %v514, %v515
    %v517 = vshll.u32 2102212464, %v505
    %v518 = vshrl.u32 920167782, %v506
    %v519 = vor.u32 %v517, %v518
    %v520 = vshll.u32 920167782, %v505
    %v521 = vshrl.u32 1326507024, %v506
    %v522 = vor.u32 %v520, %v521
    %vm523 = vcmp.lt.s32.totalorder %v504, 1
    %vm524 = vcmp.lt.s32.totalorder %v504, 2
    %vm525 = vcmp.lt.s32.totalorder %v504, 3
    %vm526 = vcmp.lt.s32.totalorder %v504, 4
    %v527 = vsel %vm523, %v507, %v510
    %v528 = vsel %vm526, %v516, 2102212464
    %v529 = vsel %vm525, %v513, %v528
    %v530 = vsel %vm524, %v527, %v529
    %v531 = vsel %vm523, %v510, %v513
    %v532 = vsel %vm526, %v519, 920167782
    %v533 = vsel %vm525, %v516, %v532
    %v534 = vsel %vm524, %v531, %v533
    %v535 = vsel %vm523, %v513, %v516
    %v536 = vsel %vm526, %v522, 1326507024
    %v537 = vsel %vm525, %v519, %v536
    %v538 = vsel %vm524, %v535, %v537
    %v539 = vshll.u32 %v499, 8
    %v540 = vmul.u32.u64.compose %v539, %v538
    %v541 = vextract.low.u32 %v540
    %v542 = vextract.high.u32 %v540
    %v543 = vmul.u32.u64.compose %v539, %v534
    %v544 = vextract.low.u32 %v543
    %v545 = vextract.high.u32 %v543
    %v546 = vmul.u32 %v539, %v530
    %v547 = vadd.s32 %v542, %v544
    %vm548 = vc.u32 %v542, %v544
    %v549 = vadd.s32 %v545, 1
    %v550 = vsel %vm548, %v549, %v545
    %v551 = vadd.s32 %v546, %v550
    %v552 = vadd.s32 %v551, 536870912
    %v553 = vshrl.u32 %v552, 30
    %v554 = vshll.u32 %v553, 30
    %v555 = vsub.s32 %v551, %v554
    %vm556 = vcmp.lt.s32.totalorder %v555, 0
    %v557 = vsub.s32 0, %v555
    %v558 = vsel %vm556, %v557, %v555
    %v559 = vclz %v558
    %v560 = vsub.s32 %v559, 2
    %vm561 = vcmp.gt.s32.totalorder 0, %v560
    %v562 = vsel %vm561, 0, %v560
    %v563 = vsub.s32 32, %v562
    %v564 = vshll.u32 %v555, %v562
    %v565 = vshrl.u32 %v547, %v563
    %v566 = vor.u32 %v564, %v565
    %v567 = vsub.s32 4294967266, %v562
    %v568 = vadd.s32 %v567, 127
    %v569 = vshll.u32 %v568, 23
    %v570 = vor.u32 4788187, %v569
    %v571 = vand.u32 2147483647, %v570
    %v573 = vcvt.s32.f32 %v566
    %v574 = vmul.f32 %v573, %v571
    %v575 = vxor.u32 %v574, 2147483648
    %v576 = vsel %vm493, %v575, %v574
    %v577 = vsub.s32 4, %v553
    %v578 = vsel %vm493, %v577, %v553
    %v579 = vsel %vm492, %v356, %v576
    %v580 = vsel %vm492, 0, %v578
    %v581 = vcosq.f32.pop %v579
    %v582 = vsinq.f32.pop %v579
    %vm583 = vweird.f32 %v356
    %v584 = vadd.s32 %v580, 3
    %v585 = vand.u32 %v584, 3
    %vm586 = vcmp.lt.s32.totalorder %v585, 2
    %vm587 = vcmp.eq.s32.totalorder %v585, 0
    %v588 = vxor.u32 %v582, 2147483648
    %v589 = vsel %vm587, %v581, %v588
    %vm590 = vcmp.eq.s32.totalorder %v585, 2
    %v591 = vxor.u32 %v581, 2147483648
    %v592 = vsel %vm590, %v591, %v582
    %v593 = vsel %vm586, %v589, %v592
    %v594 = vsel %vm583, nan, %v593
    %v595 = vand.u32 2147483647, %v357
    %vm596 = vcmp.le.f32.partialorder %v595, 0.7853982
    %vm597 = vcmp.lt.s32.totalorder %v357, 0
    %v598 = vand.u32 %v357, 2139095040
    %v599 = vshrl.u32 %v598, 23
    %v600 = vsub.s32 %v599, 127
    %v601 = vand.u32 2147483647, %v357
    %v602 = vand.u32 %v601, 8388607
    %v603 = vor.u32 %v602, 8388608
    %v604 = vsub.s32 0, %v603
    %v605 = vadd.s32 %v600, 1
    %vm606 = vcmp.gt.s32.totalorder %v605, 0
    %v607 = vsel %vm606, %v605, 0
    %v608 = vshrl.u32 %v607, 5
    %v609 = vand.u32 %v607, 31
    %v610 = vsub.s32 32, %v609
    %v611 = vshrl.u32 683565275, %v610
    %v612 = vshll.u32 683565275, %v609
    %v613 = vshrl.u32 2475754826, %v610
    %v614 = vor.u32 %v612, %v613
    %v615 = vshll.u32 2475754826, %v609
    %v616 = vshrl.u32 2131351028, %v610
    %v617 = vor.u32 %v615, %v616
    %v618 = vshll.u32 2131351028, %v609
    %v619 = vshrl.u32 2102212464, %v610
    %v620 = vor.u32 %v618, %v619
    %v621 = vshll.u32 2102212464, %v609
    %v622 = vshrl.u32 920167782, %v610
    %v623 = vor.u32 %v621, %v622
    %v624 = vshll.u32 920167782, %v609
    %v625 = vshrl.u32 1326507024, %v610
    %v626 = vor.u32 %v624, %v625
    %vm627 = vcmp.lt.s32.totalorder %v608, 1
    %vm628 = vcmp.lt.s32.totalorder %v608, 2
    %vm629 = vcmp.lt.s32.totalorder %v608, 3
    %vm630 = vcmp.lt.s32.totalorder %v608, 4
    %v631 = vsel %vm627, %v611, %v614
    %v632 = vsel %vm630, %v620, 2102212464
    %v633 = vsel %vm629, %v617, %v632
    %v634 = vsel %vm628, %v631, %v633
    %v635 = vsel %vm627, %v614, %v617
    %v636 = vsel %vm630, %v623, 920167782
    %v637 = vsel %vm629, %v620, %v636
    %v638 = vsel %vm628, %v635, %v637
    %v639 = vsel %vm627, %v617, %v620
    %v640 = vsel %vm630, %v626, 1326507024
    %v641 = vsel %vm629, %v623, %v640
    %v642 = vsel %vm628, %v639, %v641
    %v643 = vshll.u32 %v603, 8
    %v644 = vmul.u32.u64.compose %v643, %v642
    %v645 = vextract.low.u32 %v644
    %v646 = vextract.high.u32 %v644
    %v647 = vmul.u32.u64.compose %v643, %v638
    %v648 = vextract.low.u32 %v647
    %v649 = vextract.high.u32 %v647
    %v650 = vmul.u32 %v643, %v634
    %v651 = vadd.s32 %v646, %v648
    %vm652 = vc.u32 %v646, %v648
    %v653 = vadd.s32 %v649, 1
    %v654 = vsel %vm652, %v653, %v649
    %v655 = vadd.s32 %v650, %v654
    %v656 = vadd.s32 %v655, 536870912
    %v657 = vshrl.u32 %v656, 30
    %v658 = vshll.u32 %v657, 30
    %v659 = vsub.s32 %v655, %v658
    %vm660 = vcmp.lt.s32.totalorder %v659, 0
    %v661 = vsub.s32 0, %v659
    %v662 = vsel %vm660, %v661, %v659
    %v663 = vclz %v662
    %v664 = vsub.s32 %v663, 2
    %vm665 = vcmp.gt.s32.totalorder 0, %v664
    %v666 = vsel %vm665, 0, %v664
    %v667 = vsub.s32 32, %v666
    %v668 = vshll.u32 %v659, %v666
    %v669 = vshrl.u32 %v651, %v667
    %v670 = vor.u32 %v668, %v669
    %v671 = vsub.s32 4294967266, %v666
    %v672 = vadd.s32 %v671, 127
    %v673 = vshll.u32 %v672, 23
    %v674 = vor.u32 4788187, %v673
    %v675 = vand.u32 2147483647, %v674
    %v677 = vcvt.s32.f32 %v670
    %v678 = vmul.f32 %v677, %v675
    %v679 = vxor.u32 %v678, 2147483648
    %v680 = vsel %vm597, %v679, %v678
    %v681 = vsub.s32 4, %v657
    %v682 = vsel %vm597, %v681, %v657
    %v683 = vsel %vm596, %v357, %v680
    %v684 = vsel %vm596, 0, %v682
    %v685 = vcosq.f32.pop %v683
    %v686 = vsinq.f32.pop %v683
    %vm687 = vweird.f32 %v357
    %v688 = vadd.s32 %v684, 3
    %v689 = vand.u32 %v688, 3
    %vm690 = vcmp.lt.s32.totalorder %v689, 2
    %vm691 = vcmp.eq.s32.totalorder %v689, 0
    %v692 = vxor.u32 %v686, 2147483648
    %v693 = vsel %vm691, %v685, %v692
    %vm694 = vcmp.eq.s32.totalorder %v689, 2
    %v695 = vxor.u32 %v685, 2147483648
    %v696 = vsel %vm694, %v695, %v686
    %v697 = vsel %vm690, %v693, %v696
    %v698 = vsel %vm687, nan, %v697
    %v699 = vand.u32 2147483647, %v358
    %vm700 = vcmp.le.f32.partialorder %v699, 0.7853982
    %vm701 = vcmp.lt.s32.totalorder %v358, 0
    %v702 = vand.u32 %v358, 2139095040
    %v703 = vshrl.u32 %v702, 23
    %v704 = vsub.s32 %v703, 127
    %v705 = vand.u32 2147483647, %v358
    %v706 = vand.u32 %v705, 8388607
    %v707 = vor.u32 %v706, 8388608
    %v708 = vsub.s32 0, %v707
    %v709 = vadd.s32 %v704, 1
    %vm710 = vcmp.gt.s32.totalorder %v709, 0
    %v711 = vsel %vm710, %v709, 0
    %v712 = vshrl.u32 %v711, 5
    %v713 = vand.u32 %v711, 31
    %v714 = vsub.s32 32, %v713
    %v715 = vshrl.u32 683565275, %v714
    %v716 = vshll.u32 683565275, %v713
    %v717 = vshrl.u32 2475754826, %v714
    %v718 = vor.u32 %v716, %v717
    %v719 = vshll.u32 2475754826, %v713
    %v720 = vshrl.u32 2131351028, %v714
    %v721 = vor.u32 %v719, %v720
    %v722 = vshll.u32 2131351028, %v713
    %v723 = vshrl.u32 2102212464, %v714
    %v724 = vor.u32 %v722, %v723
    %v725 = vshll.u32 2102212464, %v713
    %v726 = vshrl.u32 920167782, %v714
    %v727 = vor.u32 %v725, %v726
    %v728 = vshll.u32 920167782, %v713
    %v729 = vshrl.u32 1326507024, %v714
    %v730 = vor.u32 %v728, %v729
    %vm731 = vcmp.lt.s32.totalorder %v712, 1
    %vm732 = vcmp.lt.s32.totalorder %v712, 2
    %vm733 = vcmp.lt.s32.totalorder %v712, 3
    %vm734 = vcmp.lt.s32.totalorder %v712, 4
    %v735 = vsel %vm731, %v715, %v718
    %v736 = vsel %vm734, %v724, 2102212464
    %v737 = vsel %vm733, %v721, %v736
    %v738 = vsel %vm732, %v735, %v737
    %v739 = vsel %vm731, %v718, %v721
    %v740 = vsel %vm734, %v727, 920167782
    %v741 = vsel %vm733, %v724, %v740
    %v742 = vsel %vm732, %v739, %v741
    %v743 = vsel %vm731, %v721, %v724
    %v744 = vsel %vm734, %v730, 1326507024
    %v745 = vsel %vm733, %v727, %v744
    %v746 = vsel %vm732, %v743, %v745
    %v747 = vshll.u32 %v707, 8
    %v748 = vmul.u32.u64.compose %v747, %v746
    %v749 = vextract.low.u32 %v748
    %v750 = vextract.high.u32 %v748
    %v751 = vmul.u32.u64.compose %v747, %v742
    %v752 = vextract.low.u32 %v751
    %v753 = vextract.high.u32 %v751
    %v754 = vmul.u32 %v747, %v738
    %v755 = vadd.s32 %v750, %v752
    %vm756 = vc.u32 %v750, %v752
    %v757 = vadd.s32 %v753, 1
    %v758 = vsel %vm756, %v757, %v753
    %v759 = vadd.s32 %v754, %v758
    %v760 = vadd.s32 %v759, 536870912
    %v761 = vshrl.u32 %v760, 30
    %v762 = vshll.u32 %v761, 30
    %v763 = vsub.s32 %v759, %v762
    %vm764 = vcmp.lt.s32.totalorder %v763, 0
    %v765 = vsub.s32 0, %v763
    %v766 = vsel %vm764, %v765, %v763
    %v767 = vclz %v766
    %v768 = vsub.s32 %v767, 2
    %vm769 = vcmp.gt.s32.totalorder 0, %v768
    %v770 = vsel %vm769, 0, %v768
    %v771 = vsub.s32 32, %v770
    %v772 = vshll.u32 %v763, %v770
    %v773 = vshrl.u32 %v755, %v771
    %v774 = vor.u32 %v772, %v773
    %v775 = vsub.s32 4294967266, %v770
    %v776 = vadd.s32 %v775, 127
    %v777 = vshll.u32 %v776, 23
    %v778 = vor.u32 4788187, %v777
    %v779 = vand.u32 2147483647, %v778
    %v781 = vcvt.s32.f32 %v774
    %v782 = vmul.f32 %v781, %v779
    %v783 = vxor.u32 %v782, 2147483648
    %v784 = vsel %vm701, %v783, %v782
    %v785 = vsub.s32 4, %v761
    %v786 = vsel %vm701, %v785, %v761
    %v787 = vsel %vm700, %v358, %v784
    %v788 = vsel %vm700, 0, %v786
    %v789 = vcosq.f32.pop %v787
    %v790 = vsinq.f32.pop %v787
    %vm791 = vweird.f32 %v358
    %v792 = vadd.s32 %v788, 3
    %v793 = vand.u32 %v792, 3
    %vm794 = vcmp.lt.s32.totalorder %v793, 2
    %vm795 = vcmp.eq.s32.totalorder %v793, 0
    %v796 = vxor.u32 %v790, 2147483648
    %v797 = vsel %vm795, %v789, %v796
    %vm798 = vcmp.eq.s32.totalorder %v793, 2
    %v799 = vxor.u32 %v789, 2147483648
    %v800 = vsel %vm798, %v799, %v790
    %v801 = vsel %vm794, %v797, %v800
    %v802 = vsel %vm791, nan, %v801
    %v803 = vand.u32 2147483647, %v359
    %vm804 = vcmp.le.f32.partialorder %v803, 0.7853982
    %vm805 = vcmp.lt.s32.totalorder %v359, 0
    %v806 = vand.u32 %v359, 2139095040
    %v807 = vshrl.u32 %v806, 23
    %v808 = vsub.s32 %v807, 127
    %v809 = vand.u32 2147483647, %v359
    %v810 = vand.u32 %v809, 8388607
    %v811 = vor.u32 %v810, 8388608
    %v812 = vsub.s32 0, %v811
    %v813 = vadd.s32 %v808, 1
    %vm814 = vcmp.gt.s32.totalorder %v813, 0
    %v815 = vsel %vm814, %v813, 0
    %v816 = vshrl.u32 %v815, 5
    %v817 = vand.u32 %v815, 31
    %v818 = vsub.s32 32, %v817
    %v819 = vshrl.u32 683565275, %v818
    %v820 = vshll.u32 683565275, %v817
    %v821 = vshrl.u32 2475754826, %v818
    %v822 = vor.u32 %v820, %v821
    %v823 = vshll.u32 2475754826, %v817
    %v824 = vshrl.u32 2131351028, %v818
    %v825 = vor.u32 %v823, %v824
    %v826 = vshll.u32 2131351028, %v817
    %v827 = vshrl.u32 2102212464, %v818
    %v828 = vor.u32 %v826, %v827
    %v829 = vshll.u32 2102212464, %v817
    %v830 = vshrl.u32 920167782, %v818
    %v831 = vor.u32 %v829, %v830
    %v832 = vshll.u32 920167782, %v817
    %v833 = vshrl.u32 1326507024, %v818
    %v834 = vor.u32 %v832, %v833
    %vm835 = vcmp.lt.s32.totalorder %v816, 1
    %vm836 = vcmp.lt.s32.totalorder %v816, 2
    %vm837 = vcmp.lt.s32.totalorder %v816, 3
    %vm838 = vcmp.lt.s32.totalorder %v816, 4
    %v839 = vsel %vm835, %v819, %v822
    %v840 = vsel %vm838, %v828, 2102212464
    %v841 = vsel %vm837, %v825, %v840
    %v842 = vsel %vm836, %v839, %v841
    %v843 = vsel %vm835, %v822, %v825
    %v844 = vsel %vm838, %v831, 920167782
    %v845 = vsel %vm837, %v828, %v844
    %v846 = vsel %vm836, %v843, %v845
    %v847 = vsel %vm835, %v825, %v828
    %v848 = vsel %vm838, %v834, 1326507024
    %v849 = vsel %vm837, %v831, %v848
    %v850 = vsel %vm836, %v847, %v849
    %v851 = vshll.u32 %v811, 8
    %v852 = vmul.u32.u64.compose %v851, %v850
    %v853 = vextract.low.u32 %v852
    %v854 = vextract.high.u32 %v852
    %v855 = vmul.u32.u64.compose %v851, %v846
    %v856 = vextract.low.u32 %v855
    %v857 = vextract.high.u32 %v855
    %v858 = vmul.u32 %v851, %v842
    %v859 = vadd.s32 %v854, %v856
    %vm860 = vc.u32 %v854, %v856
    %v861 = vadd.s32 %v857, 1
    %v862 = vsel %vm860, %v861, %v857
    %v863 = vadd.s32 %v858, %v862
    %v864 = vadd.s32 %v863, 536870912
    %v865 = vshrl.u32 %v864, 30
    %v866 = vshll.u32 %v865, 30
    %v867 = vsub.s32 %v863, %v866
    %vm868 = vcmp.lt.s32.totalorder %v867, 0
    %v869 = vsub.s32 0, %v867
    %v870 = vsel %vm868, %v869, %v867
    %v871 = vclz %v870
    %v872 = vsub.s32 %v871, 2
    %vm873 = vcmp.gt.s32.totalorder 0, %v872
    %v874 = vsel %vm873, 0, %v872
    %v875 = vsub.s32 32, %v874
    %v876 = vshll.u32 %v867, %v874
    %v877 = vshrl.u32 %v859, %v875
    %v878 = vor.u32 %v876, %v877
    %v879 = vsub.s32 4294967266, %v874
    %v880 = vadd.s32 %v879, 127
    %v881 = vshll.u32 %v880, 23
    %v882 = vor.u32 4788187, %v881
    %v883 = vand.u32 2147483647, %v882
    %v885 = vcvt.s32.f32 %v878
    %v886 = vmul.f32 %v885, %v883
    %v887 = vxor.u32 %v886, 2147483648
    %v888 = vsel %vm805, %v887, %v886
    %v889 = vsub.s32 4, %v865
    %v890 = vsel %vm805, %v889, %v865
    %v891 = vsel %vm804, %v359, %v888
    %v892 = vsel %vm804, 0, %v890
    %v893 = vcosq.f32.pop %v891
    %v894 = vsinq.f32.pop %v891
    %vm895 = vweird.f32 %v359
    %v896 = vadd.s32 %v892, 3
    %v897 = vand.u32 %v896, 3
    %vm898 = vcmp.lt.s32.totalorder %v897, 2
    %vm899 = vcmp.eq.s32.totalorder %v897, 0
    %v900 = vxor.u32 %v894, 2147483648
    %v901 = vsel %vm899, %v893, %v900
    %vm902 = vcmp.eq.s32.totalorder %v897, 2
    %v903 = vxor.u32 %v893, 2147483648
    %v904 = vsel %vm902, %v903, %v894
    %v905 = vsel %vm898, %v901, %v904
    %v906 = vsel %vm895, nan, %v905
    %v907 = vand.u32 2147483647, %v360
    %vm908 = vcmp.le.f32.partialorder %v907, 0.7853982
    %vm909 = vcmp.lt.s32.totalorder %v360, 0
    %v910 = vand.u32 %v360, 2139095040
    %v911 = vshrl.u32 %v910, 23
    %v912 = vsub.s32 %v911, 127
    %v913 = vand.u32 2147483647, %v360
    %v914 = vand.u32 %v913, 8388607
    %v915 = vor.u32 %v914, 8388608
    %v916 = vsub.s32 0, %v915
    %v917 = vadd.s32 %v912, 1
    %vm918 = vcmp.gt.s32.totalorder %v917, 0
    %v919 = vsel %vm918, %v917, 0
    %v920 = vshrl.u32 %v919, 5
    %v921 = vand.u32 %v919, 31
    %v922 = vsub.s32 32, %v921
    %v923 = vshrl.u32 683565275, %v922
    %v924 = vshll.u32 683565275, %v921
    %v925 = vshrl.u32 2475754826, %v922
    %v926 = vor.u32 %v924, %v925
    %v927 = vshll.u32 2475754826, %v921
    %v928 = vshrl.u32 2131351028, %v922
    %v929 = vor.u32 %v927, %v928
    %v930 = vshll.u32 2131351028, %v921
    %v931 = vshrl.u32 2102212464, %v922
    %v932 = vor.u32 %v930, %v931
    %v933 = vshll.u32 2102212464, %v921
    %v934 = vshrl.u32 920167782, %v922
    %v935 = vor.u32 %v933, %v934
    %v936 = vshll.u32 920167782, %v921
    %v937 = vshrl.u32 1326507024, %v922
    %v938 = vor.u32 %v936, %v937
    %vm939 = vcmp.lt.s32.totalorder %v920, 1
    %vm940 = vcmp.lt.s32.totalorder %v920, 2
    %vm941 = vcmp.lt.s32.totalorder %v920, 3
    %vm942 = vcmp.lt.s32.totalorder %v920, 4
    %v943 = vsel %vm939, %v923, %v926
    %v944 = vsel %vm942, %v932, 2102212464
    %v945 = vsel %vm941, %v929, %v944
    %v946 = vsel %vm940, %v943, %v945
    %v947 = vsel %vm939, %v926, %v929
    %v948 = vsel %vm942, %v935, 920167782
    %v949 = vsel %vm941, %v932, %v948
    %v950 = vsel %vm940, %v947, %v949
    %v951 = vsel %vm939, %v929, %v932
    %v952 = vsel %vm942, %v938, 1326507024
    %v953 = vsel %vm941, %v935, %v952
    %v954 = vsel %vm940, %v951, %v953
    %v955 = vshll.u32 %v915, 8
    %v956 = vmul.u32.u64.compose %v955, %v954
    %v957 = vextract.low.u32 %v956
    %v958 = vextract.high.u32 %v956
    %v959 = vmul.u32.u64.compose %v955, %v950
    %v960 = vextract.low.u32 %v959
    %v961 = vextract.high.u32 %v959
    %v962 = vmul.u32 %v955, %v946
    %v963 = vadd.s32 %v958, %v960
    %vm964 = vc.u32 %v958, %v960
    %v965 = vadd.s32 %v961, 1
    %v966 = vsel %vm964, %v965, %v961
    %v967 = vadd.s32 %v962, %v966
    %v968 = vadd.s32 %v967, 536870912
    %v969 = vshrl.u32 %v968, 30
    %v970 = vshll.u32 %v969, 30
    %v971 = vsub.s32 %v967, %v970
    %vm972 = vcmp.lt.s32.totalorder %v971, 0
    %v973 = vsub.s32 0, %v971
    %v974 = vsel %vm972, %v973, %v971
    %v975 = vclz %v974
    %v976 = vsub.s32 %v975, 2
    %vm977 = vcmp.gt.s32.totalorder 0, %v976
    %v978 = vsel %vm977, 0, %v976
    %v979 = vsub.s32 32, %v978
    %v980 = vshll.u32 %v971, %v978
    %v981 = vshrl.u32 %v963, %v979
    %v982 = vor.u32 %v980, %v981
    %v983 = vsub.s32 4294967266, %v978
    %v984 = vadd.s32 %v983, 127
    %v985 = vshll.u32 %v984, 23
    %v986 = vor.u32 4788187, %v985
    %v987 = vand.u32 2147483647, %v986
    %v989 = vcvt.s32.f32 %v982
    %v990 = vmul.f32 %v989, %v987
    %v991 = vxor.u32 %v990, 2147483648
    %v992 = vsel %vm909, %v991, %v990
    %v993 = vsub.s32 4, %v969
    %v994 = vsel %vm909, %v993, %v969
    %v995 = vsel %vm908, %v360, %v992
    %v996 = vsel %vm908, 0, %v994
    %v997 = vcosq.f32.pop %v995
    %v998 = vsinq.f32.pop %v995
    %vm999 = vweird.f32 %v360
    %v1000 = vadd.s32 %v996, 3
    %v1001 = vand.u32 %v1000, 3
    %vm1002 = vcmp.lt.s32.totalorder %v1001, 2
    %vm1003 = vcmp.eq.s32.totalorder %v1001, 0
    %v1004 = vxor.u32 %v998, 2147483648
    %v1005 = vsel %vm1003, %v997, %v1004
    %vm1006 = vcmp.eq.s32.totalorder %v1001, 2
    %v1007 = vxor.u32 %v997, 2147483648
    %v1008 = vsel %vm1006, %v1007, %v998
    %v1009 = vsel %vm1002, %v1005, %v1008
    %v1010 = vsel %vm999, nan, %v1009
    %v1011 = vand.u32 2147483647, %v361
    %vm1012 = vcmp.le.f32.partialorder %v1011, 0.7853982
    %vm1013 = vcmp.lt.s32.totalorder %v361, 0
    %v1014 = vand.u32 %v361, 2139095040
    %v1015 = vshrl.u32 %v1014, 23
    %v1016 = vsub.s32 %v1015, 127
    %v1017 = vand.u32 2147483647, %v361
    %v1018 = vand.u32 %v1017, 8388607
    %v1019 = vor.u32 %v1018, 8388608
    %v1020 = vsub.s32 0, %v1019
    %v1021 = vadd.s32 %v1016, 1
    %vm1022 = vcmp.gt.s32.totalorder %v1021, 0
    %v1023 = vsel %vm1022, %v1021, 0
    %v1024 = vshrl.u32 %v1023, 5
    %v1025 = vand.u32 %v1023, 31
    %v1026 = vsub.s32 32, %v1025
    %v1027 = vshrl.u32 683565275, %v1026
    %v1028 = vshll.u32 683565275, %v1025
    %v1029 = vshrl.u32 2475754826, %v1026
    %v1030 = vor.u32 %v1028, %v1029
    %v1031 = vshll.u32 2475754826, %v1025
    %v1032 = vshrl.u32 2131351028, %v1026
    %v1033 = vor.u32 %v1031, %v1032
    %v1034 = vshll.u32 2131351028, %v1025
    %v1035 = vshrl.u32 2102212464, %v1026
    %v1036 = vor.u32 %v1034, %v1035
    %v1037 = vshll.u32 2102212464, %v1025
    %v1038 = vshrl.u32 920167782, %v1026
    %v1039 = vor.u32 %v1037, %v1038
    %v1040 = vshll.u32 920167782, %v1025
    %v1041 = vshrl.u32 1326507024, %v1026
    %v1042 = vor.u32 %v1040, %v1041
    %vm1043 = vcmp.lt.s32.totalorder %v1024, 1
    %vm1044 = vcmp.lt.s32.totalorder %v1024, 2
    %vm1045 = vcmp.lt.s32.totalorder %v1024, 3
    %vm1046 = vcmp.lt.s32.totalorder %v1024, 4
    %v1047 = vsel %vm1043, %v1027, %v1030
    %v1048 = vsel %vm1046, %v1036, 2102212464
    %v1049 = vsel %vm1045, %v1033, %v1048
    %v1050 = vsel %vm1044, %v1047, %v1049
    %v1051 = vsel %vm1043, %v1030, %v1033
    %v1052 = vsel %vm1046, %v1039, 920167782
    %v1053 = vsel %vm1045, %v1036, %v1052
    %v1054 = vsel %vm1044, %v1051, %v1053
    %v1055 = vsel %vm1043, %v1033, %v1036
    %v1056 = vsel %vm1046, %v1042, 1326507024
    %v1057 = vsel %vm1045, %v1039, %v1056
    %v1058 = vsel %vm1044, %v1055, %v1057
    %v1059 = vshll.u32 %v1019, 8
    %v1060 = vmul.u32.u64.compose %v1059, %v1058
    %v1061 = vextract.low.u32 %v1060
    %v1062 = vextract.high.u32 %v1060
    %v1063 = vmul.u32.u64.compose %v1059, %v1054
    %v1064 = vextract.low.u32 %v1063
    %v1065 = vextract.high.u32 %v1063
    %v1066 = vmul.u32 %v1059, %v1050
    %v1067 = vadd.s32 %v1062, %v1064
    %vm1068 = vc.u32 %v1062, %v1064
    %v1069 = vadd.s32 %v1065, 1
    %v1070 = vsel %vm1068, %v1069, %v1065
    %v1071 = vadd.s32 %v1066, %v1070
    %v1072 = vadd.s32 %v1071, 536870912
    %v1073 = vshrl.u32 %v1072, 30
    %v1074 = vshll.u32 %v1073, 30
    %v1075 = vsub.s32 %v1071, %v1074
    %vm1076 = vcmp.lt.s32.totalorder %v1075, 0
    %v1077 = vsub.s32 0, %v1075
    %v1078 = vsel %vm1076, %v1077, %v1075
    %v1079 = vclz %v1078
    %v1080 = vsub.s32 %v1079, 2
    %vm1081 = vcmp.gt.s32.totalorder 0, %v1080
    %v1082 = vsel %vm1081, 0, %v1080
    %v1083 = vsub.s32 32, %v1082
    %v1084 = vshll.u32 %v1075, %v1082
    %v1085 = vshrl.u32 %v1067, %v1083
    %v1086 = vor.u32 %v1084, %v1085
    %v1087 = vsub.s32 4294967266, %v1082
    %v1088 = vadd.s32 %v1087, 127
    %v1089 = vshll.u32 %v1088, 23
    %v1090 = vor.u32 4788187, %v1089
    %v1091 = vand.u32 2147483647, %v1090
    %v1093 = vcvt.s32.f32 %v1086
    %v1094 = vmul.f32 %v1093, %v1091
    %v1095 = vxor.u32 %v1094, 2147483648
    %v1096 = vsel %vm1013, %v1095, %v1094
    %v1097 = vsub.s32 4, %v1073
    %v1098 = vsel %vm1013, %v1097, %v1073
    %v1099 = vsel %vm1012, %v361, %v1096
    %v1100 = vsel %vm1012, 0, %v1098
    %v1101 = vcosq.f32.pop %v1099
    %v1102 = vsinq.f32.pop %v1099
    %vm1103 = vweird.f32 %v361
    %v1104 = vadd.s32 %v1100, 3
    %v1105 = vand.u32 %v1104, 3
    %vm1106 = vcmp.lt.s32.totalorder %v1105, 2
    %vm1107 = vcmp.eq.s32.totalorder %v1105, 0
    %v1108 = vxor.u32 %v1102, 2147483648
    %v1109 = vsel %vm1107, %v1101, %v1108
    %vm1110 = vcmp.eq.s32.totalorder %v1105, 2
    %v1111 = vxor.u32 %v1101, 2147483648
    %v1112 = vsel %vm1110, %v1111, %v1102
    %v1113 = vsel %vm1106, %v1109, %v1112
    %v1114 = vsel %vm1103, nan, %v1113
    %v1115 = vand.u32 2147483647, %v362
    %vm1116 = vcmp.le.f32.partialorder %v1115, 0.7853982
    %vm1117 = vcmp.lt.s32.totalorder %v362, 0
    %v1118 = vand.u32 %v362, 2139095040
    %v1119 = vshrl.u32 %v1118, 23
    %v1120 = vsub.s32 %v1119, 127
    %v1121 = vand.u32 2147483647, %v362
    %v1122 = vand.u32 %v1121, 8388607
    %v1123 = vor.u32 %v1122, 8388608
    %v1124 = vsub.s32 0, %v1123
    %v1125 = vadd.s32 %v1120, 1
    %vm1126 = vcmp.gt.s32.totalorder %v1125, 0
    %v1127 = vsel %vm1126, %v1125, 0
    %v1128 = vshrl.u32 %v1127, 5
    %v1129 = vand.u32 %v1127, 31
    %v1130 = vsub.s32 32, %v1129
    %v1131 = vshrl.u32 683565275, %v1130
    %v1132 = vshll.u32 683565275, %v1129
    %v1133 = vshrl.u32 2475754826, %v1130
    %v1134 = vor.u32 %v1132, %v1133
    %v1135 = vshll.u32 2475754826, %v1129
    %v1136 = vshrl.u32 2131351028, %v1130
    %v1137 = vor.u32 %v1135, %v1136
    %v1138 = vshll.u32 2131351028, %v1129
    %v1139 = vshrl.u32 2102212464, %v1130
    %v1140 = vor.u32 %v1138, %v1139
    %v1141 = vshll.u32 2102212464, %v1129
    %v1142 = vshrl.u32 920167782, %v1130
    %v1143 = vor.u32 %v1141, %v1142
    %v1144 = vshll.u32 920167782, %v1129
    %v1145 = vshrl.u32 1326507024, %v1130
    %v1146 = vor.u32 %v1144, %v1145
    %vm1147 = vcmp.lt.s32.totalorder %v1128, 1
    %vm1148 = vcmp.lt.s32.totalorder %v1128, 2
    %vm1149 = vcmp.lt.s32.totalorder %v1128, 3
    %vm1150 = vcmp.lt.s32.totalorder %v1128, 4
    %v1151 = vsel %vm1147, %v1131, %v1134
    %v1152 = vsel %vm1150, %v1140, 2102212464
    %v1153 = vsel %vm1149, %v1137, %v1152
    %v1154 = vsel %vm1148, %v1151, %v1153
    %v1155 = vsel %vm1147, %v1134, %v1137
    %v1156 = vsel %vm1150, %v1143, 920167782
    %v1157 = vsel %vm1149, %v1140, %v1156
    %v1158 = vsel %vm1148, %v1155, %v1157
    %v1159 = vsel %vm1147, %v1137, %v1140
    %v1160 = vsel %vm1150, %v1146, 1326507024
    %v1161 = vsel %vm1149, %v1143, %v1160
    %v1162 = vsel %vm1148, %v1159, %v1161
    %v1163 = vshll.u32 %v1123, 8
    %v1164 = vmul.u32.u64.compose %v1163, %v1162
    %v1165 = vextract.low.u32 %v1164
    %v1166 = vextract.high.u32 %v1164
    %v1167 = vmul.u32.u64.compose %v1163, %v1158
    %v1168 = vextract.low.u32 %v1167
    %v1169 = vextract.high.u32 %v1167
    %v1170 = vmul.u32 %v1163, %v1154
    %v1171 = vadd.s32 %v1166, %v1168
    %vm1172 = vc.u32 %v1166, %v1168
    %v1173 = vadd.s32 %v1169, 1
    %v1174 = vsel %vm1172, %v1173, %v1169
    %v1175 = vadd.s32 %v1170, %v1174
    %v1176 = vadd.s32 %v1175, 536870912
    %v1177 = vshrl.u32 %v1176, 30
    %v1178 = vshll.u32 %v1177, 30
    %v1179 = vsub.s32 %v1175, %v1178
    %vm1180 = vcmp.lt.s32.totalorder %v1179, 0
    %v1181 = vsub.s32 0, %v1179
    %v1182 = vsel %vm1180, %v1181, %v1179
    %v1183 = vclz %v1182
    %v1184 = vsub.s32 %v1183, 2
    %vm1185 = vcmp.gt.s32.totalorder 0, %v1184
    %v1186 = vsel %vm1185, 0, %v1184
    %v1187 = vsub.s32 32, %v1186
    %v1188 = vshll.u32 %v1179, %v1186
    %v1189 = vshrl.u32 %v1171, %v1187
    %v1190 = vor.u32 %v1188, %v1189
    %v1191 = vsub.s32 4294967266, %v1186
    %v1192 = vadd.s32 %v1191, 127
    %v1193 = vshll.u32 %v1192, 23
    %v1194 = vor.u32 4788187, %v1193
    %v1195 = vand.u32 2147483647, %v1194
    %v1197 = vcvt.s32.f32 %v1190
    %v1198 = vmul.f32 %v1197, %v1195
    %v1199 = vxor.u32 %v1198, 2147483648
    %v1200 = vsel %vm1117, %v1199, %v1198
    %v1201 = vsub.s32 4, %v1177
    %v1202 = vsel %vm1117, %v1201, %v1177
    %v1203 = vsel %vm1116, %v362, %v1200
    %v1204 = vsel %vm1116, 0, %v1202
    %v1205 = vcosq.f32.pop %v1203
    %v1206 = vsinq.f32.pop %v1203
    %vm1207 = vweird.f32 %v362
    %v1208 = vadd.s32 %v1204, 3
    %v1209 = vand.u32 %v1208, 3
    %vm1210 = vcmp.lt.s32.totalorder %v1209, 2
    %vm1211 = vcmp.eq.s32.totalorder %v1209, 0
    %v1212 = vxor.u32 %v1206, 2147483648
    %v1213 = vsel %vm1211, %v1205, %v1212
    %vm1214 = vcmp.eq.s32.totalorder %v1209, 2
    %v1215 = vxor.u32 %v1205, 2147483648
    %v1216 = vsel %vm1214, %v1215, %v1206
    %v1217 = vsel %vm1210, %v1213, %v1216
    %v1218 = vsel %vm1207, nan, %v1217
    %v1219 = vand.u32 2147483647, %v363
    %vm1220 = vcmp.le.f32.partialorder %v1219, 0.7853982
    %vm1221 = vcmp.lt.s32.totalorder %v363, 0
    %v1222 = vand.u32 %v363, 2139095040
    %v1223 = vshrl.u32 %v1222, 23
    %v1224 = vsub.s32 %v1223, 127
    %v1225 = vand.u32 2147483647, %v363
    %v1226 = vand.u32 %v1225, 8388607
    %v1227 = vor.u32 %v1226, 8388608
    %v1228 = vsub.s32 0, %v1227
    %v1229 = vadd.s32 %v1224, 1
    %vm1230 = vcmp.gt.s32.totalorder %v1229, 0
    %v1231 = vsel %vm1230, %v1229, 0
    %v1232 = vshrl.u32 %v1231, 5
    %v1233 = vand.u32 %v1231, 31
    %v1234 = vsub.s32 32, %v1233
    %v1235 = vshrl.u32 683565275, %v1234
    %v1236 = vshll.u32 683565275, %v1233
    %v1237 = vshrl.u32 2475754826, %v1234
    %v1238 = vor.u32 %v1236, %v1237
    %v1239 = vshll.u32 2475754826, %v1233
    %v1240 = vshrl.u32 2131351028, %v1234
    %v1241 = vor.u32 %v1239, %v1240
    %v1242 = vshll.u32 2131351028, %v1233
    %v1243 = vshrl.u32 2102212464, %v1234
    %v1244 = vor.u32 %v1242, %v1243
    %v1245 = vshll.u32 2102212464, %v1233
    %v1246 = vshrl.u32 920167782, %v1234
    %v1247 = vor.u32 %v1245, %v1246
    %v1248 = vshll.u32 920167782, %v1233
    %v1249 = vshrl.u32 1326507024, %v1234
    %v1250 = vor.u32 %v1248, %v1249
    %vm1251 = vcmp.lt.s32.totalorder %v1232, 1
    %vm1252 = vcmp.lt.s32.totalorder %v1232, 2
    %vm1253 = vcmp.lt.s32.totalorder %v1232, 3
    %vm1254 = vcmp.lt.s32.totalorder %v1232, 4
    %v1255 = vsel %vm1251, %v1235, %v1238
    %v1256 = vsel %vm1254, %v1244, 2102212464
    %v1257 = vsel %vm1253, %v1241, %v1256
    %v1258 = vsel %vm1252, %v1255, %v1257
    %v1259 = vsel %vm1251, %v1238, %v1241
    %v1260 = vsel %vm1254, %v1247, 920167782
    %v1261 = vsel %vm1253, %v1244, %v1260
    %v1262 = vsel %vm1252, %v1259, %v1261
    %v1263 = vsel %vm1251, %v1241, %v1244
    %v1264 = vsel %vm1254, %v1250, 1326507024
    %v1265 = vsel %vm1253, %v1247, %v1264
    %v1266 = vsel %vm1252, %v1263, %v1265
    %v1267 = vshll.u32 %v1227, 8
    %v1268 = vmul.u32.u64.compose %v1267, %v1266
    %v1269 = vextract.low.u32 %v1268
    %v1270 = vextract.high.u32 %v1268
    %v1271 = vmul.u32.u64.compose %v1267, %v1262
    %v1272 = vextract.low.u32 %v1271
    %v1273 = vextract.high.u32 %v1271
    %v1274 = vmul.u32 %v1267, %v1258
    %v1275 = vadd.s32 %v1270, %v1272
    %vm1276 = vc.u32 %v1270, %v1272
    %v1277 = vadd.s32 %v1273, 1
    %v1278 = vsel %vm1276, %v1277, %v1273
    %v1279 = vadd.s32 %v1274, %v1278
    %v1280 = vadd.s32 %v1279, 536870912
    %v1281 = vshrl.u32 %v1280, 30
    %v1282 = vshll.u32 %v1281, 30
    %v1283 = vsub.s32 %v1279, %v1282
    %vm1284 = vcmp.lt.s32.totalorder %v1283, 0
    %v1285 = vsub.s32 0, %v1283
    %v1286 = vsel %vm1284, %v1285, %v1283
    %v1287 = vclz %v1286
    %v1288 = vsub.s32 %v1287, 2
    %vm1289 = vcmp.gt.s32.totalorder 0, %v1288
    %v1290 = vsel %vm1289, 0, %v1288
    %v1291 = vsub.s32 32, %v1290
    %v1292 = vshll.u32 %v1283, %v1290
    %v1293 = vshrl.u32 %v1275, %v1291
    %v1294 = vor.u32 %v1292, %v1293
    %v1295 = vsub.s32 4294967266, %v1290
    %v1296 = vadd.s32 %v1295, 127
    %v1297 = vshll.u32 %v1296, 23
    %v1298 = vor.u32 4788187, %v1297
    %v1299 = vand.u32 2147483647, %v1298
    %v1301 = vcvt.s32.f32 %v1294
    %v1302 = vmul.f32 %v1301, %v1299
    %v1303 = vxor.u32 %v1302, 2147483648
    %v1304 = vsel %vm1221, %v1303, %v1302
    %v1305 = vsub.s32 4, %v1281
    %v1306 = vsel %vm1221, %v1305, %v1281
    %v1307 = vsel %vm1220, %v363, %v1304
    %v1308 = vsel %vm1220, 0, %v1306
    %v1309 = vcosq.f32.pop %v1307
    %v1310 = vsinq.f32.pop %v1307
    %vm1311 = vweird.f32 %v363
    %v1312 = vadd.s32 %v1308, 3
    %v1313 = vand.u32 %v1312, 3
    %vm1314 = vcmp.lt.s32.totalorder %v1313, 2
    %vm1315 = vcmp.eq.s32.totalorder %v1313, 0
    %v1316 = vxor.u32 %v1310, 2147483648
    %v1317 = vsel %vm1315, %v1309, %v1316
    %vm1318 = vcmp.eq.s32.totalorder %v1313, 2
    %v1319 = vxor.u32 %v1309, 2147483648
    %v1320 = vsel %vm1318, %v1319, %v1310
    %v1321 = vsel %vm1314, %v1317, %v1320
    %v1322 = vsel %vm1311, nan, %v1321
    %v1323 = vand.u32 2147483647, %v364
    %vm1324 = vcmp.le.f32.partialorder %v1323, 0.7853982
    %vm1325 = vcmp.lt.s32.totalorder %v364, 0
    %v1326 = vand.u32 %v364, 2139095040
    %v1327 = vshrl.u32 %v1326, 23
    %v1328 = vsub.s32 %v1327, 127
    %v1329 = vand.u32 2147483647, %v364
    %v1330 = vand.u32 %v1329, 8388607
    %v1331 = vor.u32 %v1330, 8388608
    %v1332 = vsub.s32 0, %v1331
    %v1333 = vadd.s32 %v1328, 1
    %vm1334 = vcmp.gt.s32.totalorder %v1333, 0
    %v1335 = vsel %vm1334, %v1333, 0
    %v1336 = vshrl.u32 %v1335, 5
    %v1337 = vand.u32 %v1335, 31
    %v1338 = vsub.s32 32, %v1337
    %v1339 = vshrl.u32 683565275, %v1338
    %v1340 = vshll.u32 683565275, %v1337
    %v1341 = vshrl.u32 2475754826, %v1338
    %v1342 = vor.u32 %v1340, %v1341
    %v1343 = vshll.u32 2475754826, %v1337
    %v1344 = vshrl.u32 2131351028, %v1338
    %v1345 = vor.u32 %v1343, %v1344
    %v1346 = vshll.u32 2131351028, %v1337
    %v1347 = vshrl.u32 2102212464, %v1338
    %v1348 = vor.u32 %v1346, %v1347
    %v1349 = vshll.u32 2102212464, %v1337
    %v1350 = vshrl.u32 920167782, %v1338
    %v1351 = vor.u32 %v1349, %v1350
    %v1352 = vshll.u32 920167782, %v1337
    %v1353 = vshrl.u32 1326507024, %v1338
    %v1354 = vor.u32 %v1352, %v1353
    %vm1355 = vcmp.lt.s32.totalorder %v1336, 1
    %vm1356 = vcmp.lt.s32.totalorder %v1336, 2
    %vm1357 = vcmp.lt.s32.totalorder %v1336, 3
    %vm1358 = vcmp.lt.s32.totalorder %v1336, 4
    %v1359 = vsel %vm1355, %v1339, %v1342
    %v1360 = vsel %vm1358, %v1348, 2102212464
    %v1361 = vsel %vm1357, %v1345, %v1360
    %v1362 = vsel %vm1356, %v1359, %v1361
    %v1363 = vsel %vm1355, %v1342, %v1345
    %v1364 = vsel %vm1358, %v1351, 920167782
    %v1365 = vsel %vm1357, %v1348, %v1364
    %v1366 = vsel %vm1356, %v1363, %v1365
    %v1367 = vsel %vm1355, %v1345, %v1348
    %v1368 = vsel %vm1358, %v1354, 1326507024
    %v1369 = vsel %vm1357, %v1351, %v1368
    %v1370 = vsel %vm1356, %v1367, %v1369
    %v1371 = vshll.u32 %v1331, 8
    %v1372 = vmul.u32.u64.compose %v1371, %v1370
    %v1373 = vextract.low.u32 %v1372
    %v1374 = vextract.high.u32 %v1372
    %v1375 = vmul.u32.u64.compose %v1371, %v1366
    %v1376 = vextract.low.u32 %v1375
    %v1377 = vextract.high.u32 %v1375
    %v1378 = vmul.u32 %v1371, %v1362
    %v1379 = vadd.s32 %v1374, %v1376
    %vm1380 = vc.u32 %v1374, %v1376
    %v1381 = vadd.s32 %v1377, 1
    %v1382 = vsel %vm1380, %v1381, %v1377
    %v1383 = vadd.s32 %v1378, %v1382
    %v1384 = vadd.s32 %v1383, 536870912
    %v1385 = vshrl.u32 %v1384, 30
    %v1386 = vshll.u32 %v1385, 30
    %v1387 = vsub.s32 %v1383, %v1386
    %vm1388 = vcmp.lt.s32.totalorder %v1387, 0
    %v1389 = vsub.s32 0, %v1387
    %v1390 = vsel %vm1388, %v1389, %v1387
    %v1391 = vclz %v1390
    %v1392 = vsub.s32 %v1391, 2
    %vm1393 = vcmp.gt.s32.totalorder 0, %v1392
    %v1394 = vsel %vm1393, 0, %v1392
    %v1395 = vsub.s32 32, %v1394
    %v1396 = vshll.u32 %v1387, %v1394
    %v1397 = vshrl.u32 %v1379, %v1395
    %v1398 = vor.u32 %v1396, %v1397
    %v1399 = vsub.s32 4294967266, %v1394
    %v1400 = vadd.s32 %v1399, 127
    %v1401 = vshll.u32 %v1400, 23
    %v1402 = vor.u32 4788187, %v1401
    %v1403 = vand.u32 2147483647, %v1402
    %v1405 = vcvt.s32.f32 %v1398
    %v1406 = vmul.f32 %v1405, %v1403
    %v1407 = vxor.u32 %v1406, 2147483648
    %v1408 = vsel %vm1325, %v1407, %v1406
    %v1409 = vsub.s32 4, %v1385
    %v1410 = vsel %vm1325, %v1409, %v1385
    %v1411 = vsel %vm1324, %v364, %v1408
    %v1412 = vsel %vm1324, 0, %v1410
    %v1413 = vcosq.f32.pop %v1411
    %v1414 = vsinq.f32.pop %v1411
    %vm1415 = vweird.f32 %v364
    %v1416 = vadd.s32 %v1412, 3
    %v1417 = vand.u32 %v1416, 3
    %vm1418 = vcmp.lt.s32.totalorder %v1417, 2
    %vm1419 = vcmp.eq.s32.totalorder %v1417, 0
    %v1420 = vxor.u32 %v1414, 2147483648
    %v1421 = vsel %vm1419, %v1413, %v1420
    %vm1422 = vcmp.eq.s32.totalorder %v1417, 2
    %v1423 = vxor.u32 %v1413, 2147483648
    %v1424 = vsel %vm1422, %v1423, %v1414
    %v1425 = vsel %vm1418, %v1421, %v1424
    %v1426 = vsel %vm1415, nan, %v1425
    %v1427 = vand.u32 2147483647, %v365
    %vm1428 = vcmp.le.f32.partialorder %v1427, 0.7853982
    %vm1429 = vcmp.lt.s32.totalorder %v365, 0
    %v1430 = vand.u32 %v365, 2139095040
    %v1431 = vshrl.u32 %v1430, 23
    %v1432 = vsub.s32 %v1431, 127
    %v1433 = vand.u32 2147483647, %v365
    %v1434 = vand.u32 %v1433, 8388607
    %v1435 = vor.u32 %v1434, 8388608
    %v1436 = vsub.s32 0, %v1435
    %v1437 = vadd.s32 %v1432, 1
    %vm1438 = vcmp.gt.s32.totalorder %v1437, 0
    %v1439 = vsel %vm1438, %v1437, 0
    %v1440 = vshrl.u32 %v1439, 5
    %v1441 = vand.u32 %v1439, 31
    %v1442 = vsub.s32 32, %v1441
    %v1443 = vshrl.u32 683565275, %v1442
    %v1444 = vshll.u32 683565275, %v1441
    %v1445 = vshrl.u32 2475754826, %v1442
    %v1446 = vor.u32 %v1444, %v1445
    %v1447 = vshll.u32 2475754826, %v1441
    %v1448 = vshrl.u32 2131351028, %v1442
    %v1449 = vor.u32 %v1447, %v1448
    %v1450 = vshll.u32 2131351028, %v1441
    %v1451 = vshrl.u32 2102212464, %v1442
    %v1452 = vor.u32 %v1450, %v1451
    %v1453 = vshll.u32 2102212464, %v1441
    %v1454 = vshrl.u32 920167782, %v1442
    %v1455 = vor.u32 %v1453, %v1454
    %v1456 = vshll.u32 920167782, %v1441
    %v1457 = vshrl.u32 1326507024, %v1442
    %v1458 = vor.u32 %v1456, %v1457
    %vm1459 = vcmp.lt.s32.totalorder %v1440, 1
    %vm1460 = vcmp.lt.s32.totalorder %v1440, 2
    %vm1461 = vcmp.lt.s32.totalorder %v1440, 3
    %vm1462 = vcmp.lt.s32.totalorder %v1440, 4
    %v1463 = vsel %vm1459, %v1443, %v1446
    %v1464 = vsel %vm1462, %v1452, 2102212464
    %v1465 = vsel %vm1461, %v1449, %v1464
    %v1466 = vsel %vm1460, %v1463, %v1465
    %v1467 = vsel %vm1459, %v1446, %v1449
    %v1468 = vsel %vm1462, %v1455, 920167782
    %v1469 = vsel %vm1461, %v1452, %v1468
    %v1470 = vsel %vm1460, %v1467, %v1469
    %v1471 = vsel %vm1459, %v1449, %v1452
    %v1472 = vsel %vm1462, %v1458, 1326507024
    %v1473 = vsel %vm1461, %v1455, %v1472
    %v1474 = vsel %vm1460, %v1471, %v1473
    %v1475 = vshll.u32 %v1435, 8
    %v1476 = vmul.u32.u64.compose %v1475, %v1474
    %v1477 = vextract.low.u32 %v1476
    %v1478 = vextract.high.u32 %v1476
    %v1479 = vmul.u32.u64.compose %v1475, %v1470
    %v1480 = vextract.low.u32 %v1479
    %v1481 = vextract.high.u32 %v1479
    %v1482 = vmul.u32 %v1475, %v1466
    %v1483 = vadd.s32 %v1478, %v1480
    %vm1484 = vc.u32 %v1478, %v1480
    %v1485 = vadd.s32 %v1481, 1
    %v1486 = vsel %vm1484, %v1485, %v1481
    %v1487 = vadd.s32 %v1482, %v1486
    %v1488 = vadd.s32 %v1487, 536870912
    %v1489 = vshrl.u32 %v1488, 30
    %v1490 = vshll.u32 %v1489, 30
    %v1491 = vsub.s32 %v1487, %v1490
    %vm1492 = vcmp.lt.s32.totalorder %v1491, 0
    %v1493 = vsub.s32 0, %v1491
    %v1494 = vsel %vm1492, %v1493, %v1491
    %v1495 = vclz %v1494
    %v1496 = vsub.s32 %v1495, 2
    %vm1497 = vcmp.gt.s32.totalorder 0, %v1496
    %v1498 = vsel %vm1497, 0, %v1496
    %v1499 = vsub.s32 32, %v1498
    %v1500 = vshll.u32 %v1491, %v1498
    %v1501 = vshrl.u32 %v1483, %v1499
    %v1502 = vor.u32 %v1500, %v1501
    %v1503 = vsub.s32 4294967266, %v1498
    %v1504 = vadd.s32 %v1503, 127
    %v1505 = vshll.u32 %v1504, 23
    %v1506 = vor.u32 4788187, %v1505
    %v1507 = vand.u32 2147483647, %v1506
    %v1509 = vcvt.s32.f32 %v1502
    %v1510 = vmul.f32 %v1509, %v1507
    %v1511 = vxor.u32 %v1510, 2147483648
    %v1512 = vsel %vm1429, %v1511, %v1510
    %v1513 = vsub.s32 4, %v1489
    %v1514 = vsel %vm1429, %v1513, %v1489
    %v1515 = vsel %vm1428, %v365, %v1512
    %v1516 = vsel %vm1428, 0, %v1514
    %v1517 = vcosq.f32.pop %v1515
    %v1518 = vsinq.f32.pop %v1515
    %vm1519 = vweird.f32 %v365
    %v1520 = vadd.s32 %v1516, 3
    %v1521 = vand.u32 %v1520, 3
    %vm1522 = vcmp.lt.s32.totalorder %v1521, 2
    %vm1523 = vcmp.eq.s32.totalorder %v1521, 0
    %v1524 = vxor.u32 %v1518, 2147483648
    %v1525 = vsel %vm1523, %v1517, %v1524
    %vm1526 = vcmp.eq.s32.totalorder %v1521, 2
    %v1527 = vxor.u32 %v1517, 2147483648
    %v1528 = vsel %vm1526, %v1527, %v1518
    %v1529 = vsel %vm1522, %v1525, %v1528
    %v1530 = vsel %vm1519, nan, %v1529
    %v1531 = vand.u32 2147483647, %v366
    %vm1532 = vcmp.le.f32.partialorder %v1531, 0.7853982
    %vm1533 = vcmp.lt.s32.totalorder %v366, 0
    %v1534 = vand.u32 %v366, 2139095040
    %v1535 = vshrl.u32 %v1534, 23
    %v1536 = vsub.s32 %v1535, 127
    %v1537 = vand.u32 2147483647, %v366
    %v1538 = vand.u32 %v1537, 8388607
    %v1539 = vor.u32 %v1538, 8388608
    %v1540 = vsub.s32 0, %v1539
    %v1541 = vadd.s32 %v1536, 1
    %vm1542 = vcmp.gt.s32.totalorder %v1541, 0
    %v1543 = vsel %vm1542, %v1541, 0
    %v1544 = vshrl.u32 %v1543, 5
    %v1545 = vand.u32 %v1543, 31
    %v1546 = vsub.s32 32, %v1545
    %v1547 = vshrl.u32 683565275, %v1546
    %v1548 = vshll.u32 683565275, %v1545
    %v1549 = vshrl.u32 2475754826, %v1546
    %v1550 = vor.u32 %v1548, %v1549
    %v1551 = vshll.u32 2475754826, %v1545
    %v1552 = vshrl.u32 2131351028, %v1546
    %v1553 = vor.u32 %v1551, %v1552
    %v1554 = vshll.u32 2131351028, %v1545
    %v1555 = vshrl.u32 2102212464, %v1546
    %v1556 = vor.u32 %v1554, %v1555
    %v1557 = vshll.u32 2102212464, %v1545
    %v1558 = vshrl.u32 920167782, %v1546
    %v1559 = vor.u32 %v1557, %v1558
    %v1560 = vshll.u32 920167782, %v1545
    %v1561 = vshrl.u32 1326507024, %v1546
    %v1562 = vor.u32 %v1560, %v1561
    %vm1563 = vcmp.lt.s32.totalorder %v1544, 1
    %vm1564 = vcmp.lt.s32.totalorder %v1544, 2
    %vm1565 = vcmp.lt.s32.totalorder %v1544, 3
    %vm1566 = vcmp.lt.s32.totalorder %v1544, 4
    %v1567 = vsel %vm1563, %v1547, %v1550
    %v1568 = vsel %vm1566, %v1556, 2102212464
    %v1569 = vsel %vm1565, %v1553, %v1568
    %v1570 = vsel %vm1564, %v1567, %v1569
    %v1571 = vsel %vm1563, %v1550, %v1553
    %v1572 = vsel %vm1566, %v1559, 920167782
    %v1573 = vsel %vm1565, %v1556, %v1572
    %v1574 = vsel %vm1564, %v1571, %v1573
    %v1575 = vsel %vm1563, %v1553, %v1556
    %v1576 = vsel %vm1566, %v1562, 1326507024
    %v1577 = vsel %vm1565, %v1559, %v1576
    %v1578 = vsel %vm1564, %v1575, %v1577
    %v1579 = vshll.u32 %v1539, 8
    %v1580 = vmul.u32.u64.compose %v1579, %v1578
    %v1581 = vextract.low.u32 %v1580
    %v1582 = vextract.high.u32 %v1580
    %v1583 = vmul.u32.u64.compose %v1579, %v1574
    %v1584 = vextract.low.u32 %v1583
    %v1585 = vextract.high.u32 %v1583
    %v1586 = vmul.u32 %v1579, %v1570
    %v1587 = vadd.s32 %v1582, %v1584
    %vm1588 = vc.u32 %v1582, %v1584
    %v1589 = vadd.s32 %v1585, 1
    %v1590 = vsel %vm1588, %v1589, %v1585
    %v1591 = vadd.s32 %v1586, %v1590
    %v1592 = vadd.s32 %v1591, 536870912
    %v1593 = vshrl.u32 %v1592, 30
    %v1594 = vshll.u32 %v1593, 30
    %v1595 = vsub.s32 %v1591, %v1594
    %vm1596 = vcmp.lt.s32.totalorder %v1595, 0
    %v1597 = vsub.s32 0, %v1595
    %v1598 = vsel %vm1596, %v1597, %v1595
    %v1599 = vclz %v1598
    %v1600 = vsub.s32 %v1599, 2
    %vm1601 = vcmp.gt.s32.totalorder 0, %v1600
    %v1602 = vsel %vm1601, 0, %v1600
    %v1603 = vsub.s32 32, %v1602
    %v1604 = vshll.u32 %v1595, %v1602
    %v1605 = vshrl.u32 %v1587, %v1603
    %v1606 = vor.u32 %v1604, %v1605
    %v1607 = vsub.s32 4294967266, %v1602
    %v1608 = vadd.s32 %v1607, 127
    %v1609 = vshll.u32 %v1608, 23
    %v1610 = vor.u32 4788187, %v1609
    %v1611 = vand.u32 2147483647, %v1610
    %v1613 = vcvt.s32.f32 %v1606
    %v1614 = vmul.f32 %v1613, %v1611
    %v1615 = vxor.u32 %v1614, 2147483648
    %v1616 = vsel %vm1533, %v1615, %v1614
    %v1617 = vsub.s32 4, %v1593
    %v1618 = vsel %vm1533, %v1617, %v1593
    %v1619 = vsel %vm1532, %v366, %v1616
    %v1620 = vsel %vm1532, 0, %v1618
    %v1621 = vcosq.f32.pop %v1619
    %v1622 = vsinq.f32.pop %v1619
    %vm1623 = vweird.f32 %v366
    %v1624 = vadd.s32 %v1620, 3
    %v1625 = vand.u32 %v1624, 3
    %vm1626 = vcmp.lt.s32.totalorder %v1625, 2
    %vm1627 = vcmp.eq.s32.totalorder %v1625, 0
    %v1628 = vxor.u32 %v1622, 2147483648
    %v1629 = vsel %vm1627, %v1621, %v1628
    %vm1630 = vcmp.eq.s32.totalorder %v1625, 2
    %v1631 = vxor.u32 %v1621, 2147483648
    %v1632 = vsel %vm1630, %v1631, %v1622
    %v1633 = vsel %vm1626, %v1629, %v1632
    %v1634 = vsel %vm1623, nan, %v1633
    %v1635 = vand.u32 2147483647, %v367
    %vm1636 = vcmp.le.f32.partialorder %v1635, 0.7853982
    %vm1637 = vcmp.lt.s32.totalorder %v367, 0
    %v1638 = vand.u32 %v367, 2139095040
    %v1639 = vshrl.u32 %v1638, 23
    %v1640 = vsub.s32 %v1639, 127
    %v1641 = vand.u32 2147483647, %v367
    %v1642 = vand.u32 %v1641, 8388607
    %v1643 = vor.u32 %v1642, 8388608
    %v1644 = vsub.s32 0, %v1643
    %v1645 = vadd.s32 %v1640, 1
    %vm1646 = vcmp.gt.s32.totalorder %v1645, 0
    %v1647 = vsel %vm1646, %v1645, 0
    %v1648 = vshrl.u32 %v1647, 5
    %v1649 = vand.u32 %v1647, 31
    %v1650 = vsub.s32 32, %v1649
    %v1651 = vshrl.u32 683565275, %v1650
    %v1652 = vshll.u32 683565275, %v1649
    %v1653 = vshrl.u32 2475754826, %v1650
    %v1654 = vor.u32 %v1652, %v1653
    %v1655 = vshll.u32 2475754826, %v1649
    %v1656 = vshrl.u32 2131351028, %v1650
    %v1657 = vor.u32 %v1655, %v1656
    %v1658 = vshll.u32 2131351028, %v1649
    %v1659 = vshrl.u32 2102212464, %v1650
    %v1660 = vor.u32 %v1658, %v1659
    %v1661 = vshll.u32 2102212464, %v1649
    %v1662 = vshrl.u32 920167782, %v1650
    %v1663 = vor.u32 %v1661, %v1662
    %v1664 = vshll.u32 920167782, %v1649
    %v1665 = vshrl.u32 1326507024, %v1650
    %v1666 = vor.u32 %v1664, %v1665
    %vm1667 = vcmp.lt.s32.totalorder %v1648, 1
    %vm1668 = vcmp.lt.s32.totalorder %v1648, 2
    %vm1669 = vcmp.lt.s32.totalorder %v1648, 3
    %vm1670 = vcmp.lt.s32.totalorder %v1648, 4
    %v1671 = vsel %vm1667, %v1651, %v1654
    %v1672 = vsel %vm1670, %v1660, 2102212464
    %v1673 = vsel %vm1669, %v1657, %v1672
    %v1674 = vsel %vm1668, %v1671, %v1673
    %v1675 = vsel %vm1667, %v1654, %v1657
    %v1676 = vsel %vm1670, %v1663, 920167782
    %v1677 = vsel %vm1669, %v1660, %v1676
    %v1678 = vsel %vm1668, %v1675, %v1677
    %v1679 = vsel %vm1667, %v1657, %v1660
    %v1680 = vsel %vm1670, %v1666, 1326507024
    %v1681 = vsel %vm1669, %v1663, %v1680
    %v1682 = vsel %vm1668, %v1679, %v1681
    %v1683 = vshll.u32 %v1643, 8
    %v1684 = vmul.u32.u64.compose %v1683, %v1682
    %v1685 = vextract.low.u32 %v1684
    %v1686 = vextract.high.u32 %v1684
    %v1687 = vmul.u32.u64.compose %v1683, %v1678
    %v1688 = vextract.low.u32 %v1687
    %v1689 = vextract.high.u32 %v1687
    %v1690 = vmul.u32 %v1683, %v1674
    %v1691 = vadd.s32 %v1686, %v1688
    %vm1692 = vc.u32 %v1686, %v1688
    %v1693 = vadd.s32 %v1689, 1
    %v1694 = vsel %vm1692, %v1693, %v1689
    %v1695 = vadd.s32 %v1690, %v1694
    %v1696 = vadd.s32 %v1695, 536870912
    %v1697 = vshrl.u32 %v1696, 30
    %v1698 = vshll.u32 %v1697, 30
    %v1699 = vsub.s32 %v1695, %v1698
    %vm1700 = vcmp.lt.s32.totalorder %v1699, 0
    %v1701 = vsub.s32 0, %v1699
    %v1702 = vsel %vm1700, %v1701, %v1699
    %v1703 = vclz %v1702
    %v1704 = vsub.s32 %v1703, 2
    %vm1705 = vcmp.gt.s32.totalorder 0, %v1704
    %v1706 = vsel %vm1705, 0, %v1704
    %v1707 = vsub.s32 32, %v1706
    %v1708 = vshll.u32 %v1699, %v1706
    %v1709 = vshrl.u32 %v1691, %v1707
    %v1710 = vor.u32 %v1708, %v1709
    %v1711 = vsub.s32 4294967266, %v1706
    %v1712 = vadd.s32 %v1711, 127
    %v1713 = vshll.u32 %v1712, 23
    %v1714 = vor.u32 4788187, %v1713
    %v1715 = vand.u32 2147483647, %v1714
    %v1717 = vcvt.s32.f32 %v1710
    %v1718 = vmul.f32 %v1717, %v1715
    %v1719 = vxor.u32 %v1718, 2147483648
    %v1720 = vsel %vm1637, %v1719, %v1718
    %v1721 = vsub.s32 4, %v1697
    %v1722 = vsel %vm1637, %v1721, %v1697
    %v1723 = vsel %vm1636, %v367, %v1720
    %v1724 = vsel %vm1636, 0, %v1722
    %v1725 = vcosq.f32.pop %v1723
    %v1726 = vsinq.f32.pop %v1723
    %vm1727 = vweird.f32 %v367
    %v1728 = vadd.s32 %v1724, 3
    %v1729 = vand.u32 %v1728, 3
    %vm1730 = vcmp.lt.s32.totalorder %v1729, 2
    %vm1731 = vcmp.eq.s32.totalorder %v1729, 0
    %v1732 = vxor.u32 %v1726, 2147483648
    %v1733 = vsel %vm1731, %v1725, %v1732
    %vm1734 = vcmp.eq.s32.totalorder %v1729, 2
    %v1735 = vxor.u32 %v1725, 2147483648
    %v1736 = vsel %vm1734, %v1735, %v1726
    %v1737 = vsel %vm1730, %v1733, %v1736
    %v1738 = vsel %vm1727, nan, %v1737
    %v1739 = vand.u32 2147483647, %v368
    %vm1740 = vcmp.le.f32.partialorder %v1739, 0.7853982
    %vm1741 = vcmp.lt.s32.totalorder %v368, 0
    %v1742 = vand.u32 %v368, 2139095040
    %v1743 = vshrl.u32 %v1742, 23
    %v1744 = vsub.s32 %v1743, 127
    %v1745 = vand.u32 2147483647, %v368
    %v1746 = vand.u32 %v1745, 8388607
    %v1747 = vor.u32 %v1746, 8388608
    %v1748 = vsub.s32 0, %v1747
    %v1749 = vadd.s32 %v1744, 1
    %vm1750 = vcmp.gt.s32.totalorder %v1749, 0
    %v1751 = vsel %vm1750, %v1749, 0
    %v1752 = vshrl.u32 %v1751, 5
    %v1753 = vand.u32 %v1751, 31
    %v1754 = vsub.s32 32, %v1753
    %v1755 = vshrl.u32 683565275, %v1754
    %v1756 = vshll.u32 683565275, %v1753
    %v1757 = vshrl.u32 2475754826, %v1754
    %v1758 = vor.u32 %v1756, %v1757
    %v1759 = vshll.u32 2475754826, %v1753
    %v1760 = vshrl.u32 2131351028, %v1754
    %v1761 = vor.u32 %v1759, %v1760
    %v1762 = vshll.u32 2131351028, %v1753
    %v1763 = vshrl.u32 2102212464, %v1754
    %v1764 = vor.u32 %v1762, %v1763
    %v1765 = vshll.u32 2102212464, %v1753
    %v1766 = vshrl.u32 920167782, %v1754
    %v1767 = vor.u32 %v1765, %v1766
    %v1768 = vshll.u32 920167782, %v1753
    %v1769 = vshrl.u32 1326507024, %v1754
    %v1770 = vor.u32 %v1768, %v1769
    %vm1771 = vcmp.lt.s32.totalorder %v1752, 1
    %vm1772 = vcmp.lt.s32.totalorder %v1752, 2
    %vm1773 = vcmp.lt.s32.totalorder %v1752, 3
    %vm1774 = vcmp.lt.s32.totalorder %v1752, 4
    %v1775 = vsel %vm1771, %v1755, %v1758
    %v1776 = vsel %vm1774, %v1764, 2102212464
    %v1777 = vsel %vm1773, %v1761, %v1776
    %v1778 = vsel %vm1772, %v1775, %v1777
    %v1779 = vsel %vm1771, %v1758, %v1761
    %v1780 = vsel %vm1774, %v1767, 920167782
    %v1781 = vsel %vm1773, %v1764, %v1780
    %v1782 = vsel %vm1772, %v1779, %v1781
    %v1783 = vsel %vm1771, %v1761, %v1764
    %v1784 = vsel %vm1774, %v1770, 1326507024
    %v1785 = vsel %vm1773, %v1767, %v1784
    %v1786 = vsel %vm1772, %v1783, %v1785
    %v1787 = vshll.u32 %v1747, 8
    %v1788 = vmul.u32.u64.compose %v1787, %v1786
    %v1789 = vextract.low.u32 %v1788
    %v1790 = vextract.high.u32 %v1788
    %v1791 = vmul.u32.u64.compose %v1787, %v1782
    %v1792 = vextract.low.u32 %v1791
    %v1793 = vextract.high.u32 %v1791
    %v1794 = vmul.u32 %v1787, %v1778
    %v1795 = vadd.s32 %v1790, %v1792
    %vm1796 = vc.u32 %v1790, %v1792
    %v1797 = vadd.s32 %v1793, 1
    %v1798 = vsel %vm1796, %v1797, %v1793
    %v1799 = vadd.s32 %v1794, %v1798
    %v1800 = vadd.s32 %v1799, 536870912
    %v1801 = vshrl.u32 %v1800, 30
    %v1802 = vshll.u32 %v1801, 30
    %v1803 = vsub.s32 %v1799, %v1802
    %vm1804 = vcmp.lt.s32.totalorder %v1803, 0
    %v1805 = vsub.s32 0, %v1803
    %v1806 = vsel %vm1804, %v1805, %v1803
    %v1807 = vclz %v1806
    %v1808 = vsub.s32 %v1807, 2
    %vm1809 = vcmp.gt.s32.totalorder 0, %v1808
    %v1810 = vsel %vm1809, 0, %v1808
    %v1811 = vsub.s32 32, %v1810
    %v1812 = vshll.u32 %v1803, %v1810
    %v1813 = vshrl.u32 %v1795, %v1811
    %v1814 = vor.u32 %v1812, %v1813
    %v1815 = vsub.s32 4294967266, %v1810
    %v1816 = vadd.s32 %v1815, 127
    %v1817 = vshll.u32 %v1816, 23
    %v1818 = vor.u32 4788187, %v1817
    %v1819 = vand.u32 2147483647, %v1818
    %v1821 = vcvt.s32.f32 %v1814
    %v1822 = vmul.f32 %v1821, %v1819
    %v1823 = vxor.u32 %v1822, 2147483648
    %v1824 = vsel %vm1741, %v1823, %v1822
    %v1825 = vsub.s32 4, %v1801
    %v1826 = vsel %vm1741, %v1825, %v1801
    %v1827 = vsel %vm1740, %v368, %v1824
    %v1828 = vsel %vm1740, 0, %v1826
    %v1829 = vcosq.f32.pop %v1827
    %v1830 = vsinq.f32.pop %v1827
    %vm1831 = vweird.f32 %v368
    %v1832 = vadd.s32 %v1828, 3
    %v1833 = vand.u32 %v1832, 3
    %vm1834 = vcmp.lt.s32.totalorder %v1833, 2
    %vm1835 = vcmp.eq.s32.totalorder %v1833, 0
    %v1836 = vxor.u32 %v1830, 2147483648
    %v1837 = vsel %vm1835, %v1829, %v1836
    %vm1838 = vcmp.eq.s32.totalorder %v1833, 2
    %v1839 = vxor.u32 %v1829, 2147483648
    %v1840 = vsel %vm1838, %v1839, %v1830
    %v1841 = vsel %vm1834, %v1837, %v1840
    %v1842 = vsel %vm1831, nan, %v1841
    %v1843 = vand.u32 2147483647, %v369
    %vm1844 = vcmp.le.f32.partialorder %v1843, 0.7853982
    %vm1845 = vcmp.lt.s32.totalorder %v369, 0
    %v1846 = vand.u32 %v369, 2139095040
    %v1847 = vshrl.u32 %v1846, 23
    %v1848 = vsub.s32 %v1847, 127
    %v1849 = vand.u32 2147483647, %v369
    %v1850 = vand.u32 %v1849, 8388607
    %v1851 = vor.u32 %v1850, 8388608
    %v1852 = vsub.s32 0, %v1851
    %v1853 = vadd.s32 %v1848, 1
    %vm1854 = vcmp.gt.s32.totalorder %v1853, 0
    %v1855 = vsel %vm1854, %v1853, 0
    %v1856 = vshrl.u32 %v1855, 5
    %v1857 = vand.u32 %v1855, 31
    %v1858 = vsub.s32 32, %v1857
    %v1859 = vshrl.u32 683565275, %v1858
    %v1860 = vshll.u32 683565275, %v1857
    %v1861 = vshrl.u32 2475754826, %v1858
    %v1862 = vor.u32 %v1860, %v1861
    %v1863 = vshll.u32 2475754826, %v1857
    %v1864 = vshrl.u32 2131351028, %v1858
    %v1865 = vor.u32 %v1863, %v1864
    %v1866 = vshll.u32 2131351028, %v1857
    %v1867 = vshrl.u32 2102212464, %v1858
    %v1868 = vor.u32 %v1866, %v1867
    %v1869 = vshll.u32 2102212464, %v1857
    %v1870 = vshrl.u32 920167782, %v1858
    %v1871 = vor.u32 %v1869, %v1870
    %v1872 = vshll.u32 920167782, %v1857
    %v1873 = vshrl.u32 1326507024, %v1858
    %v1874 = vor.u32 %v1872, %v1873
    %vm1875 = vcmp.lt.s32.totalorder %v1856, 1
    %vm1876 = vcmp.lt.s32.totalorder %v1856, 2
    %vm1877 = vcmp.lt.s32.totalorder %v1856, 3
    %vm1878 = vcmp.lt.s32.totalorder %v1856, 4
    %v1879 = vsel %vm1875, %v1859, %v1862
    %v1880 = vsel %vm1878, %v1868, 2102212464
    %v1881 = vsel %vm1877, %v1865, %v1880
    %v1882 = vsel %vm1876, %v1879, %v1881
    %v1883 = vsel %vm1875, %v1862, %v1865
    %v1884 = vsel %vm1878, %v1871, 920167782
    %v1885 = vsel %vm1877, %v1868, %v1884
    %v1886 = vsel %vm1876, %v1883, %v1885
    %v1887 = vsel %vm1875, %v1865, %v1868
    %v1888 = vsel %vm1878, %v1874, 1326507024
    %v1889 = vsel %vm1877, %v1871, %v1888
    %v1890 = vsel %vm1876, %v1887, %v1889
    %v1891 = vshll.u32 %v1851, 8
    %v1892 = vmul.u32.u64.compose %v1891, %v1890
    %v1893 = vextract.low.u32 %v1892
    %v1894 = vextract.high.u32 %v1892
    %v1895 = vmul.u32.u64.compose %v1891, %v1886
    %v1896 = vextract.low.u32 %v1895
    %v1897 = vextract.high.u32 %v1895
    %v1898 = vmul.u32 %v1891, %v1882
    %v1899 = vadd.s32 %v1894, %v1896
    %vm1900 = vc.u32 %v1894, %v1896
    %v1901 = vadd.s32 %v1897, 1
    %v1902 = vsel %vm1900, %v1901, %v1897
    %v1903 = vadd.s32 %v1898, %v1902
    %v1904 = vadd.s32 %v1903, 536870912
    %v1905 = vshrl.u32 %v1904, 30
    %v1906 = vshll.u32 %v1905, 30
    %v1907 = vsub.s32 %v1903, %v1906
    %vm1908 = vcmp.lt.s32.totalorder %v1907, 0
    %v1909 = vsub.s32 0, %v1907
    %v1910 = vsel %vm1908, %v1909, %v1907
    %v1911 = vclz %v1910
    %v1912 = vsub.s32 %v1911, 2
    %vm1913 = vcmp.gt.s32.totalorder 0, %v1912
    %v1914 = vsel %vm1913, 0, %v1912
    %v1915 = vsub.s32 32, %v1914
    %v1916 = vshll.u32 %v1907, %v1914
    %v1917 = vshrl.u32 %v1899, %v1915
    %v1918 = vor.u32 %v1916, %v1917
    %v1919 = vsub.s32 4294967266, %v1914
    %v1920 = vadd.s32 %v1919, 127
    %v1921 = vshll.u32 %v1920, 23
    %v1922 = vor.u32 4788187, %v1921
    %v1923 = vand.u32 2147483647, %v1922
    %v1925 = vcvt.s32.f32 %v1918
    %v1926 = vmul.f32 %v1925, %v1923
    %v1927 = vxor.u32 %v1926, 2147483648
    %v1928 = vsel %vm1845, %v1927, %v1926
    %v1929 = vsub.s32 4, %v1905
    %v1930 = vsel %vm1845, %v1929, %v1905
    %v1931 = vsel %vm1844, %v369, %v1928
    %v1932 = vsel %vm1844, 0, %v1930
    %v1933 = vcosq.f32.pop %v1931
    %v1934 = vsinq.f32.pop %v1931
    %vm1935 = vweird.f32 %v369
    %v1936 = vadd.s32 %v1932, 3
    %v1937 = vand.u32 %v1936, 3
    %vm1938 = vcmp.lt.s32.totalorder %v1937, 2
    %vm1939 = vcmp.eq.s32.totalorder %v1937, 0
    %v1940 = vxor.u32 %v1934, 2147483648
    %v1941 = vsel %vm1939, %v1933, %v1940
    %vm1942 = vcmp.eq.s32.totalorder %v1937, 2
    %v1943 = vxor.u32 %v1933, 2147483648
    %v1944 = vsel %vm1942, %v1943, %v1934
    %v1945 = vsel %vm1938, %v1941, %v1944
    %v1946 = vsel %vm1935, nan, %v1945
    %v1947 = vand.u32 2147483647, %v370
    %vm1948 = vcmp.le.f32.partialorder %v1947, 0.7853982
    %vm1949 = vcmp.lt.s32.totalorder %v370, 0
    %v1950 = vand.u32 %v370, 2139095040
    %v1951 = vshrl.u32 %v1950, 23
    %v1952 = vsub.s32 %v1951, 127
    %v1953 = vand.u32 2147483647, %v370
    %v1954 = vand.u32 %v1953, 8388607
    %v1955 = vor.u32 %v1954, 8388608
    %v1956 = vsub.s32 0, %v1955
    %v1957 = vadd.s32 %v1952, 1
    %vm1958 = vcmp.gt.s32.totalorder %v1957, 0
    %v1959 = vsel %vm1958, %v1957, 0
    %v1960 = vshrl.u32 %v1959, 5
    %v1961 = vand.u32 %v1959, 31
    %v1962 = vsub.s32 32, %v1961
    %v1963 = vshrl.u32 683565275, %v1962
    %v1964 = vshll.u32 683565275, %v1961
    %v1965 = vshrl.u32 2475754826, %v1962
    %v1966 = vor.u32 %v1964, %v1965
    %v1967 = vshll.u32 2475754826, %v1961
    %v1968 = vshrl.u32 2131351028, %v1962
    %v1969 = vor.u32 %v1967, %v1968
    %v1970 = vshll.u32 2131351028, %v1961
    %v1971 = vshrl.u32 2102212464, %v1962
    %v1972 = vor.u32 %v1970, %v1971
    %v1973 = vshll.u32 2102212464, %v1961
    %v1974 = vshrl.u32 920167782, %v1962
    %v1975 = vor.u32 %v1973, %v1974
    %v1976 = vshll.u32 920167782, %v1961
    %v1977 = vshrl.u32 1326507024, %v1962
    %v1978 = vor.u32 %v1976, %v1977
    %vm1979 = vcmp.lt.s32.totalorder %v1960, 1
    %vm1980 = vcmp.lt.s32.totalorder %v1960, 2
    %vm1981 = vcmp.lt.s32.totalorder %v1960, 3
    %vm1982 = vcmp.lt.s32.totalorder %v1960, 4
    %v1983 = vsel %vm1979, %v1963, %v1966
    %v1984 = vsel %vm1982, %v1972, 2102212464
    %v1985 = vsel %vm1981, %v1969, %v1984
    %v1986 = vsel %vm1980, %v1983, %v1985
    %v1987 = vsel %vm1979, %v1966, %v1969
    %v1988 = vsel %vm1982, %v1975, 920167782
    %v1989 = vsel %vm1981, %v1972, %v1988
    %v1990 = vsel %vm1980, %v1987, %v1989
    %v1991 = vsel %vm1979, %v1969, %v1972
    %v1992 = vsel %vm1982, %v1978, 1326507024
    %v1993 = vsel %vm1981, %v1975, %v1992
    %v1994 = vsel %vm1980, %v1991, %v1993
    %v1995 = vshll.u32 %v1955, 8
    %v1996 = vmul.u32.u64.compose %v1995, %v1994
    %v1997 = vextract.low.u32 %v1996
    %v1998 = vextract.high.u32 %v1996
    %v1999 = vmul.u32.u64.compose %v1995, %v1990
    %v2000 = vextract.low.u32 %v1999
    %v2001 = vextract.high.u32 %v1999
    %v2002 = vmul.u32 %v1995, %v1986
    %v2003 = vadd.s32 %v1998, %v2000
    %vm2004 = vc.u32 %v1998, %v2000
    %v2005 = vadd.s32 %v2001, 1
    %v2006 = vsel %vm2004, %v2005, %v2001
    %v2007 = vadd.s32 %v2002, %v2006
    %v2008 = vadd.s32 %v2007, 536870912
    %v2009 = vshrl.u32 %v2008, 30
    %v2010 = vshll.u32 %v2009, 30
    %v2011 = vsub.s32 %v2007, %v2010
    %vm2012 = vcmp.lt.s32.totalorder %v2011, 0
    %v2013 = vsub.s32 0, %v2011
    %v2014 = vsel %vm2012, %v2013, %v2011
    %v2015 = vclz %v2014
    %v2016 = vsub.s32 %v2015, 2
    %vm2017 = vcmp.gt.s32.totalorder 0, %v2016
    %v2018 = vsel %vm2017, 0, %v2016
    %v2019 = vsub.s32 32, %v2018
    %v2020 = vshll.u32 %v2011, %v2018
    %v2021 = vshrl.u32 %v2003, %v2019
    %v2022 = vor.u32 %v2020, %v2021
    %v2023 = vsub.s32 4294967266, %v2018
    %v2024 = vadd.s32 %v2023, 127
    %v2025 = vshll.u32 %v2024, 23
    %v2026 = vor.u32 4788187, %v2025
    %v2027 = vand.u32 2147483647, %v2026
    %v2029 = vcvt.s32.f32 %v2022
    %v2030 = vmul.f32 %v2029, %v2027
    %v2031 = vxor.u32 %v2030, 2147483648
    %v2032 = vsel %vm1949, %v2031, %v2030
    %v2033 = vsub.s32 4, %v2009
    %v2034 = vsel %vm1949, %v2033, %v2009
    %v2035 = vsel %vm1948, %v370, %v2032
    %v2036 = vsel %vm1948, 0, %v2034
    %v2037 = vcosq.f32.pop %v2035
    %v2038 = vsinq.f32.pop %v2035
    %vm2039 = vweird.f32 %v370
    %v2040 = vadd.s32 %v2036, 3
    %v2041 = vand.u32 %v2040, 3
    %vm2042 = vcmp.lt.s32.totalorder %v2041, 2
    %vm2043 = vcmp.eq.s32.totalorder %v2041, 0
    %v2044 = vxor.u32 %v2038, 2147483648
    %v2045 = vsel %vm2043, %v2037, %v2044
    %vm2046 = vcmp.eq.s32.totalorder %v2041, 2
    %v2047 = vxor.u32 %v2037, 2147483648
    %v2048 = vsel %vm2046, %v2047, %v2038
    %v2049 = vsel %vm2042, %v2045, %v2048
    %v2050 = vsel %vm2039, nan, %v2049
    %v2051 = vand.u32 2147483647, %v371
    %vm2052 = vcmp.le.f32.partialorder %v2051, 0.7853982
    %vm2053 = vcmp.lt.s32.totalorder %v371, 0
    %v2054 = vand.u32 %v371, 2139095040
    %v2055 = vshrl.u32 %v2054, 23
    %v2056 = vsub.s32 %v2055, 127
    %v2057 = vand.u32 2147483647, %v371
    %v2058 = vand.u32 %v2057, 8388607
    %v2059 = vor.u32 %v2058, 8388608
    %v2060 = vsub.s32 0, %v2059
    %v2061 = vadd.s32 %v2056, 1
    %vm2062 = vcmp.gt.s32.totalorder %v2061, 0
    %v2063 = vsel %vm2062, %v2061, 0
    %v2064 = vshrl.u32 %v2063, 5
    %v2065 = vand.u32 %v2063, 31
    %v2066 = vsub.s32 32, %v2065
    %v2067 = vshrl.u32 683565275, %v2066
    %v2068 = vshll.u32 683565275, %v2065
    %v2069 = vshrl.u32 2475754826, %v2066
    %v2070 = vor.u32 %v2068, %v2069
    %v2071 = vshll.u32 2475754826, %v2065
    %v2072 = vshrl.u32 2131351028, %v2066
    %v2073 = vor.u32 %v2071, %v2072
    %v2074 = vshll.u32 2131351028, %v2065
    %v2075 = vshrl.u32 2102212464, %v2066
    %v2076 = vor.u32 %v2074, %v2075
    %v2077 = vshll.u32 2102212464, %v2065
    %v2078 = vshrl.u32 920167782, %v2066
    %v2079 = vor.u32 %v2077, %v2078
    %v2080 = vshll.u32 920167782, %v2065
    %v2081 = vshrl.u32 1326507024, %v2066
    %v2082 = vor.u32 %v2080, %v2081
    %vm2083 = vcmp.lt.s32.totalorder %v2064, 1
    %vm2084 = vcmp.lt.s32.totalorder %v2064, 2
    %vm2085 = vcmp.lt.s32.totalorder %v2064, 3
    %vm2086 = vcmp.lt.s32.totalorder %v2064, 4
    %v2087 = vsel %vm2083, %v2067, %v2070
    %v2088 = vsel %vm2086, %v2076, 2102212464
    %v2089 = vsel %vm2085, %v2073, %v2088
    %v2090 = vsel %vm2084, %v2087, %v2089
    %v2091 = vsel %vm2083, %v2070, %v2073
    %v2092 = vsel %vm2086, %v2079, 920167782
    %v2093 = vsel %vm2085, %v2076, %v2092
    %v2094 = vsel %vm2084, %v2091, %v2093
    %v2095 = vsel %vm2083, %v2073, %v2076
    %v2096 = vsel %vm2086, %v2082, 1326507024
    %v2097 = vsel %vm2085, %v2079, %v2096
    %v2098 = vsel %vm2084, %v2095, %v2097
    %v2099 = vshll.u32 %v2059, 8
    %v2100 = vmul.u32.u64.compose %v2099, %v2098
    %v2101 = vextract.low.u32 %v2100
    %v2102 = vextract.high.u32 %v2100
    %v2103 = vmul.u32.u64.compose %v2099, %v2094
    %v2104 = vextract.low.u32 %v2103
    %v2105 = vextract.high.u32 %v2103
    %v2106 = vmul.u32 %v2099, %v2090
    %v2107 = vadd.s32 %v2102, %v2104
    %vm2108 = vc.u32 %v2102, %v2104
    %v2109 = vadd.s32 %v2105, 1
    %v2110 = vsel %vm2108, %v2109, %v2105
    %v2111 = vadd.s32 %v2106, %v2110
    %v2112 = vadd.s32 %v2111, 536870912
    %v2113 = vshrl.u32 %v2112, 30
    %v2114 = vshll.u32 %v2113, 30
    %v2115 = vsub.s32 %v2111, %v2114
    %vm2116 = vcmp.lt.s32.totalorder %v2115, 0
    %v2117 = vsub.s32 0, %v2115
    %v2118 = vsel %vm2116, %v2117, %v2115
    %v2119 = vclz %v2118
    %v2120 = vsub.s32 %v2119, 2
    %vm2121 = vcmp.gt.s32.totalorder 0, %v2120
    %v2122 = vsel %vm2121, 0, %v2120
    %v2123 = vsub.s32 32, %v2122
    %v2124 = vshll.u32 %v2115, %v2122
    %v2125 = vshrl.u32 %v2107, %v2123
    %v2126 = vor.u32 %v2124, %v2125
    %v2127 = vsub.s32 4294967266, %v2122
    %v2128 = vadd.s32 %v2127, 127
    %v2129 = vshll.u32 %v2128, 23
    %v2130 = vor.u32 4788187, %v2129
    %v2131 = vand.u32 2147483647, %v2130
    %v2133 = vcvt.s32.f32 %v2126
    %v2134 = vmul.f32 %v2133, %v2131
    %v2135 = vxor.u32 %v2134, 2147483648
    %v2136 = vsel %vm2053, %v2135, %v2134
    %v2137 = vsub.s32 4, %v2113
    %v2138 = vsel %vm2053, %v2137, %v2113
    %v2139 = vsel %vm2052, %v371, %v2136
    %v2140 = vsel %vm2052, 0, %v2138
    %v2141 = vcosq.f32.pop %v2139
    %v2142 = vsinq.f32.pop %v2139
    %vm2143 = vweird.f32 %v371
    %v2144 = vadd.s32 %v2140, 3
    %v2145 = vand.u32 %v2144, 3
    %vm2146 = vcmp.lt.s32.totalorder %v2145, 2
    %vm2147 = vcmp.eq.s32.totalorder %v2145, 0
    %v2148 = vxor.u32 %v2142, 2147483648
    %v2149 = vsel %vm2147, %v2141, %v2148
    %vm2150 = vcmp.eq.s32.totalorder %v2145, 2
    %v2151 = vxor.u32 %v2141, 2147483648
    %v2152 = vsel %vm2150, %v2151, %v2142
    %v2153 = vsel %vm2146, %v2149, %v2152
    %v2154 = vsel %vm2143, nan, %v2153
    %v2155 = vand.u32 2147483647, %v372
    %vm2156 = vcmp.le.f32.partialorder %v2155, 0.7853982
    %vm2157 = vcmp.lt.s32.totalorder %v372, 0
    %v2158 = vand.u32 %v372, 2139095040
    %v2159 = vshrl.u32 %v2158, 23
    %v2160 = vsub.s32 %v2159, 127
    %v2161 = vand.u32 2147483647, %v372
    %v2162 = vand.u32 %v2161, 8388607
    %v2163 = vor.u32 %v2162, 8388608
    %v2164 = vsub.s32 0, %v2163
    %v2165 = vadd.s32 %v2160, 1
    %vm2166 = vcmp.gt.s32.totalorder %v2165, 0
    %v2167 = vsel %vm2166, %v2165, 0
    %v2168 = vshrl.u32 %v2167, 5
    %v2169 = vand.u32 %v2167, 31
    %v2170 = vsub.s32 32, %v2169
    %v2171 = vshrl.u32 683565275, %v2170
    %v2172 = vshll.u32 683565275, %v2169
    %v2173 = vshrl.u32 2475754826, %v2170
    %v2174 = vor.u32 %v2172, %v2173
    %v2175 = vshll.u32 2475754826, %v2169
    %v2176 = vshrl.u32 2131351028, %v2170
    %v2177 = vor.u32 %v2175, %v2176
    %v2178 = vshll.u32 2131351028, %v2169
    %v2179 = vshrl.u32 2102212464, %v2170
    %v2180 = vor.u32 %v2178, %v2179
    %v2181 = vshll.u32 2102212464, %v2169
    %v2182 = vshrl.u32 920167782, %v2170
    %v2183 = vor.u32 %v2181, %v2182
    %v2184 = vshll.u32 920167782, %v2169
    %v2185 = vshrl.u32 1326507024, %v2170
    %v2186 = vor.u32 %v2184, %v2185
    %vm2187 = vcmp.lt.s32.totalorder %v2168, 1
    %vm2188 = vcmp.lt.s32.totalorder %v2168, 2
    %vm2189 = vcmp.lt.s32.totalorder %v2168, 3
    %vm2190 = vcmp.lt.s32.totalorder %v2168, 4
    %v2191 = vsel %vm2187, %v2171, %v2174
    %v2192 = vsel %vm2190, %v2180, 2102212464
    %v2193 = vsel %vm2189, %v2177, %v2192
    %v2194 = vsel %vm2188, %v2191, %v2193
    %v2195 = vsel %vm2187, %v2174, %v2177
    %v2196 = vsel %vm2190, %v2183, 920167782
    %v2197 = vsel %vm2189, %v2180, %v2196
    %v2198 = vsel %vm2188, %v2195, %v2197
    %v2199 = vsel %vm2187, %v2177, %v2180
    %v2200 = vsel %vm2190, %v2186, 1326507024
    %v2201 = vsel %vm2189, %v2183, %v2200
    %v2202 = vsel %vm2188, %v2199, %v2201
    %v2203 = vshll.u32 %v2163, 8
    %v2204 = vmul.u32.u64.compose %v2203, %v2202
    %v2205 = vextract.low.u32 %v2204
    %v2206 = vextract.high.u32 %v2204
    %v2207 = vmul.u32.u64.compose %v2203, %v2198
    %v2208 = vextract.low.u32 %v2207
    %v2209 = vextract.high.u32 %v2207
    %v2210 = vmul.u32 %v2203, %v2194
    %v2211 = vadd.s32 %v2206, %v2208
    %vm2212 = vc.u32 %v2206, %v2208
    %v2213 = vadd.s32 %v2209, 1
    %v2214 = vsel %vm2212, %v2213, %v2209
    %v2215 = vadd.s32 %v2210, %v2214
    %v2216 = vadd.s32 %v2215, 536870912
    %v2217 = vshrl.u32 %v2216, 30
    %v2218 = vshll.u32 %v2217, 30
    %v2219 = vsub.s32 %v2215, %v2218
    %vm2220 = vcmp.lt.s32.totalorder %v2219, 0
    %v2221 = vsub.s32 0, %v2219
    %v2222 = vsel %vm2220, %v2221, %v2219
    %v2223 = vclz %v2222
    %v2224 = vsub.s32 %v2223, 2
    %vm2225 = vcmp.gt.s32.totalorder 0, %v2224
    %v2226 = vsel %vm2225, 0, %v2224
    %v2227 = vsub.s32 32, %v2226
    %v2228 = vshll.u32 %v2219, %v2226
    %v2229 = vshrl.u32 %v2211, %v2227
    %v2230 = vor.u32 %v2228, %v2229
    %v2231 = vsub.s32 4294967266, %v2226
    %v2232 = vadd.s32 %v2231, 127
    %v2233 = vshll.u32 %v2232, 23
    %v2234 = vor.u32 4788187, %v2233
    %v2235 = vand.u32 2147483647, %v2234
    %v2237 = vcvt.s32.f32 %v2230
    %v2238 = vmul.f32 %v2237, %v2235
    %v2239 = vxor.u32 %v2238, 2147483648
    %v2240 = vsel %vm2157, %v2239, %v2238
    %v2241 = vsub.s32 4, %v2217
    %v2242 = vsel %vm2157, %v2241, %v2217
    %v2243 = vsel %vm2156, %v372, %v2240
    %v2244 = vsel %vm2156, 0, %v2242
    %v2245 = vcosq.f32.pop %v2243
    %v2246 = vsinq.f32.pop %v2243
    %vm2247 = vweird.f32 %v372
    %v2248 = vadd.s32 %v2244, 3
    %v2249 = vand.u32 %v2248, 3
    %vm2250 = vcmp.lt.s32.totalorder %v2249, 2
    %vm2251 = vcmp.eq.s32.totalorder %v2249, 0
    %v2252 = vxor.u32 %v2246, 2147483648
    %v2253 = vsel %vm2251, %v2245, %v2252
    %vm2254 = vcmp.eq.s32.totalorder %v2249, 2
    %v2255 = vxor.u32 %v2245, 2147483648
    %v2256 = vsel %vm2254, %v2255, %v2246
    %v2257 = vsel %vm2250, %v2253, %v2256
    %v2258 = vsel %vm2247, nan, %v2257
    %v2259 = vand.u32 2147483647, %v373
    %vm2260 = vcmp.le.f32.partialorder %v2259, 0.7853982
    %vm2261 = vcmp.lt.s32.totalorder %v373, 0
    %v2262 = vand.u32 %v373, 2139095040
    %v2263 = vshrl.u32 %v2262, 23
    %v2264 = vsub.s32 %v2263, 127
    %v2265 = vand.u32 2147483647, %v373
    %v2266 = vand.u32 %v2265, 8388607
    %v2267 = vor.u32 %v2266, 8388608
    %v2268 = vsub.s32 0, %v2267
    %v2269 = vadd.s32 %v2264, 1
    %vm2270 = vcmp.gt.s32.totalorder %v2269, 0
    %v2271 = vsel %vm2270, %v2269, 0
    %v2272 = vshrl.u32 %v2271, 5
    %v2273 = vand.u32 %v2271, 31
    %v2274 = vsub.s32 32, %v2273
    %v2275 = vshrl.u32 683565275, %v2274
    %v2276 = vshll.u32 683565275, %v2273
    %v2277 = vshrl.u32 2475754826, %v2274
    %v2278 = vor.u32 %v2276, %v2277
    %v2279 = vshll.u32 2475754826, %v2273
    %v2280 = vshrl.u32 2131351028, %v2274
    %v2281 = vor.u32 %v2279, %v2280
    %v2282 = vshll.u32 2131351028, %v2273
    %v2283 = vshrl.u32 2102212464, %v2274
    %v2284 = vor.u32 %v2282, %v2283
    %v2285 = vshll.u32 2102212464, %v2273
    %v2286 = vshrl.u32 920167782, %v2274
    %v2287 = vor.u32 %v2285, %v2286
    %v2288 = vshll.u32 920167782, %v2273
    %v2289 = vshrl.u32 1326507024, %v2274
    %v2290 = vor.u32 %v2288, %v2289
    %vm2291 = vcmp.lt.s32.totalorder %v2272, 1
    %vm2292 = vcmp.lt.s32.totalorder %v2272, 2
    %vm2293 = vcmp.lt.s32.totalorder %v2272, 3
    %vm2294 = vcmp.lt.s32.totalorder %v2272, 4
    %v2295 = vsel %vm2291, %v2275, %v2278
    %v2296 = vsel %vm2294, %v2284, 2102212464
    %v2297 = vsel %vm2293, %v2281, %v2296
    %v2298 = vsel %vm2292, %v2295, %v2297
    %v2299 = vsel %vm2291, %v2278, %v2281
    %v2300 = vsel %vm2294, %v2287, 920167782
    %v2301 = vsel %vm2293, %v2284, %v2300
    %v2302 = vsel %vm2292, %v2299, %v2301
    %v2303 = vsel %vm2291, %v2281, %v2284
    %v2304 = vsel %vm2294, %v2290, 1326507024
    %v2305 = vsel %vm2293, %v2287, %v2304
    %v2306 = vsel %vm2292, %v2303, %v2305
    %v2307 = vshll.u32 %v2267, 8
    %v2308 = vmul.u32.u64.compose %v2307, %v2306
    %v2309 = vextract.low.u32 %v2308
    %v2310 = vextract.high.u32 %v2308
    %v2311 = vmul.u32.u64.compose %v2307, %v2302
    %v2312 = vextract.low.u32 %v2311
    %v2313 = vextract.high.u32 %v2311
    %v2314 = vmul.u32 %v2307, %v2298
    %v2315 = vadd.s32 %v2310, %v2312
    %vm2316 = vc.u32 %v2310, %v2312
    %v2317 = vadd.s32 %v2313, 1
    %v2318 = vsel %vm2316, %v2317, %v2313
    %v2319 = vadd.s32 %v2314, %v2318
    %v2320 = vadd.s32 %v2319, 536870912
    %v2321 = vshrl.u32 %v2320, 30
    %v2322 = vshll.u32 %v2321, 30
    %v2323 = vsub.s32 %v2319, %v2322
    %vm2324 = vcmp.lt.s32.totalorder %v2323, 0
    %v2325 = vsub.s32 0, %v2323
    %v2326 = vsel %vm2324, %v2325, %v2323
    %v2327 = vclz %v2326
    %v2328 = vsub.s32 %v2327, 2
    %vm2329 = vcmp.gt.s32.totalorder 0, %v2328
    %v2330 = vsel %vm2329, 0, %v2328
    %v2331 = vsub.s32 32, %v2330
    %v2332 = vshll.u32 %v2323, %v2330
    %v2333 = vshrl.u32 %v2315, %v2331
    %v2334 = vor.u32 %v2332, %v2333
    %v2335 = vsub.s32 4294967266, %v2330
    %v2336 = vadd.s32 %v2335, 127
    %v2337 = vshll.u32 %v2336, 23
    %v2338 = vor.u32 4788187, %v2337
    %v2339 = vand.u32 2147483647, %v2338
    %v2341 = vcvt.s32.f32 %v2334
    %v2342 = vmul.f32 %v2341, %v2339
    %v2343 = vxor.u32 %v2342, 2147483648
    %v2344 = vsel %vm2261, %v2343, %v2342
    %v2345 = vsub.s32 4, %v2321
    %v2346 = vsel %vm2261, %v2345, %v2321
    %v2347 = vsel %vm2260, %v373, %v2344
    %v2348 = vsel %vm2260, 0, %v2346
    %v2349 = vcosq.f32.pop %v2347
    %v2350 = vsinq.f32.pop %v2347
    %vm2351 = vweird.f32 %v373
    %v2352 = vadd.s32 %v2348, 3
    %v2353 = vand.u32 %v2352, 3
    %vm2354 = vcmp.lt.s32.totalorder %v2353, 2
    %vm2355 = vcmp.eq.s32.totalorder %v2353, 0
    %v2356 = vxor.u32 %v2350, 2147483648
    %v2357 = vsel %vm2355, %v2349, %v2356
    %vm2358 = vcmp.eq.s32.totalorder %v2353, 2
    %v2359 = vxor.u32 %v2349, 2147483648
    %v2360 = vsel %vm2358, %v2359, %v2350
    %v2361 = vsel %vm2354, %v2357, %v2360
    %v2362 = vsel %vm2351, nan, %v2361
    %v2363 = vand.u32 2147483647, %v374
    %vm2364 = vcmp.le.f32.partialorder %v2363, 0.7853982
    %vm2365 = vcmp.lt.s32.totalorder %v374, 0
    %v2366 = vand.u32 %v374, 2139095040
    %v2367 = vshrl.u32 %v2366, 23
    %v2368 = vsub.s32 %v2367, 127
    %v2369 = vand.u32 2147483647, %v374
    %v2370 = vand.u32 %v2369, 8388607
    %v2371 = vor.u32 %v2370, 8388608
    %v2372 = vsub.s32 0, %v2371
    %v2373 = vadd.s32 %v2368, 1
    %vm2374 = vcmp.gt.s32.totalorder %v2373, 0
    %v2375 = vsel %vm2374, %v2373, 0
    %v2376 = vshrl.u32 %v2375, 5
    %v2377 = vand.u32 %v2375, 31
    %v2378 = vsub.s32 32, %v2377
    %v2379 = vshrl.u32 683565275, %v2378
    %v2380 = vshll.u32 683565275, %v2377
    %v2381 = vshrl.u32 2475754826, %v2378
    %v2382 = vor.u32 %v2380, %v2381
    %v2383 = vshll.u32 2475754826, %v2377
    %v2384 = vshrl.u32 2131351028, %v2378
    %v2385 = vor.u32 %v2383, %v2384
    %v2386 = vshll.u32 2131351028, %v2377
    %v2387 = vshrl.u32 2102212464, %v2378
    %v2388 = vor.u32 %v2386, %v2387
    %v2389 = vshll.u32 2102212464, %v2377
    %v2390 = vshrl.u32 920167782, %v2378
    %v2391 = vor.u32 %v2389, %v2390
    %v2392 = vshll.u32 920167782, %v2377
    %v2393 = vshrl.u32 1326507024, %v2378
    %v2394 = vor.u32 %v2392, %v2393
    %vm2395 = vcmp.lt.s32.totalorder %v2376, 1
    %vm2396 = vcmp.lt.s32.totalorder %v2376, 2
    %vm2397 = vcmp.lt.s32.totalorder %v2376, 3
    %vm2398 = vcmp.lt.s32.totalorder %v2376, 4
    %v2399 = vsel %vm2395, %v2379, %v2382
    %v2400 = vsel %vm2398, %v2388, 2102212464
    %v2401 = vsel %vm2397, %v2385, %v2400
    %v2402 = vsel %vm2396, %v2399, %v2401
    %v2403 = vsel %vm2395, %v2382, %v2385
    %v2404 = vsel %vm2398, %v2391, 920167782
    %v2405 = vsel %vm2397, %v2388, %v2404
    %v2406 = vsel %vm2396, %v2403, %v2405
    %v2407 = vsel %vm2395, %v2385, %v2388
    %v2408 = vsel %vm2398, %v2394, 1326507024
    %v2409 = vsel %vm2397, %v2391, %v2408
    %v2410 = vsel %vm2396, %v2407, %v2409
    %v2411 = vshll.u32 %v2371, 8
    %v2412 = vmul.u32.u64.compose %v2411, %v2410
    %v2413 = vextract.low.u32 %v2412
    %v2414 = vextract.high.u32 %v2412
    %v2415 = vmul.u32.u64.compose %v2411, %v2406
    %v2416 = vextract.low.u32 %v2415
    %v2417 = vextract.high.u32 %v2415
    %v2418 = vmul.u32 %v2411, %v2402
    %v2419 = vadd.s32 %v2414, %v2416
    %vm2420 = vc.u32 %v2414, %v2416
    %v2421 = vadd.s32 %v2417, 1
    %v2422 = vsel %vm2420, %v2421, %v2417
    %v2423 = vadd.s32 %v2418, %v2422
    %v2424 = vadd.s32 %v2423, 536870912
    %v2425 = vshrl.u32 %v2424, 30
    %v2426 = vshll.u32 %v2425, 30
    %v2427 = vsub.s32 %v2423, %v2426
    %vm2428 = vcmp.lt.s32.totalorder %v2427, 0
    %v2429 = vsub.s32 0, %v2427
    %v2430 = vsel %vm2428, %v2429, %v2427
    %v2431 = vclz %v2430
    %v2432 = vsub.s32 %v2431, 2
    %vm2433 = vcmp.gt.s32.totalorder 0, %v2432
    %v2434 = vsel %vm2433, 0, %v2432
    %v2435 = vsub.s32 32, %v2434
    %v2436 = vshll.u32 %v2427, %v2434
    %v2437 = vshrl.u32 %v2419, %v2435
    %v2438 = vor.u32 %v2436, %v2437
    %v2439 = vsub.s32 4294967266, %v2434
    %v2440 = vadd.s32 %v2439, 127
    %v2441 = vshll.u32 %v2440, 23
    %v2442 = vor.u32 4788187, %v2441
    %v2443 = vand.u32 2147483647, %v2442
    %v2445 = vcvt.s32.f32 %v2438
    %v2446 = vmul.f32 %v2445, %v2443
    %v2447 = vxor.u32 %v2446, 2147483648
    %v2448 = vsel %vm2365, %v2447, %v2446
    %v2449 = vsub.s32 4, %v2425
    %v2450 = vsel %vm2365, %v2449, %v2425
    %v2451 = vsel %vm2364, %v374, %v2448
    %v2452 = vsel %vm2364, 0, %v2450
    %v2453 = vcosq.f32.pop %v2451
    %v2454 = vsinq.f32.pop %v2451
    %vm2455 = vweird.f32 %v374
    %v2456 = vadd.s32 %v2452, 3
    %v2457 = vand.u32 %v2456, 3
    %vm2458 = vcmp.lt.s32.totalorder %v2457, 2
    %vm2459 = vcmp.eq.s32.totalorder %v2457, 0
    %v2460 = vxor.u32 %v2454, 2147483648
    %v2461 = vsel %vm2459, %v2453, %v2460
    %vm2462 = vcmp.eq.s32.totalorder %v2457, 2
    %v2463 = vxor.u32 %v2453, 2147483648
    %v2464 = vsel %vm2462, %v2463, %v2454
    %v2465 = vsel %vm2458, %v2461, %v2464
    %v2466 = vsel %vm2455, nan, %v2465
    %v2467 = vand.u32 2147483647, %v375
    %vm2468 = vcmp.le.f32.partialorder %v2467, 0.7853982
    %vm2469 = vcmp.lt.s32.totalorder %v375, 0
    %v2470 = vand.u32 %v375, 2139095040
    %v2471 = vshrl.u32 %v2470, 23
    %v2472 = vsub.s32 %v2471, 127
    %v2473 = vand.u32 2147483647, %v375
    %v2474 = vand.u32 %v2473, 8388607
    %v2475 = vor.u32 %v2474, 8388608
    %v2476 = vsub.s32 0, %v2475
    %v2477 = vadd.s32 %v2472, 1
    %vm2478 = vcmp.gt.s32.totalorder %v2477, 0
    %v2479 = vsel %vm2478, %v2477, 0
    %v2480 = vshrl.u32 %v2479, 5
    %v2481 = vand.u32 %v2479, 31
    %v2482 = vsub.s32 32, %v2481
    %v2483 = vshrl.u32 683565275, %v2482
    %v2484 = vshll.u32 683565275, %v2481
    %v2485 = vshrl.u32 2475754826, %v2482
    %v2486 = vor.u32 %v2484, %v2485
    %v2487 = vshll.u32 2475754826, %v2481
    %v2488 = vshrl.u32 2131351028, %v2482
    %v2489 = vor.u32 %v2487, %v2488
    %v2490 = vshll.u32 2131351028, %v2481
    %v2491 = vshrl.u32 2102212464, %v2482
    %v2492 = vor.u32 %v2490, %v2491
    %v2493 = vshll.u32 2102212464, %v2481
    %v2494 = vshrl.u32 920167782, %v2482
    %v2495 = vor.u32 %v2493, %v2494
    %v2496 = vshll.u32 920167782, %v2481
    %v2497 = vshrl.u32 1326507024, %v2482
    %v2498 = vor.u32 %v2496, %v2497
    %vm2499 = vcmp.lt.s32.totalorder %v2480, 1
    %vm2500 = vcmp.lt.s32.totalorder %v2480, 2
    %vm2501 = vcmp.lt.s32.totalorder %v2480, 3
    %vm2502 = vcmp.lt.s32.totalorder %v2480, 4
    %v2503 = vsel %vm2499, %v2483, %v2486
    %v2504 = vsel %vm2502, %v2492, 2102212464
    %v2505 = vsel %vm2501, %v2489, %v2504
    %v2506 = vsel %vm2500, %v2503, %v2505
    %v2507 = vsel %vm2499, %v2486, %v2489
    %v2508 = vsel %vm2502, %v2495, 920167782
    %v2509 = vsel %vm2501, %v2492, %v2508
    %v2510 = vsel %vm2500, %v2507, %v2509
    %v2511 = vsel %vm2499, %v2489, %v2492
    %v2512 = vsel %vm2502, %v2498, 1326507024
    %v2513 = vsel %vm2501, %v2495, %v2512
    %v2514 = vsel %vm2500, %v2511, %v2513
    %v2515 = vshll.u32 %v2475, 8
    %v2516 = vmul.u32.u64.compose %v2515, %v2514
    %v2517 = vextract.low.u32 %v2516
    %v2518 = vextract.high.u32 %v2516
    %v2519 = vmul.u32.u64.compose %v2515, %v2510
    %v2520 = vextract.low.u32 %v2519
    %v2521 = vextract.high.u32 %v2519
    %v2522 = vmul.u32 %v2515, %v2506
    %v2523 = vadd.s32 %v2518, %v2520
    %vm2524 = vc.u32 %v2518, %v2520
    %v2525 = vadd.s32 %v2521, 1
    %v2526 = vsel %vm2524, %v2525, %v2521
    %v2527 = vadd.s32 %v2522, %v2526
    %v2528 = vadd.s32 %v2527, 536870912
    %v2529 = vshrl.u32 %v2528, 30
    %v2530 = vshll.u32 %v2529, 30
    %v2531 = vsub.s32 %v2527, %v2530
    %vm2532 = vcmp.lt.s32.totalorder %v2531, 0
    %v2533 = vsub.s32 0, %v2531
    %v2534 = vsel %vm2532, %v2533, %v2531
    %v2535 = vclz %v2534
    %v2536 = vsub.s32 %v2535, 2
    %vm2537 = vcmp.gt.s32.totalorder 0, %v2536
    %v2538 = vsel %vm2537, 0, %v2536
    %v2539 = vsub.s32 32, %v2538
    %v2540 = vshll.u32 %v2531, %v2538
    %v2541 = vshrl.u32 %v2523, %v2539
    %v2542 = vor.u32 %v2540, %v2541
    %v2543 = vsub.s32 4294967266, %v2538
    %v2544 = vadd.s32 %v2543, 127
    %v2545 = vshll.u32 %v2544, 23
    %v2546 = vor.u32 4788187, %v2545
    %v2547 = vand.u32 2147483647, %v2546
    %v2549 = vcvt.s32.f32 %v2542
    %v2550 = vmul.f32 %v2549, %v2547
    %v2551 = vxor.u32 %v2550, 2147483648
    %v2552 = vsel %vm2469, %v2551, %v2550
    %v2553 = vsub.s32 4, %v2529
    %v2554 = vsel %vm2469, %v2553, %v2529
    %v2555 = vsel %vm2468, %v375, %v2552
    %v2556 = vsel %vm2468, 0, %v2554
    %v2557 = vcosq.f32.pop %v2555
    %v2558 = vsinq.f32.pop %v2555
    %vm2559 = vweird.f32 %v375
    %v2560 = vadd.s32 %v2556, 3
    %v2561 = vand.u32 %v2560, 3
    %vm2562 = vcmp.lt.s32.totalorder %v2561, 2
    %vm2563 = vcmp.eq.s32.totalorder %v2561, 0
    %v2564 = vxor.u32 %v2558, 2147483648
    %v2565 = vsel %vm2563, %v2557, %v2564
    %vm2566 = vcmp.eq.s32.totalorder %v2561, 2
    %v2567 = vxor.u32 %v2557, 2147483648
    %v2568 = vsel %vm2566, %v2567, %v2558
    %v2569 = vsel %vm2562, %v2565, %v2568
    %v2570 = vsel %vm2559, nan, %v2569
    %v2571 = vand.u32 2147483647, %v376
    %vm2572 = vcmp.le.f32.partialorder %v2571, 0.7853982
    %vm2573 = vcmp.lt.s32.totalorder %v376, 0
    %v2574 = vand.u32 %v376, 2139095040
    %v2575 = vshrl.u32 %v2574, 23
    %v2576 = vsub.s32 %v2575, 127
    %v2577 = vand.u32 2147483647, %v376
    %v2578 = vand.u32 %v2577, 8388607
    %v2579 = vor.u32 %v2578, 8388608
    %v2580 = vsub.s32 0, %v2579
    %v2581 = vadd.s32 %v2576, 1
    %vm2582 = vcmp.gt.s32.totalorder %v2581, 0
    %v2583 = vsel %vm2582, %v2581, 0
    %v2584 = vshrl.u32 %v2583, 5
    %v2585 = vand.u32 %v2583, 31
    %v2586 = vsub.s32 32, %v2585
    %v2587 = vshrl.u32 683565275, %v2586
    %v2588 = vshll.u32 683565275, %v2585
    %v2589 = vshrl.u32 2475754826, %v2586
    %v2590 = vor.u32 %v2588, %v2589
    %v2591 = vshll.u32 2475754826, %v2585
    %v2592 = vshrl.u32 2131351028, %v2586
    %v2593 = vor.u32 %v2591, %v2592
    %v2594 = vshll.u32 2131351028, %v2585
    %v2595 = vshrl.u32 2102212464, %v2586
    %v2596 = vor.u32 %v2594, %v2595
    %v2597 = vshll.u32 2102212464, %v2585
    %v2598 = vshrl.u32 920167782, %v2586
    %v2599 = vor.u32 %v2597, %v2598
    %v2600 = vshll.u32 920167782, %v2585
    %v2601 = vshrl.u32 1326507024, %v2586
    %v2602 = vor.u32 %v2600, %v2601
    %vm2603 = vcmp.lt.s32.totalorder %v2584, 1
    %vm2604 = vcmp.lt.s32.totalorder %v2584, 2
    %vm2605 = vcmp.lt.s32.totalorder %v2584, 3
    %vm2606 = vcmp.lt.s32.totalorder %v2584, 4
    %v2607 = vsel %vm2603, %v2587, %v2590
    %v2608 = vsel %vm2606, %v2596, 2102212464
    %v2609 = vsel %vm2605, %v2593, %v2608
    %v2610 = vsel %vm2604, %v2607, %v2609
    %v2611 = vsel %vm2603, %v2590, %v2593
    %v2612 = vsel %vm2606, %v2599, 920167782
    %v2613 = vsel %vm2605, %v2596, %v2612
    %v2614 = vsel %vm2604, %v2611, %v2613
    %v2615 = vsel %vm2603, %v2593, %v2596
    %v2616 = vsel %vm2606, %v2602, 1326507024
    %v2617 = vsel %vm2605, %v2599, %v2616
    %v2618 = vsel %vm2604, %v2615, %v2617
    %v2619 = vshll.u32 %v2579, 8
    %v2620 = vmul.u32.u64.compose %v2619, %v2618
    %v2621 = vextract.low.u32 %v2620
    %v2622 = vextract.high.u32 %v2620
    %v2623 = vmul.u32.u64.compose %v2619, %v2614
    %v2624 = vextract.low.u32 %v2623
    %v2625 = vextract.high.u32 %v2623
    %v2626 = vmul.u32 %v2619, %v2610
    %v2627 = vadd.s32 %v2622, %v2624
    %vm2628 = vc.u32 %v2622, %v2624
    %v2629 = vadd.s32 %v2625, 1
    %v2630 = vsel %vm2628, %v2629, %v2625
    %v2631 = vadd.s32 %v2626, %v2630
    %v2632 = vadd.s32 %v2631, 536870912
    %v2633 = vshrl.u32 %v2632, 30
    %v2634 = vshll.u32 %v2633, 30
    %v2635 = vsub.s32 %v2631, %v2634
    %vm2636 = vcmp.lt.s32.totalorder %v2635, 0
    %v2637 = vsub.s32 0, %v2635
    %v2638 = vsel %vm2636, %v2637, %v2635
    %v2639 = vclz %v2638
    %v2640 = vsub.s32 %v2639, 2
    %vm2641 = vcmp.gt.s32.totalorder 0, %v2640
    %v2642 = vsel %vm2641, 0, %v2640
    %v2643 = vsub.s32 32, %v2642
    %v2644 = vshll.u32 %v2635, %v2642
    %v2645 = vshrl.u32 %v2627, %v2643
    %v2646 = vor.u32 %v2644, %v2645
    %v2647 = vsub.s32 4294967266, %v2642
    %v2648 = vadd.s32 %v2647, 127
    %v2649 = vshll.u32 %v2648, 23
    %v2650 = vor.u32 4788187, %v2649
    %v2651 = vand.u32 2147483647, %v2650
    %v2653 = vcvt.s32.f32 %v2646
    %v2654 = vmul.f32 %v2653, %v2651
    %v2655 = vxor.u32 %v2654, 2147483648
    %v2656 = vsel %vm2573, %v2655, %v2654
    %v2657 = vsub.s32 4, %v2633
    %v2658 = vsel %vm2573, %v2657, %v2633
    %v2659 = vsel %vm2572, %v376, %v2656
    %v2660 = vsel %vm2572, 0, %v2658
    %v2661 = vcosq.f32.pop %v2659
    %v2662 = vsinq.f32.pop %v2659
    %vm2663 = vweird.f32 %v376
    %v2664 = vadd.s32 %v2660, 3
    %v2665 = vand.u32 %v2664, 3
    %vm2666 = vcmp.lt.s32.totalorder %v2665, 2
    %vm2667 = vcmp.eq.s32.totalorder %v2665, 0
    %v2668 = vxor.u32 %v2662, 2147483648
    %v2669 = vsel %vm2667, %v2661, %v2668
    %vm2670 = vcmp.eq.s32.totalorder %v2665, 2
    %v2671 = vxor.u32 %v2661, 2147483648
    %v2672 = vsel %vm2670, %v2671, %v2662
    %v2673 = vsel %vm2666, %v2669, %v2672
    %v2674 = vsel %vm2663, nan, %v2673
    %v2675 = vand.u32 2147483647, %v377
    %vm2676 = vcmp.le.f32.partialorder %v2675, 0.7853982
    %vm2677 = vcmp.lt.s32.totalorder %v377, 0
    %v2678 = vand.u32 %v377, 2139095040
    %v2679 = vshrl.u32 %v2678, 23
    %v2680 = vsub.s32 %v2679, 127
    %v2681 = vand.u32 2147483647, %v377
    %v2682 = vand.u32 %v2681, 8388607
    %v2683 = vor.u32 %v2682, 8388608
    %v2684 = vsub.s32 0, %v2683
    %v2685 = vadd.s32 %v2680, 1
    %vm2686 = vcmp.gt.s32.totalorder %v2685, 0
    %v2687 = vsel %vm2686, %v2685, 0
    %v2688 = vshrl.u32 %v2687, 5
    %v2689 = vand.u32 %v2687, 31
    %v2690 = vsub.s32 32, %v2689
    %v2691 = vshrl.u32 683565275, %v2690
    %v2692 = vshll.u32 683565275, %v2689
    %v2693 = vshrl.u32 2475754826, %v2690
    %v2694 = vor.u32 %v2692, %v2693
    %v2695 = vshll.u32 2475754826, %v2689
    %v2696 = vshrl.u32 2131351028, %v2690
    %v2697 = vor.u32 %v2695, %v2696
    %v2698 = vshll.u32 2131351028, %v2689
    %v2699 = vshrl.u32 2102212464, %v2690
    %v2700 = vor.u32 %v2698, %v2699
    %v2701 = vshll.u32 2102212464, %v2689
    %v2702 = vshrl.u32 920167782, %v2690
    %v2703 = vor.u32 %v2701, %v2702
    %v2704 = vshll.u32 920167782, %v2689
    %v2705 = vshrl.u32 1326507024, %v2690
    %v2706 = vor.u32 %v2704, %v2705
    %vm2707 = vcmp.lt.s32.totalorder %v2688, 1
    %vm2708 = vcmp.lt.s32.totalorder %v2688, 2
    %vm2709 = vcmp.lt.s32.totalorder %v2688, 3
    %vm2710 = vcmp.lt.s32.totalorder %v2688, 4
    %v2711 = vsel %vm2707, %v2691, %v2694
    %v2712 = vsel %vm2710, %v2700, 2102212464
    %v2713 = vsel %vm2709, %v2697, %v2712
    %v2714 = vsel %vm2708, %v2711, %v2713
    %v2715 = vsel %vm2707, %v2694, %v2697
    %v2716 = vsel %vm2710, %v2703, 920167782
    %v2717 = vsel %vm2709, %v2700, %v2716
    %v2718 = vsel %vm2708, %v2715, %v2717
    %v2719 = vsel %vm2707, %v2697, %v2700
    %v2720 = vsel %vm2710, %v2706, 1326507024
    %v2721 = vsel %vm2709, %v2703, %v2720
    %v2722 = vsel %vm2708, %v2719, %v2721
    %v2723 = vshll.u32 %v2683, 8
    %v2724 = vmul.u32.u64.compose %v2723, %v2722
    %v2725 = vextract.low.u32 %v2724
    %v2726 = vextract.high.u32 %v2724
    %v2727 = vmul.u32.u64.compose %v2723, %v2718
    %v2728 = vextract.low.u32 %v2727
    %v2729 = vextract.high.u32 %v2727
    %v2730 = vmul.u32 %v2723, %v2714
    %v2731 = vadd.s32 %v2726, %v2728
    %vm2732 = vc.u32 %v2726, %v2728
    %v2733 = vadd.s32 %v2729, 1
    %v2734 = vsel %vm2732, %v2733, %v2729
    %v2735 = vadd.s32 %v2730, %v2734
    %v2736 = vadd.s32 %v2735, 536870912
    %v2737 = vshrl.u32 %v2736, 30
    %v2738 = vshll.u32 %v2737, 30
    %v2739 = vsub.s32 %v2735, %v2738
    %vm2740 = vcmp.lt.s32.totalorder %v2739, 0
    %v2741 = vsub.s32 0, %v2739
    %v2742 = vsel %vm2740, %v2741, %v2739
    %v2743 = vclz %v2742
    %v2744 = vsub.s32 %v2743, 2
    %vm2745 = vcmp.gt.s32.totalorder 0, %v2744
    %v2746 = vsel %vm2745, 0, %v2744
    %v2747 = vsub.s32 32, %v2746
    %v2748 = vshll.u32 %v2739, %v2746
    %v2749 = vshrl.u32 %v2731, %v2747
    %v2750 = vor.u32 %v2748, %v2749
    %v2751 = vsub.s32 4294967266, %v2746
    %v2752 = vadd.s32 %v2751, 127
    %v2753 = vshll.u32 %v2752, 23
    %v2754 = vor.u32 4788187, %v2753
    %v2755 = vand.u32 2147483647, %v2754
    %v2757 = vcvt.s32.f32 %v2750
    %v2758 = vmul.f32 %v2757, %v2755
    %v2759 = vxor.u32 %v2758, 2147483648
    %v2760 = vsel %vm2677, %v2759, %v2758
    %v2761 = vsub.s32 4, %v2737
    %v2762 = vsel %vm2677, %v2761, %v2737
    %v2763 = vsel %vm2676, %v377, %v2760
    %v2764 = vsel %vm2676, 0, %v2762
    %v2765 = vcosq.f32.pop %v2763
    %v2766 = vsinq.f32.pop %v2763
    %vm2767 = vweird.f32 %v377
    %v2768 = vadd.s32 %v2764, 3
    %v2769 = vand.u32 %v2768, 3
    %vm2770 = vcmp.lt.s32.totalorder %v2769, 2
    %vm2771 = vcmp.eq.s32.totalorder %v2769, 0
    %v2772 = vxor.u32 %v2766, 2147483648
    %v2773 = vsel %vm2771, %v2765, %v2772
    %vm2774 = vcmp.eq.s32.totalorder %v2769, 2
    %v2775 = vxor.u32 %v2765, 2147483648
    %v2776 = vsel %vm2774, %v2775, %v2766
    %v2777 = vsel %vm2770, %v2773, %v2776
    %v2778 = vsel %vm2767, nan, %v2777
    %v2779 = vand.u32 2147483647, %v378
    %vm2780 = vcmp.le.f32.partialorder %v2779, 0.7853982
    %vm2781 = vcmp.lt.s32.totalorder %v378, 0
    %v2782 = vand.u32 %v378, 2139095040
    %v2783 = vshrl.u32 %v2782, 23
    %v2784 = vsub.s32 %v2783, 127
    %v2785 = vand.u32 2147483647, %v378
    %v2786 = vand.u32 %v2785, 8388607
    %v2787 = vor.u32 %v2786, 8388608
    %v2788 = vsub.s32 0, %v2787
    %v2789 = vadd.s32 %v2784, 1
    %vm2790 = vcmp.gt.s32.totalorder %v2789, 0
    %v2791 = vsel %vm2790, %v2789, 0
    %v2792 = vshrl.u32 %v2791, 5
    %v2793 = vand.u32 %v2791, 31
    %v2794 = vsub.s32 32, %v2793
    %v2795 = vshrl.u32 683565275, %v2794
    %v2796 = vshll.u32 683565275, %v2793
    %v2797 = vshrl.u32 2475754826, %v2794
    %v2798 = vor.u32 %v2796, %v2797
    %v2799 = vshll.u32 2475754826, %v2793
    %v2800 = vshrl.u32 2131351028, %v2794
    %v2801 = vor.u32 %v2799, %v2800
    %v2802 = vshll.u32 2131351028, %v2793
    %v2803 = vshrl.u32 2102212464, %v2794
    %v2804 = vor.u32 %v2802, %v2803
    %v2805 = vshll.u32 2102212464, %v2793
    %v2806 = vshrl.u32 920167782, %v2794
    %v2807 = vor.u32 %v2805, %v2806
    %v2808 = vshll.u32 920167782, %v2793
    %v2809 = vshrl.u32 1326507024, %v2794
    %v2810 = vor.u32 %v2808, %v2809
    %vm2811 = vcmp.lt.s32.totalorder %v2792, 1
    %vm2812 = vcmp.lt.s32.totalorder %v2792, 2
    %vm2813 = vcmp.lt.s32.totalorder %v2792, 3
    %vm2814 = vcmp.lt.s32.totalorder %v2792, 4
    %v2815 = vsel %vm2811, %v2795, %v2798
    %v2816 = vsel %vm2814, %v2804, 2102212464
    %v2817 = vsel %vm2813, %v2801, %v2816
    %v2818 = vsel %vm2812, %v2815, %v2817
    %v2819 = vsel %vm2811, %v2798, %v2801
    %v2820 = vsel %vm2814, %v2807, 920167782
    %v2821 = vsel %vm2813, %v2804, %v2820
    %v2822 = vsel %vm2812, %v2819, %v2821
    %v2823 = vsel %vm2811, %v2801, %v2804
    %v2824 = vsel %vm2814, %v2810, 1326507024
    %v2825 = vsel %vm2813, %v2807, %v2824
    %v2826 = vsel %vm2812, %v2823, %v2825
    %v2827 = vshll.u32 %v2787, 8
    %v2828 = vmul.u32.u64.compose %v2827, %v2826
    %v2829 = vextract.low.u32 %v2828
    %v2830 = vextract.high.u32 %v2828
    %v2831 = vmul.u32.u64.compose %v2827, %v2822
    %v2832 = vextract.low.u32 %v2831
    %v2833 = vextract.high.u32 %v2831
    %v2834 = vmul.u32 %v2827, %v2818
    %v2835 = vadd.s32 %v2830, %v2832
    %vm2836 = vc.u32 %v2830, %v2832
    %v2837 = vadd.s32 %v2833, 1
    %v2838 = vsel %vm2836, %v2837, %v2833
    %v2839 = vadd.s32 %v2834, %v2838
    %v2840 = vadd.s32 %v2839, 536870912
    %v2841 = vshrl.u32 %v2840, 30
    %v2842 = vshll.u32 %v2841, 30
    %v2843 = vsub.s32 %v2839, %v2842
    %vm2844 = vcmp.lt.s32.totalorder %v2843, 0
    %v2845 = vsub.s32 0, %v2843
    %v2846 = vsel %vm2844, %v2845, %v2843
    %v2847 = vclz %v2846
    %v2848 = vsub.s32 %v2847, 2
    %vm2849 = vcmp.gt.s32.totalorder 0, %v2848
    %v2850 = vsel %vm2849, 0, %v2848
    %v2851 = vsub.s32 32, %v2850
    %v2852 = vshll.u32 %v2843, %v2850
    %v2853 = vshrl.u32 %v2835, %v2851
    %v2854 = vor.u32 %v2852, %v2853
    %v2855 = vsub.s32 4294967266, %v2850
    %v2856 = vadd.s32 %v2855, 127
    %v2857 = vshll.u32 %v2856, 23
    %v2858 = vor.u32 4788187, %v2857
    %v2859 = vand.u32 2147483647, %v2858
    %v2861 = vcvt.s32.f32 %v2854
    %v2862 = vmul.f32 %v2861, %v2859
    %v2863 = vxor.u32 %v2862, 2147483648
    %v2864 = vsel %vm2781, %v2863, %v2862
    %v2865 = vsub.s32 4, %v2841
    %v2866 = vsel %vm2781, %v2865, %v2841
    %v2867 = vsel %vm2780, %v378, %v2864
    %v2868 = vsel %vm2780, 0, %v2866
    %v2869 = vcosq.f32.pop %v2867
    %v2870 = vsinq.f32.pop %v2867
    %vm2871 = vweird.f32 %v378
    %v2872 = vadd.s32 %v2868, 3
    %v2873 = vand.u32 %v2872, 3
    %vm2874 = vcmp.lt.s32.totalorder %v2873, 2
    %vm2875 = vcmp.eq.s32.totalorder %v2873, 0
    %v2876 = vxor.u32 %v2870, 2147483648
    %v2877 = vsel %vm2875, %v2869, %v2876
    %vm2878 = vcmp.eq.s32.totalorder %v2873, 2
    %v2879 = vxor.u32 %v2869, 2147483648
    %v2880 = vsel %vm2878, %v2879, %v2870
    %v2881 = vsel %vm2874, %v2877, %v2880
    %v2882 = vsel %vm2871, nan, %v2881
    %v2883 = vand.u32 2147483647, %v379
    %vm2884 = vcmp.le.f32.partialorder %v2883, 0.7853982
    %vm2885 = vcmp.lt.s32.totalorder %v379, 0
    %v2886 = vand.u32 %v379, 2139095040
    %v2887 = vshrl.u32 %v2886, 23
    %v2888 = vsub.s32 %v2887, 127
    %v2889 = vand.u32 2147483647, %v379
    %v2890 = vand.u32 %v2889, 8388607
    %v2891 = vor.u32 %v2890, 8388608
    %v2892 = vsub.s32 0, %v2891
    %v2893 = vadd.s32 %v2888, 1
    %vm2894 = vcmp.gt.s32.totalorder %v2893, 0
    %v2895 = vsel %vm2894, %v2893, 0
    %v2896 = vshrl.u32 %v2895, 5
    %v2897 = vand.u32 %v2895, 31
    %v2898 = vsub.s32 32, %v2897
    %v2899 = vshrl.u32 683565275, %v2898
    %v2900 = vshll.u32 683565275, %v2897
    %v2901 = vshrl.u32 2475754826, %v2898
    %v2902 = vor.u32 %v2900, %v2901
    %v2903 = vshll.u32 2475754826, %v2897
    %v2904 = vshrl.u32 2131351028, %v2898
    %v2905 = vor.u32 %v2903, %v2904
    %v2906 = vshll.u32 2131351028, %v2897
    %v2907 = vshrl.u32 2102212464, %v2898
    %v2908 = vor.u32 %v2906, %v2907
    %v2909 = vshll.u32 2102212464, %v2897
    %v2910 = vshrl.u32 920167782, %v2898
    %v2911 = vor.u32 %v2909, %v2910
    %v2912 = vshll.u32 920167782, %v2897
    %v2913 = vshrl.u32 1326507024, %v2898
    %v2914 = vor.u32 %v2912, %v2913
    %vm2915 = vcmp.lt.s32.totalorder %v2896, 1
    %vm2916 = vcmp.lt.s32.totalorder %v2896, 2
    %vm2917 = vcmp.lt.s32.totalorder %v2896, 3
    %vm2918 = vcmp.lt.s32.totalorder %v2896, 4
    %v2919 = vsel %vm2915, %v2899, %v2902
    %v2920 = vsel %vm2918, %v2908, 2102212464
    %v2921 = vsel %vm2917, %v2905, %v2920
    %v2922 = vsel %vm2916, %v2919, %v2921
    %v2923 = vsel %vm2915, %v2902, %v2905
    %v2924 = vsel %vm2918, %v2911, 920167782
    %v2925 = vsel %vm2917, %v2908, %v2924
    %v2926 = vsel %vm2916, %v2923, %v2925
    %v2927 = vsel %vm2915, %v2905, %v2908
    %v2928 = vsel %vm2918, %v2914, 1326507024
    %v2929 = vsel %vm2917, %v2911, %v2928
    %v2930 = vsel %vm2916, %v2927, %v2929
    %v2931 = vshll.u32 %v2891, 8
    %v2932 = vmul.u32.u64.compose %v2931, %v2930
    %v2933 = vextract.low.u32 %v2932
    %v2934 = vextract.high.u32 %v2932
    %v2935 = vmul.u32.u64.compose %v2931, %v2926
    %v2936 = vextract.low.u32 %v2935
    %v2937 = vextract.high.u32 %v2935
    %v2938 = vmul.u32 %v2931, %v2922
    %v2939 = vadd.s32 %v2934, %v2936
    %vm2940 = vc.u32 %v2934, %v2936
    %v2941 = vadd.s32 %v2937, 1
    %v2942 = vsel %vm2940, %v2941, %v2937
    %v2943 = vadd.s32 %v2938, %v2942
    %v2944 = vadd.s32 %v2943, 536870912
    %v2945 = vshrl.u32 %v2944, 30
    %v2946 = vshll.u32 %v2945, 30
    %v2947 = vsub.s32 %v2943, %v2946
    %vm2948 = vcmp.lt.s32.totalorder %v2947, 0
    %v2949 = vsub.s32 0, %v2947
    %v2950 = vsel %vm2948, %v2949, %v2947
    %v2951 = vclz %v2950
    %v2952 = vsub.s32 %v2951, 2
    %vm2953 = vcmp.gt.s32.totalorder 0, %v2952
    %v2954 = vsel %vm2953, 0, %v2952
    %v2955 = vsub.s32 32, %v2954
    %v2956 = vshll.u32 %v2947, %v2954
    %v2957 = vshrl.u32 %v2939, %v2955
    %v2958 = vor.u32 %v2956, %v2957
    %v2959 = vsub.s32 4294967266, %v2954
    %v2960 = vadd.s32 %v2959, 127
    %v2961 = vshll.u32 %v2960, 23
    %v2962 = vor.u32 4788187, %v2961
    %v2963 = vand.u32 2147483647, %v2962
    %v2965 = vcvt.s32.f32 %v2958
    %v2966 = vmul.f32 %v2965, %v2963
    %v2967 = vxor.u32 %v2966, 2147483648
    %v2968 = vsel %vm2885, %v2967, %v2966
    %v2969 = vsub.s32 4, %v2945
    %v2970 = vsel %vm2885, %v2969, %v2945
    %v2971 = vsel %vm2884, %v379, %v2968
    %v2972 = vsel %vm2884, 0, %v2970
    %v2973 = vcosq.f32.pop %v2971
    %v2974 = vsinq.f32.pop %v2971
    %vm2975 = vweird.f32 %v379
    %v2976 = vadd.s32 %v2972, 3
    %v2977 = vand.u32 %v2976, 3
    %vm2978 = vcmp.lt.s32.totalorder %v2977, 2
    %vm2979 = vcmp.eq.s32.totalorder %v2977, 0
    %v2980 = vxor.u32 %v2974, 2147483648
    %v2981 = vsel %vm2979, %v2973, %v2980
    %vm2982 = vcmp.eq.s32.totalorder %v2977, 2
    %v2983 = vxor.u32 %v2973, 2147483648
    %v2984 = vsel %vm2982, %v2983, %v2974
    %v2985 = vsel %vm2978, %v2981, %v2984
    %v2986 = vsel %vm2975, nan, %v2985
    %v2987 = vand.u32 2147483647, %v380
    %vm2988 = vcmp.le.f32.partialorder %v2987, 0.7853982
    %vm2989 = vcmp.lt.s32.totalorder %v380, 0
    %v2990 = vand.u32 %v380, 2139095040
    %v2991 = vshrl.u32 %v2990, 23
    %v2992 = vsub.s32 %v2991, 127
    %v2993 = vand.u32 2147483647, %v380
    %v2994 = vand.u32 %v2993, 8388607
    %v2995 = vor.u32 %v2994, 8388608
    %v2996 = vsub.s32 0, %v2995
    %v2997 = vadd.s32 %v2992, 1
    %vm2998 = vcmp.gt.s32.totalorder %v2997, 0
    %v2999 = vsel %vm2998, %v2997, 0
    %v3000 = vshrl.u32 %v2999, 5
    %v3001 = vand.u32 %v2999, 31
    %v3002 = vsub.s32 32, %v3001
    %v3003 = vshrl.u32 683565275, %v3002
    %v3004 = vshll.u32 683565275, %v3001
    %v3005 = vshrl.u32 2475754826, %v3002
    %v3006 = vor.u32 %v3004, %v3005
    %v3007 = vshll.u32 2475754826, %v3001
    %v3008 = vshrl.u32 2131351028, %v3002
    %v3009 = vor.u32 %v3007, %v3008
    %v3010 = vshll.u32 2131351028, %v3001
    %v3011 = vshrl.u32 2102212464, %v3002
    %v3012 = vor.u32 %v3010, %v3011
    %v3013 = vshll.u32 2102212464, %v3001
    %v3014 = vshrl.u32 920167782, %v3002
    %v3015 = vor.u32 %v3013, %v3014
    %v3016 = vshll.u32 920167782, %v3001
    %v3017 = vshrl.u32 1326507024, %v3002
    %v3018 = vor.u32 %v3016, %v3017
    %vm3019 = vcmp.lt.s32.totalorder %v3000, 1
    %vm3020 = vcmp.lt.s32.totalorder %v3000, 2
    %vm3021 = vcmp.lt.s32.totalorder %v3000, 3
    %vm3022 = vcmp.lt.s32.totalorder %v3000, 4
    %v3023 = vsel %vm3019, %v3003, %v3006
    %v3024 = vsel %vm3022, %v3012, 2102212464
    %v3025 = vsel %vm3021, %v3009, %v3024
    %v3026 = vsel %vm3020, %v3023, %v3025
    %v3027 = vsel %vm3019, %v3006, %v3009
    %v3028 = vsel %vm3022, %v3015, 920167782
    %v3029 = vsel %vm3021, %v3012, %v3028
    %v3030 = vsel %vm3020, %v3027, %v3029
    %v3031 = vsel %vm3019, %v3009, %v3012
    %v3032 = vsel %vm3022, %v3018, 1326507024
    %v3033 = vsel %vm3021, %v3015, %v3032
    %v3034 = vsel %vm3020, %v3031, %v3033
    %v3035 = vshll.u32 %v2995, 8
    %v3036 = vmul.u32.u64.compose %v3035, %v3034
    %v3037 = vextract.low.u32 %v3036
    %v3038 = vextract.high.u32 %v3036
    %v3039 = vmul.u32.u64.compose %v3035, %v3030
    %v3040 = vextract.low.u32 %v3039
    %v3041 = vextract.high.u32 %v3039
    %v3042 = vmul.u32 %v3035, %v3026
    %v3043 = vadd.s32 %v3038, %v3040
    %vm3044 = vc.u32 %v3038, %v3040
    %v3045 = vadd.s32 %v3041, 1
    %v3046 = vsel %vm3044, %v3045, %v3041
    %v3047 = vadd.s32 %v3042, %v3046
    %v3048 = vadd.s32 %v3047, 536870912
    %v3049 = vshrl.u32 %v3048, 30
    %v3050 = vshll.u32 %v3049, 30
    %v3051 = vsub.s32 %v3047, %v3050
    %vm3052 = vcmp.lt.s32.totalorder %v3051, 0
    %v3053 = vsub.s32 0, %v3051
    %v3054 = vsel %vm3052, %v3053, %v3051
    %v3055 = vclz %v3054
    %v3056 = vsub.s32 %v3055, 2
    %vm3057 = vcmp.gt.s32.totalorder 0, %v3056
    %v3058 = vsel %vm3057, 0, %v3056
    %v3059 = vsub.s32 32, %v3058
    %v3060 = vshll.u32 %v3051, %v3058
    %v3061 = vshrl.u32 %v3043, %v3059
    %v3062 = vor.u32 %v3060, %v3061
    %v3063 = vsub.s32 4294967266, %v3058
    %v3064 = vadd.s32 %v3063, 127
    %v3065 = vshll.u32 %v3064, 23
    %v3066 = vor.u32 4788187, %v3065
    %v3067 = vand.u32 2147483647, %v3066
    %v3069 = vcvt.s32.f32 %v3062
    %v3070 = vmul.f32 %v3069, %v3067
    %v3071 = vxor.u32 %v3070, 2147483648
    %v3072 = vsel %vm2989, %v3071, %v3070
    %v3073 = vsub.s32 4, %v3049
    %v3074 = vsel %vm2989, %v3073, %v3049
    %v3075 = vsel %vm2988, %v380, %v3072
    %v3076 = vsel %vm2988, 0, %v3074
    %v3077 = vcosq.f32.pop %v3075
    %v3078 = vsinq.f32.pop %v3075
    %vm3079 = vweird.f32 %v380
    %v3080 = vadd.s32 %v3076, 3
    %v3081 = vand.u32 %v3080, 3
    %vm3082 = vcmp.lt.s32.totalorder %v3081, 2
    %vm3083 = vcmp.eq.s32.totalorder %v3081, 0
    %v3084 = vxor.u32 %v3078, 2147483648
    %v3085 = vsel %vm3083, %v3077, %v3084
    %vm3086 = vcmp.eq.s32.totalorder %v3081, 2
    %v3087 = vxor.u32 %v3077, 2147483648
    %v3088 = vsel %vm3086, %v3087, %v3078
    %v3089 = vsel %vm3082, %v3085, %v3088
    %v3090 = vsel %vm3079, nan, %v3089
    %v3091 = vand.u32 2147483647, %v381
    %vm3092 = vcmp.le.f32.partialorder %v3091, 0.7853982
    %vm3093 = vcmp.lt.s32.totalorder %v381, 0
    %v3094 = vand.u32 %v381, 2139095040
    %v3095 = vshrl.u32 %v3094, 23
    %v3096 = vsub.s32 %v3095, 127
    %v3097 = vand.u32 2147483647, %v381
    %v3098 = vand.u32 %v3097, 8388607
    %v3099 = vor.u32 %v3098, 8388608
    %v3100 = vsub.s32 0, %v3099
    %v3101 = vadd.s32 %v3096, 1
    %vm3102 = vcmp.gt.s32.totalorder %v3101, 0
    %v3103 = vsel %vm3102, %v3101, 0
    %v3104 = vshrl.u32 %v3103, 5
    %v3105 = vand.u32 %v3103, 31
    %v3106 = vsub.s32 32, %v3105
    %v3107 = vshrl.u32 683565275, %v3106
    %v3108 = vshll.u32 683565275, %v3105
    %v3109 = vshrl.u32 2475754826, %v3106
    %v3110 = vor.u32 %v3108, %v3109
    %v3111 = vshll.u32 2475754826, %v3105
    %v3112 = vshrl.u32 2131351028, %v3106
    %v3113 = vor.u32 %v3111, %v3112
    %v3114 = vshll.u32 2131351028, %v3105
    %v3115 = vshrl.u32 2102212464, %v3106
    %v3116 = vor.u32 %v3114, %v3115
    %v3117 = vshll.u32 2102212464, %v3105
    %v3118 = vshrl.u32 920167782, %v3106
    %v3119 = vor.u32 %v3117, %v3118
    %v3120 = vshll.u32 920167782, %v3105
    %v3121 = vshrl.u32 1326507024, %v3106
    %v3122 = vor.u32 %v3120, %v3121
    %vm3123 = vcmp.lt.s32.totalorder %v3104, 1
    %vm3124 = vcmp.lt.s32.totalorder %v3104, 2
    %vm3125 = vcmp.lt.s32.totalorder %v3104, 3
    %vm3126 = vcmp.lt.s32.totalorder %v3104, 4
    %v3127 = vsel %vm3123, %v3107, %v3110
    %v3128 = vsel %vm3126, %v3116, 2102212464
    %v3129 = vsel %vm3125, %v3113, %v3128
    %v3130 = vsel %vm3124, %v3127, %v3129
    %v3131 = vsel %vm3123, %v3110, %v3113
    %v3132 = vsel %vm3126, %v3119, 920167782
    %v3133 = vsel %vm3125, %v3116, %v3132
    %v3134 = vsel %vm3124, %v3131, %v3133
    %v3135 = vsel %vm3123, %v3113, %v3116
    %v3136 = vsel %vm3126, %v3122, 1326507024
    %v3137 = vsel %vm3125, %v3119, %v3136
    %v3138 = vsel %vm3124, %v3135, %v3137
    %v3139 = vshll.u32 %v3099, 8
    %v3140 = vmul.u32.u64.compose %v3139, %v3138
    %v3141 = vextract.low.u32 %v3140
    %v3142 = vextract.high.u32 %v3140
    %v3143 = vmul.u32.u64.compose %v3139, %v3134
    %v3144 = vextract.low.u32 %v3143
    %v3145 = vextract.high.u32 %v3143
    %v3146 = vmul.u32 %v3139, %v3130
    %v3147 = vadd.s32 %v3142, %v3144
    %vm3148 = vc.u32 %v3142, %v3144
    %v3149 = vadd.s32 %v3145, 1
    %v3150 = vsel %vm3148, %v3149, %v3145
    %v3151 = vadd.s32 %v3146, %v3150
    %v3152 = vadd.s32 %v3151, 536870912
    %v3153 = vshrl.u32 %v3152, 30
    %v3154 = vshll.u32 %v3153, 30
    %v3155 = vsub.s32 %v3151, %v3154
    %vm3156 = vcmp.lt.s32.totalorder %v3155, 0
    %v3157 = vsub.s32 0, %v3155
    %v3158 = vsel %vm3156, %v3157, %v3155
    %v3159 = vclz %v3158
    %v3160 = vsub.s32 %v3159, 2
    %vm3161 = vcmp.gt.s32.totalorder 0, %v3160
    %v3162 = vsel %vm3161, 0, %v3160
    %v3163 = vsub.s32 32, %v3162
    %v3164 = vshll.u32 %v3155, %v3162
    %v3165 = vshrl.u32 %v3147, %v3163
    %v3166 = vor.u32 %v3164, %v3165
    %v3167 = vsub.s32 4294967266, %v3162
    %v3168 = vadd.s32 %v3167, 127
    %v3169 = vshll.u32 %v3168, 23
    %v3170 = vor.u32 4788187, %v3169
    %v3171 = vand.u32 2147483647, %v3170
    %v3173 = vcvt.s32.f32 %v3166
    %v3174 = vmul.f32 %v3173, %v3171
    %v3175 = vxor.u32 %v3174, 2147483648
    %v3176 = vsel %vm3093, %v3175, %v3174
    %v3177 = vsub.s32 4, %v3153
    %v3178 = vsel %vm3093, %v3177, %v3153
    %v3179 = vsel %vm3092, %v381, %v3176
    %v3180 = vsel %vm3092, 0, %v3178
    %v3181 = vcosq.f32.pop %v3179
    %v3182 = vsinq.f32.pop %v3179
    %vm3183 = vweird.f32 %v381
    %v3184 = vadd.s32 %v3180, 3
    %v3185 = vand.u32 %v3184, 3
    %vm3186 = vcmp.lt.s32.totalorder %v3185, 2
    %vm3187 = vcmp.eq.s32.totalorder %v3185, 0
    %v3188 = vxor.u32 %v3182, 2147483648
    %v3189 = vsel %vm3187, %v3181, %v3188
    %vm3190 = vcmp.eq.s32.totalorder %v3185, 2
    %v3191 = vxor.u32 %v3181, 2147483648
    %v3192 = vsel %vm3190, %v3191, %v3182
    %v3193 = vsel %vm3186, %v3189, %v3192
    %v3194 = vsel %vm3183, nan, %v3193
    %v3195 = vand.u32 2147483647, %v382
    %vm3196 = vcmp.le.f32.partialorder %v3195, 0.7853982
    %vm3197 = vcmp.lt.s32.totalorder %v382, 0
    %v3198 = vand.u32 %v382, 2139095040
    %v3199 = vshrl.u32 %v3198, 23
    %v3200 = vsub.s32 %v3199, 127
    %v3201 = vand.u32 2147483647, %v382
    %v3202 = vand.u32 %v3201, 8388607
    %v3203 = vor.u32 %v3202, 8388608
    %v3204 = vsub.s32 0, %v3203
    %v3205 = vadd.s32 %v3200, 1
    %vm3206 = vcmp.gt.s32.totalorder %v3205, 0
    %v3207 = vsel %vm3206, %v3205, 0
    %v3208 = vshrl.u32 %v3207, 5
    %v3209 = vand.u32 %v3207, 31
    %v3210 = vsub.s32 32, %v3209
    %v3211 = vshrl.u32 683565275, %v3210
    %v3212 = vshll.u32 683565275, %v3209
    %v3213 = vshrl.u32 2475754826, %v3210
    %v3214 = vor.u32 %v3212, %v3213
    %v3215 = vshll.u32 2475754826, %v3209
    %v3216 = vshrl.u32 2131351028, %v3210
    %v3217 = vor.u32 %v3215, %v3216
    %v3218 = vshll.u32 2131351028, %v3209
    %v3219 = vshrl.u32 2102212464, %v3210
    %v3220 = vor.u32 %v3218, %v3219
    %v3221 = vshll.u32 2102212464, %v3209
    %v3222 = vshrl.u32 920167782, %v3210
    %v3223 = vor.u32 %v3221, %v3222
    %v3224 = vshll.u32 920167782, %v3209
    %v3225 = vshrl.u32 1326507024, %v3210
    %v3226 = vor.u32 %v3224, %v3225
    %vm3227 = vcmp.lt.s32.totalorder %v3208, 1
    %vm3228 = vcmp.lt.s32.totalorder %v3208, 2
    %vm3229 = vcmp.lt.s32.totalorder %v3208, 3
    %vm3230 = vcmp.lt.s32.totalorder %v3208, 4
    %v3231 = vsel %vm3227, %v3211, %v3214
    %v3232 = vsel %vm3230, %v3220, 2102212464
    %v3233 = vsel %vm3229, %v3217, %v3232
    %v3234 = vsel %vm3228, %v3231, %v3233
    %v3235 = vsel %vm3227, %v3214, %v3217
    %v3236 = vsel %vm3230, %v3223, 920167782
    %v3237 = vsel %vm3229, %v3220, %v3236
    %v3238 = vsel %vm3228, %v3235, %v3237
    %v3239 = vsel %vm3227, %v3217, %v3220
    %v3240 = vsel %vm3230, %v3226, 1326507024
    %v3241 = vsel %vm3229, %v3223, %v3240
    %v3242 = vsel %vm3228, %v3239, %v3241
    %v3243 = vshll.u32 %v3203, 8
    %v3244 = vmul.u32.u64.compose %v3243, %v3242
    %v3245 = vextract.low.u32 %v3244
    %v3246 = vextract.high.u32 %v3244
    %v3247 = vmul.u32.u64.compose %v3243, %v3238
    %v3248 = vextract.low.u32 %v3247
    %v3249 = vextract.high.u32 %v3247
    %v3250 = vmul.u32 %v3243, %v3234
    %v3251 = vadd.s32 %v3246, %v3248
    %vm3252 = vc.u32 %v3246, %v3248
    %v3253 = vadd.s32 %v3249, 1
    %v3254 = vsel %vm3252, %v3253, %v3249
    %v3255 = vadd.s32 %v3250, %v3254
    %v3256 = vadd.s32 %v3255, 536870912
    %v3257 = vshrl.u32 %v3256, 30
    %v3258 = vshll.u32 %v3257, 30
    %v3259 = vsub.s32 %v3255, %v3258
    %vm3260 = vcmp.lt.s32.totalorder %v3259, 0
    %v3261 = vsub.s32 0, %v3259
    %v3262 = vsel %vm3260, %v3261, %v3259
    %v3263 = vclz %v3262
    %v3264 = vsub.s32 %v3263, 2
    %vm3265 = vcmp.gt.s32.totalorder 0, %v3264
    %v3266 = vsel %vm3265, 0, %v3264
    %v3267 = vsub.s32 32, %v3266
    %v3268 = vshll.u32 %v3259, %v3266
    %v3269 = vshrl.u32 %v3251, %v3267
    %v3270 = vor.u32 %v3268, %v3269
    %v3271 = vsub.s32 4294967266, %v3266
    %v3272 = vadd.s32 %v3271, 127
    %v3273 = vshll.u32 %v3272, 23
    %v3274 = vor.u32 4788187, %v3273
    %v3275 = vand.u32 2147483647, %v3274
    %v3277 = vcvt.s32.f32 %v3270
    %v3278 = vmul.f32 %v3277, %v3275
    %v3279 = vxor.u32 %v3278, 2147483648
    %v3280 = vsel %vm3197, %v3279, %v3278
    %v3281 = vsub.s32 4, %v3257
    %v3282 = vsel %vm3197, %v3281, %v3257
    %v3283 = vsel %vm3196, %v382, %v3280
    %v3284 = vsel %vm3196, 0, %v3282
    %v3285 = vcosq.f32.pop %v3283
    %v3286 = vsinq.f32.pop %v3283
    %vm3287 = vweird.f32 %v382
    %v3288 = vadd.s32 %v3284, 3
    %v3289 = vand.u32 %v3288, 3
    %vm3290 = vcmp.lt.s32.totalorder %v3289, 2
    %vm3291 = vcmp.eq.s32.totalorder %v3289, 0
    %v3292 = vxor.u32 %v3286, 2147483648
    %v3293 = vsel %vm3291, %v3285, %v3292
    %vm3294 = vcmp.eq.s32.totalorder %v3289, 2
    %v3295 = vxor.u32 %v3285, 2147483648
    %v3296 = vsel %vm3294, %v3295, %v3286
    %v3297 = vsel %vm3290, %v3293, %v3296
    %v3298 = vsel %vm3287, nan, %v3297
    %v3299 = vand.u32 2147483647, %v383
    %vm3300 = vcmp.le.f32.partialorder %v3299, 0.7853982
    %vm3301 = vcmp.lt.s32.totalorder %v383, 0
    %v3302 = vand.u32 %v383, 2139095040
    %v3303 = vshrl.u32 %v3302, 23
    %v3304 = vsub.s32 %v3303, 127
    %v3305 = vand.u32 2147483647, %v383
    %v3306 = vand.u32 %v3305, 8388607
    %v3307 = vor.u32 %v3306, 8388608
    %v3308 = vsub.s32 0, %v3307
    %v3309 = vadd.s32 %v3304, 1
    %vm3310 = vcmp.gt.s32.totalorder %v3309, 0
    %v3311 = vsel %vm3310, %v3309, 0
    %v3312 = vshrl.u32 %v3311, 5
    %v3313 = vand.u32 %v3311, 31
    %v3314 = vsub.s32 32, %v3313
    %v3315 = vshrl.u32 683565275, %v3314
    %v3316 = vshll.u32 683565275, %v3313
    %v3317 = vshrl.u32 2475754826, %v3314
    %v3318 = vor.u32 %v3316, %v3317
    %v3319 = vshll.u32 2475754826, %v3313
    %v3320 = vshrl.u32 2131351028, %v3314
    %v3321 = vor.u32 %v3319, %v3320
    %v3322 = vshll.u32 2131351028, %v3313
    %v3323 = vshrl.u32 2102212464, %v3314
    %v3324 = vor.u32 %v3322, %v3323
    %v3325 = vshll.u32 2102212464, %v3313
    %v3326 = vshrl.u32 920167782, %v3314
    %v3327 = vor.u32 %v3325, %v3326
    %v3328 = vshll.u32 920167782, %v3313
    %v3329 = vshrl.u32 1326507024, %v3314
    %v3330 = vor.u32 %v3328, %v3329
    %vm3331 = vcmp.lt.s32.totalorder %v3312, 1
    %vm3332 = vcmp.lt.s32.totalorder %v3312, 2
    %vm3333 = vcmp.lt.s32.totalorder %v3312, 3
    %vm3334 = vcmp.lt.s32.totalorder %v3312, 4
    %v3335 = vsel %vm3331, %v3315, %v3318
    %v3336 = vsel %vm3334, %v3324, 2102212464
    %v3337 = vsel %vm3333, %v3321, %v3336
    %v3338 = vsel %vm3332, %v3335, %v3337
    %v3339 = vsel %vm3331, %v3318, %v3321
    %v3340 = vsel %vm3334, %v3327, 920167782
    %v3341 = vsel %vm3333, %v3324, %v3340
    %v3342 = vsel %vm3332, %v3339, %v3341
    %v3343 = vsel %vm3331, %v3321, %v3324
    %v3344 = vsel %vm3334, %v3330, 1326507024
    %v3345 = vsel %vm3333, %v3327, %v3344
    %v3346 = vsel %vm3332, %v3343, %v3345
    %v3347 = vshll.u32 %v3307, 8
    %v3348 = vmul.u32.u64.compose %v3347, %v3346
    %v3349 = vextract.low.u32 %v3348
    %v3350 = vextract.high.u32 %v3348
    %v3351 = vmul.u32.u64.compose %v3347, %v3342
    %v3352 = vextract.low.u32 %v3351
    %v3353 = vextract.high.u32 %v3351
    %v3354 = vmul.u32 %v3347, %v3338
    %v3355 = vadd.s32 %v3350, %v3352
    %vm3356 = vc.u32 %v3350, %v3352
    %v3357 = vadd.s32 %v3353, 1
    %v3358 = vsel %vm3356, %v3357, %v3353
    %v3359 = vadd.s32 %v3354, %v3358
    %v3360 = vadd.s32 %v3359, 536870912
    %v3361 = vshrl.u32 %v3360, 30
    %v3362 = vshll.u32 %v3361, 30
    %v3363 = vsub.s32 %v3359, %v3362
    %vm3364 = vcmp.lt.s32.totalorder %v3363, 0
    %v3365 = vsub.s32 0, %v3363
    %v3366 = vsel %vm3364, %v3365, %v3363
    %v3367 = vclz %v3366
    %v3368 = vsub.s32 %v3367, 2
    %vm3369 = vcmp.gt.s32.totalorder 0, %v3368
    %v3370 = vsel %vm3369, 0, %v3368
    %v3371 = vsub.s32 32, %v3370
    %v3372 = vshll.u32 %v3363, %v3370
    %v3373 = vshrl.u32 %v3355, %v3371
    %v3374 = vor.u32 %v3372, %v3373
    %v3375 = vsub.s32 4294967266, %v3370
    %v3376 = vadd.s32 %v3375, 127
    %v3377 = vshll.u32 %v3376, 23
    %v3378 = vor.u32 4788187, %v3377
    %v3379 = vand.u32 2147483647, %v3378
    %v3381 = vcvt.s32.f32 %v3374
    %v3382 = vmul.f32 %v3381, %v3379
    %v3383 = vxor.u32 %v3382, 2147483648
    %v3384 = vsel %vm3301, %v3383, %v3382
    %v3385 = vsub.s32 4, %v3361
    %v3386 = vsel %vm3301, %v3385, %v3361
    %v3387 = vsel %vm3300, %v383, %v3384
    %v3388 = vsel %vm3300, 0, %v3386
    %v3389 = vcosq.f32.pop %v3387
    %v3390 = vsinq.f32.pop %v3387
    %vm3391 = vweird.f32 %v383
    %v3392 = vadd.s32 %v3388, 3
    %v3393 = vand.u32 %v3392, 3
    %vm3394 = vcmp.lt.s32.totalorder %v3393, 2
    %vm3395 = vcmp.eq.s32.totalorder %v3393, 0
    %v3396 = vxor.u32 %v3390, 2147483648
    %v3397 = vsel %vm3395, %v3389, %v3396
    %vm3398 = vcmp.eq.s32.totalorder %v3393, 2
    %v3399 = vxor.u32 %v3389, 2147483648
    %v3400 = vsel %vm3398, %v3399, %v3390
    %v3401 = vsel %vm3394, %v3397, %v3400
    %v3402 = vsel %vm3391, nan, %v3401
    %v3403 = vand.u32 2147483647, %v384
    %vm3404 = vcmp.le.f32.partialorder %v3403, 0.7853982
    %vm3405 = vcmp.lt.s32.totalorder %v384, 0
    %v3406 = vand.u32 %v384, 2139095040
    %v3407 = vshrl.u32 %v3406, 23
    %v3408 = vsub.s32 %v3407, 127
    %v3409 = vand.u32 2147483647, %v384
    %v3410 = vand.u32 %v3409, 8388607
    %v3411 = vor.u32 %v3410, 8388608
    %v3412 = vsub.s32 0, %v3411
    %v3413 = vadd.s32 %v3408, 1
    %vm3414 = vcmp.gt.s32.totalorder %v3413, 0
    %v3415 = vsel %vm3414, %v3413, 0
    %v3416 = vshrl.u32 %v3415, 5
    %v3417 = vand.u32 %v3415, 31
    %v3418 = vsub.s32 32, %v3417
    %v3419 = vshrl.u32 683565275, %v3418
    %v3420 = vshll.u32 683565275, %v3417
    %v3421 = vshrl.u32 2475754826, %v3418
    %v3422 = vor.u32 %v3420, %v3421
    %v3423 = vshll.u32 2475754826, %v3417
    %v3424 = vshrl.u32 2131351028, %v3418
    %v3425 = vor.u32 %v3423, %v3424
    %v3426 = vshll.u32 2131351028, %v3417
    %v3427 = vshrl.u32 2102212464, %v3418
    %v3428 = vor.u32 %v3426, %v3427
    %v3429 = vshll.u32 2102212464, %v3417
    %v3430 = vshrl.u32 920167782, %v3418
    %v3431 = vor.u32 %v3429, %v3430
    %v3432 = vshll.u32 920167782, %v3417
    %v3433 = vshrl.u32 1326507024, %v3418
    %v3434 = vor.u32 %v3432, %v3433
    %vm3435 = vcmp.lt.s32.totalorder %v3416, 1
    %vm3436 = vcmp.lt.s32.totalorder %v3416, 2
    %vm3437 = vcmp.lt.s32.totalorder %v3416, 3
    %vm3438 = vcmp.lt.s32.totalorder %v3416, 4
    %v3439 = vsel %vm3435, %v3419, %v3422
    %v3440 = vsel %vm3438, %v3428, 2102212464
    %v3441 = vsel %vm3437, %v3425, %v3440
    %v3442 = vsel %vm3436, %v3439, %v3441
    %v3443 = vsel %vm3435, %v3422, %v3425
    %v3444 = vsel %vm3438, %v3431, 920167782
    %v3445 = vsel %vm3437, %v3428, %v3444
    %v3446 = vsel %vm3436, %v3443, %v3445
    %v3447 = vsel %vm3435, %v3425, %v3428
    %v3448 = vsel %vm3438, %v3434, 1326507024
    %v3449 = vsel %vm3437, %v3431, %v3448
    %v3450 = vsel %vm3436, %v3447, %v3449
    %v3451 = vshll.u32 %v3411, 8
    %v3452 = vmul.u32.u64.compose %v3451, %v3450
    %v3453 = vextract.low.u32 %v3452
    %v3454 = vextract.high.u32 %v3452
    %v3455 = vmul.u32.u64.compose %v3451, %v3446
    %v3456 = vextract.low.u32 %v3455
    %v3457 = vextract.high.u32 %v3455
    %v3458 = vmul.u32 %v3451, %v3442
    %v3459 = vadd.s32 %v3454, %v3456
    %vm3460 = vc.u32 %v3454, %v3456
    %v3461 = vadd.s32 %v3457, 1
    %v3462 = vsel %vm3460, %v3461, %v3457
    %v3463 = vadd.s32 %v3458, %v3462
    %v3464 = vadd.s32 %v3463, 536870912
    %v3465 = vshrl.u32 %v3464, 30
    %v3466 = vshll.u32 %v3465, 30
    %v3467 = vsub.s32 %v3463, %v3466
    %vm3468 = vcmp.lt.s32.totalorder %v3467, 0
    %v3469 = vsub.s32 0, %v3467
    %v3470 = vsel %vm3468, %v3469, %v3467
    %v3471 = vclz %v3470
    %v3472 = vsub.s32 %v3471, 2
    %vm3473 = vcmp.gt.s32.totalorder 0, %v3472
    %v3474 = vsel %vm3473, 0, %v3472
    %v3475 = vsub.s32 32, %v3474
    %v3476 = vshll.u32 %v3467, %v3474
    %v3477 = vshrl.u32 %v3459, %v3475
    %v3478 = vor.u32 %v3476, %v3477
    %v3479 = vsub.s32 4294967266, %v3474
    %v3480 = vadd.s32 %v3479, 127
    %v3481 = vshll.u32 %v3480, 23
    %v3482 = vor.u32 4788187, %v3481
    %v3483 = vand.u32 2147483647, %v3482
    %v3485 = vcvt.s32.f32 %v3478
    %v3486 = vmul.f32 %v3485, %v3483
    %v3487 = vxor.u32 %v3486, 2147483648
    %v3488 = vsel %vm3405, %v3487, %v3486
    %v3489 = vsub.s32 4, %v3465
    %v3490 = vsel %vm3405, %v3489, %v3465
    %v3491 = vsel %vm3404, %v384, %v3488
    %v3492 = vsel %vm3404, 0, %v3490
    %v3493 = vcosq.f32.pop %v3491
    %v3494 = vsinq.f32.pop %v3491
    %vm3495 = vweird.f32 %v384
    %v3496 = vadd.s32 %v3492, 3
    %v3497 = vand.u32 %v3496, 3
    %vm3498 = vcmp.lt.s32.totalorder %v3497, 2
    %vm3499 = vcmp.eq.s32.totalorder %v3497, 0
    %v3500 = vxor.u32 %v3494, 2147483648
    %v3501 = vsel %vm3499, %v3493, %v3500
    %vm3502 = vcmp.eq.s32.totalorder %v3497, 2
    %v3503 = vxor.u32 %v3493, 2147483648
    %v3504 = vsel %vm3502, %v3503, %v3494
    %v3505 = vsel %vm3498, %v3501, %v3504
    %v3506 = vsel %vm3495, nan, %v3505
    %v3507 = vand.u32 2147483647, %v385
    %vm3508 = vcmp.le.f32.partialorder %v3507, 0.7853982
    %vm3509 = vcmp.lt.s32.totalorder %v385, 0
    %v3510 = vand.u32 %v385, 2139095040
    %v3511 = vshrl.u32 %v3510, 23
    %v3512 = vsub.s32 %v3511, 127
    %v3513 = vand.u32 2147483647, %v385
    %v3514 = vand.u32 %v3513, 8388607
    %v3515 = vor.u32 %v3514, 8388608
    %v3516 = vsub.s32 0, %v3515
    %v3517 = vadd.s32 %v3512, 1
    %vm3518 = vcmp.gt.s32.totalorder %v3517, 0
    %v3519 = vsel %vm3518, %v3517, 0
    %v3520 = vshrl.u32 %v3519, 5
    %v3521 = vand.u32 %v3519, 31
    %v3522 = vsub.s32 32, %v3521
    %v3523 = vshrl.u32 683565275, %v3522
    %v3524 = vshll.u32 683565275, %v3521
    %v3525 = vshrl.u32 2475754826, %v3522
    %v3526 = vor.u32 %v3524, %v3525
    %v3527 = vshll.u32 2475754826, %v3521
    %v3528 = vshrl.u32 2131351028, %v3522
    %v3529 = vor.u32 %v3527, %v3528
    %v3530 = vshll.u32 2131351028, %v3521
    %v3531 = vshrl.u32 2102212464, %v3522
    %v3532 = vor.u32 %v3530, %v3531
    %v3533 = vshll.u32 2102212464, %v3521
    %v3534 = vshrl.u32 920167782, %v3522
    %v3535 = vor.u32 %v3533, %v3534
    %v3536 = vshll.u32 920167782, %v3521
    %v3537 = vshrl.u32 1326507024, %v3522
    %v3538 = vor.u32 %v3536, %v3537
    %vm3539 = vcmp.lt.s32.totalorder %v3520, 1
    %vm3540 = vcmp.lt.s32.totalorder %v3520, 2
    %vm3541 = vcmp.lt.s32.totalorder %v3520, 3
    %vm3542 = vcmp.lt.s32.totalorder %v3520, 4
    %v3543 = vsel %vm3539, %v3523, %v3526
    %v3544 = vsel %vm3542, %v3532, 2102212464
    %v3545 = vsel %vm3541, %v3529, %v3544
    %v3546 = vsel %vm3540, %v3543, %v3545
    %v3547 = vsel %vm3539, %v3526, %v3529
    %v3548 = vsel %vm3542, %v3535, 920167782
    %v3549 = vsel %vm3541, %v3532, %v3548
    %v3550 = vsel %vm3540, %v3547, %v3549
    %v3551 = vsel %vm3539, %v3529, %v3532
    %v3552 = vsel %vm3542, %v3538, 1326507024
    %v3553 = vsel %vm3541, %v3535, %v3552
    %v3554 = vsel %vm3540, %v3551, %v3553
    %v3555 = vshll.u32 %v3515, 8
    %v3556 = vmul.u32.u64.compose %v3555, %v3554
    %v3557 = vextract.low.u32 %v3556
    %v3558 = vextract.high.u32 %v3556
    %v3559 = vmul.u32.u64.compose %v3555, %v3550
    %v3560 = vextract.low.u32 %v3559
    %v3561 = vextract.high.u32 %v3559
    %v3562 = vmul.u32 %v3555, %v3546
    %v3563 = vadd.s32 %v3558, %v3560
    %vm3564 = vc.u32 %v3558, %v3560
    %v3565 = vadd.s32 %v3561, 1
    %v3566 = vsel %vm3564, %v3565, %v3561
    %v3567 = vadd.s32 %v3562, %v3566
    %v3568 = vadd.s32 %v3567, 536870912
    %v3569 = vshrl.u32 %v3568, 30
    %v3570 = vshll.u32 %v3569, 30
    %v3571 = vsub.s32 %v3567, %v3570
    %vm3572 = vcmp.lt.s32.totalorder %v3571, 0
    %v3573 = vsub.s32 0, %v3571
    %v3574 = vsel %vm3572, %v3573, %v3571
    %v3575 = vclz %v3574
    %v3576 = vsub.s32 %v3575, 2
    %vm3577 = vcmp.gt.s32.totalorder 0, %v3576
    %v3578 = vsel %vm3577, 0, %v3576
    %v3579 = vsub.s32 32, %v3578
    %v3580 = vshll.u32 %v3571, %v3578
    %v3581 = vshrl.u32 %v3563, %v3579
    %v3582 = vor.u32 %v3580, %v3581
    %v3583 = vsub.s32 4294967266, %v3578
    %v3584 = vadd.s32 %v3583, 127
    %v3585 = vshll.u32 %v3584, 23
    %v3586 = vor.u32 4788187, %v3585
    %v3587 = vand.u32 2147483647, %v3586
    %v3589 = vcvt.s32.f32 %v3582
    %v3590 = vmul.f32 %v3589, %v3587
    %v3591 = vxor.u32 %v3590, 2147483648
    %v3592 = vsel %vm3509, %v3591, %v3590
    %v3593 = vsub.s32 4, %v3569
    %v3594 = vsel %vm3509, %v3593, %v3569
    %v3595 = vsel %vm3508, %v385, %v3592
    %v3596 = vsel %vm3508, 0, %v3594
    %v3597 = vcosq.f32.pop %v3595
    %v3598 = vsinq.f32.pop %v3595
    %vm3599 = vweird.f32 %v385
    %v3600 = vadd.s32 %v3596, 3
    %v3601 = vand.u32 %v3600, 3
    %vm3602 = vcmp.lt.s32.totalorder %v3601, 2
    %vm3603 = vcmp.eq.s32.totalorder %v3601, 0
    %v3604 = vxor.u32 %v3598, 2147483648
    %v3605 = vsel %vm3603, %v3597, %v3604
    %vm3606 = vcmp.eq.s32.totalorder %v3601, 2
    %v3607 = vxor.u32 %v3597, 2147483648
    %v3608 = vsel %vm3606, %v3607, %v3598
    %v3609 = vsel %vm3602, %v3605, %v3608
    %v3610 = vsel %vm3599, nan, %v3609
    %v3611 = vand.u32 2147483647, %v386
    %vm3612 = vcmp.le.f32.partialorder %v3611, 0.7853982
    %vm3613 = vcmp.lt.s32.totalorder %v386, 0
    %v3614 = vand.u32 %v386, 2139095040
    %v3615 = vshrl.u32 %v3614, 23
    %v3616 = vsub.s32 %v3615, 127
    %v3617 = vand.u32 2147483647, %v386
    %v3618 = vand.u32 %v3617, 8388607
    %v3619 = vor.u32 %v3618, 8388608
    %v3620 = vsub.s32 0, %v3619
    %v3621 = vadd.s32 %v3616, 1
    %vm3622 = vcmp.gt.s32.totalorder %v3621, 0
    %v3623 = vsel %vm3622, %v3621, 0
    %v3624 = vshrl.u32 %v3623, 5
    %v3625 = vand.u32 %v3623, 31
    %v3626 = vsub.s32 32, %v3625
    %v3627 = vshrl.u32 683565275, %v3626
    %v3628 = vshll.u32 683565275, %v3625
    %v3629 = vshrl.u32 2475754826, %v3626
    %v3630 = vor.u32 %v3628, %v3629
    %v3631 = vshll.u32 2475754826, %v3625
    %v3632 = vshrl.u32 2131351028, %v3626
    %v3633 = vor.u32 %v3631, %v3632
    %v3634 = vshll.u32 2131351028, %v3625
    %v3635 = vshrl.u32 2102212464, %v3626
    %v3636 = vor.u32 %v3634, %v3635
    %v3637 = vshll.u32 2102212464, %v3625
    %v3638 = vshrl.u32 920167782, %v3626
    %v3639 = vor.u32 %v3637, %v3638
    %v3640 = vshll.u32 920167782, %v3625
    %v3641 = vshrl.u32 1326507024, %v3626
    %v3642 = vor.u32 %v3640, %v3641
    %vm3643 = vcmp.lt.s32.totalorder %v3624, 1
    %vm3644 = vcmp.lt.s32.totalorder %v3624, 2
    %vm3645 = vcmp.lt.s32.totalorder %v3624, 3
    %vm3646 = vcmp.lt.s32.totalorder %v3624, 4
    %v3647 = vsel %vm3643, %v3627, %v3630
    %v3648 = vsel %vm3646, %v3636, 2102212464
    %v3649 = vsel %vm3645, %v3633, %v3648
    %v3650 = vsel %vm3644, %v3647, %v3649
    %v3651 = vsel %vm3643, %v3630, %v3633
    %v3652 = vsel %vm3646, %v3639, 920167782
    %v3653 = vsel %vm3645, %v3636, %v3652
    %v3654 = vsel %vm3644, %v3651, %v3653
    %v3655 = vsel %vm3643, %v3633, %v3636
    %v3656 = vsel %vm3646, %v3642, 1326507024
    %v3657 = vsel %vm3645, %v3639, %v3656
    %v3658 = vsel %vm3644, %v3655, %v3657
    %v3659 = vshll.u32 %v3619, 8
    %v3660 = vmul.u32.u64.compose %v3659, %v3658
    %v3661 = vextract.low.u32 %v3660
    %v3662 = vextract.high.u32 %v3660
    %v3663 = vmul.u32.u64.compose %v3659, %v3654
    %v3664 = vextract.low.u32 %v3663
    %v3665 = vextract.high.u32 %v3663
    %v3666 = vmul.u32 %v3659, %v3650
    %v3667 = vadd.s32 %v3662, %v3664
    %vm3668 = vc.u32 %v3662, %v3664
    %v3669 = vadd.s32 %v3665, 1
    %v3670 = vsel %vm3668, %v3669, %v3665
    %v3671 = vadd.s32 %v3666, %v3670
    %v3672 = vadd.s32 %v3671, 536870912
    %v3673 = vshrl.u32 %v3672, 30
    %v3674 = vshll.u32 %v3673, 30
    %v3675 = vsub.s32 %v3671, %v3674
    %vm3676 = vcmp.lt.s32.totalorder %v3675, 0
    %v3677 = vsub.s32 0, %v3675
    %v3678 = vsel %vm3676, %v3677, %v3675
    %v3679 = vclz %v3678
    %v3680 = vsub.s32 %v3679, 2
    %vm3681 = vcmp.gt.s32.totalorder 0, %v3680
    %v3682 = vsel %vm3681, 0, %v3680
    %v3683 = vsub.s32 32, %v3682
    %v3684 = vshll.u32 %v3675, %v3682
    %v3685 = vshrl.u32 %v3667, %v3683
    %v3686 = vor.u32 %v3684, %v3685
    %v3687 = vsub.s32 4294967266, %v3682
    %v3688 = vadd.s32 %v3687, 127
    %v3689 = vshll.u32 %v3688, 23
    %v3690 = vor.u32 4788187, %v3689
    %v3691 = vand.u32 2147483647, %v3690
    %v3693 = vcvt.s32.f32 %v3686
    %v3694 = vmul.f32 %v3693, %v3691
    %v3695 = vxor.u32 %v3694, 2147483648
    %v3696 = vsel %vm3613, %v3695, %v3694
    %v3697 = vsub.s32 4, %v3673
    %v3698 = vsel %vm3613, %v3697, %v3673
    %v3699 = vsel %vm3612, %v386, %v3696
    %v3700 = vsel %vm3612, 0, %v3698
    %v3701 = vcosq.f32.pop %v3699
    %v3702 = vsinq.f32.pop %v3699
    %vm3703 = vweird.f32 %v386
    %v3704 = vadd.s32 %v3700, 3
    %v3705 = vand.u32 %v3704, 3
    %vm3706 = vcmp.lt.s32.totalorder %v3705, 2
    %vm3707 = vcmp.eq.s32.totalorder %v3705, 0
    %v3708 = vxor.u32 %v3702, 2147483648
    %v3709 = vsel %vm3707, %v3701, %v3708
    %vm3710 = vcmp.eq.s32.totalorder %v3705, 2
    %v3711 = vxor.u32 %v3701, 2147483648
    %v3712 = vsel %vm3710, %v3711, %v3702
    %v3713 = vsel %vm3706, %v3709, %v3712
    %v3714 = vsel %vm3703, nan, %v3713
    %3715 = vst [vmem:[#allocation2] sm:$0xff] %v490
    %3716 = vst [vmem:[#allocation2 + $0x8] sm:$0xff] %v594
    %3717 = vst [vmem:[#allocation2 + $0x10] sm:$0xff] %v698
    %3718 = vst [vmem:[#allocation2 + $0x18] sm:$0xff] %v802
    %3719 = vst [vmem:[#allocation2 + $0x20] sm:$0xff] %v906
    %3720 = vst [vmem:[#allocation2 + $0x28] sm:$0xff] %v1010
    %3721 = vst [vmem:[#allocation2 + $0x30] sm:$0xff] %v1114
    %3722 = vst [vmem:[#allocation2 + $0x38] sm:$0xff] %v1218
    %3723 = vst [vmem:[#allocation2 + $0x40] sm:$0xff] %v1322
    %3724 = vst [vmem:[#allocation2 + $0x48] sm:$0xff] %v1426
    %3725 = vst [vmem:[#allocation2 + $0x50] sm:$0xff] %v1530
    %3726 = vst [vmem:[#allocation2 + $0x58] sm:$0xff] %v1634
    %3727 = vst [vmem:[#allocation2 + $0x60] sm:$0xff] %v1738
    %3728 = vst [vmem:[#allocation2 + $0x68] sm:$0xff] %v1842
    %3729 = vst [vmem:[#allocation2 + $0x70] sm:$0xff] %v1946
    %3730 = vst [vmem:[#allocation2 + $0x78] sm:$0xff] %v2050
    %3731 = vst [vmem:[#allocation2 + $0x80] sm:$0xff] %v2154
    %3732 = vst [vmem:[#allocation2 + $0x88] sm:$0xff] %v2258
    %3733 = vst [vmem:[#allocation2 + $0x90] sm:$0xff] %v2362
    %3734 = vst [vmem:[#allocation2 + $0x98] sm:$0xff] %v2466
    %3735 = vst [vmem:[#allocation2 + $0xa0] sm:$0xff] %v2570
    %3736 = vst [vmem:[#allocation2 + $0xa8] sm:$0xff] %v2674
    %3737 = vst [vmem:[#allocation2 + $0xb0] sm:$0xff] %v2778
    %3738 = vst [vmem:[#allocation2 + $0xb8] sm:$0xff] %v2882
    %3739 = vst [vmem:[#allocation2 + $0xc0] sm:$0xff] %v2986
    %3740 = vst [vmem:[#allocation2 + $0xc8] sm:$0xff] %v3090
    %3741 = vst [vmem:[#allocation2 + $0xd0] sm:$0xff] %v3194
    %3742 = vst [vmem:[#allocation2 + $0xd8] sm:$0xff] %v3298
    %3743 = vst [vmem:[#allocation2 + $0xe0] sm:$0xff] %v3402
    %3744 = vst [vmem:[#allocation2 + $0xe8] sm:$0xff] %v3506
    %3745 = vst [vmem:[#allocation2 + $0xf0] sm:$0xff] %v3610
    %3746 = vst [vmem:[#allocation2 + $0xf8] sm:$0xff] %v3714
    // Predicated region
    $region10: #{tpu_custom_call.1} parent=1 // pred_check
      _
    $region11: #{tpu_custom_call.1} parent=1 // pred_check_branch
      %3748 = sbr.rel (0) target = $region13
    $region12: #{tpu_custom_call.1} parent=1 // pred_region
      %s3750 = ssub.s32 4096, 4096
      %3751 = vsyncadd [#allocation3], %s3750
      %s3752 = sshll.u32 [#allocation2], 4
      %s3753 = int_to_ptr.vmem [resolvable:$true] %s3752
      %3758 = dma.vmem_to_hbm [thread:$0]  %s3753, 4096, %s2, [#allocation3], 256, 256, 16
    $region13: #{tpu_custom_call.1} parent=1 // pred_fallthru
      _
    // Predicated region
    $region14: #{tpu_custom_call.1} parent=1 // pred_check
      _
    $region15: #{tpu_custom_call.1} parent=1 // pred_check_branch
      %3760 = sbr.rel (0) target = $region17
    $region16: #{tpu_custom_call.1} parent=1 // pred_region
      %3761 = dma.done [#allocation3], 4096
    $region17: #{tpu_custom_call.1} parent=1 // pred_fallthru
      _
    %3762 = vsyncpa [#allocation3], 1

</llo_original>
